<compile_context>
chip_gen: v7x
topology: tpu7x:2x2x1
jax: 0.10.0
libtpu: 0.0.40
codegen_flags: <defaults>
</compile_context>

<pallas_src>
import functools

import jax
import jax.numpy as jnp
from jax.experimental import pallas as pl
from jax.experimental.pallas import tpu as pltpu

BN_EPS = 1e-5


def _bn_relu_conv3x3_kernel(x_ref, scale_ref, shift_ref, w_ref, b_ref, *rest,
                            stride, res_mode):
    """o = conv3x3(relu(x*scale+shift), pad=1, stride) + b  [+ residual/shortcut]."""
    if res_mode == "none":
        o_ref, pad_ref, acc_ref = rest
        res_ref = ws_ref = bs_ref = None
    elif res_mode == "identity":
        res_ref, o_ref, pad_ref, acc_ref = rest
        ws_ref = bs_ref = None
    else:  # "conv1x1"
        res_ref, ws_ref, bs_ref, o_ref, pad_ref, acc_ref = rest

    _, H, W, Cin = x_ref.shape
    _, Ho, Wo, Cout = o_ref.shape

    # Zero only the 1-pixel halo of the padded scratch; the interior is fully
    # overwritten below.  Done every grid step so correctness is independent of
    # how the "parallel" batch axis is sharded across TensorCores.
    pad_ref[pl.ds(0, 1), :, :] = jnp.zeros((1, W + 2, Cin), pad_ref.dtype)
    pad_ref[pl.ds(H + 1, 1), :, :] = jnp.zeros((1, W + 2, Cin), pad_ref.dtype)
    pad_ref[:, pl.ds(0, 1), :] = jnp.zeros((H + 2, 1, Cin), pad_ref.dtype)
    pad_ref[:, pl.ds(W + 1, 1), :] = jnp.zeros((H + 2, 1, Cin), pad_ref.dtype)

    # Folded BatchNorm affine + ReLU on the VPU (f32), staged into the padded
    # VMEM scratch in the MXU compute dtype.
    a = jnp.maximum(x_ref[0] * scale_ref[...] + shift_ref[...], 0.0)
    pad_ref[pl.ds(1, H), pl.ds(1, W), :] = a.astype(pad_ref.dtype)

    # 3x3 conv as 9 shifted (Ho*Wo, Cin) x (Cin, Cout) MXU matmuls, accumulated
    # in an f32 VMEM scratch.  First tap overwrites (no zeroing pass).
    for kh in range(3):
        for kw in range(3):
            if stride == 1:
                win = pad_ref[pl.ds(kh, Ho), pl.ds(kw, Wo), :]
            else:
                win = pad_ref[pl.ds(kh, Ho, stride=stride),
                              pl.ds(kw, Wo, stride=stride), :]
            tap = jnp.dot(win.reshape(Ho * Wo, Cin), w_ref[kh, kw],
                          preferred_element_type=jnp.float32)
            if kh == 0 and kw == 0:
                acc_ref[...] = tap
            else:
                acc_ref[...] += tap

    out = acc_ref[...].reshape(Ho, Wo, Cout) + b_ref[...]

    if res_mode == "identity":
        out = out + res_ref[0]
    elif res_mode == "conv1x1":
        Cr = res_ref.shape[-1]
        if stride == 1:
            xs = res_ref[0]
        else:
            xs = res_ref[0, pl.ds(0, Ho, stride=stride),
                         pl.ds(0, Wo, stride=stride), :]
        rs = jnp.dot(xs.astype(ws_ref.dtype).reshape(Ho * Wo, Cr), ws_ref[...],
                     preferred_element_type=jnp.float32)
        out = out + rs.reshape(Ho, Wo, Cout) + bs_ref[...]

    o_ref[0] = out.astype(o_ref.dtype)


def bn_relu_conv3x3(x, scale, shift, w, b, *, stride=1, residual=None,
                    shortcut_w=None, shortcut_b=None,
                    compute_dtype=jnp.float32):
    """Fused bn+relu+conv3x3 (+ optional residual add or fused 1x1-conv shortcut).

    x: (N,H,W,Cin) NHWC f32; w: (3,3,Cin,Cout) HWIO; residual: (N,H,W,Cr) or None;
    shortcut_w: (Cr,Cout) or None.  compute_dtype is the MXU operand dtype
    (bf16 recommended at production widths on v6e/v7x; accumulation is f32).
    """
    N, H, W, Cin = x.shape
    Cout = w.shape[-1]
    Ho = (H - 1) // stride + 1
    Wo = (W - 1) // stride + 1

    if residual is None:
        res_mode = "none"
    elif shortcut_w is None:
        res_mode = "identity"
    else:
        res_mode = "conv1x1"

    wsize = jnp.dtype(compute_dtype).itemsize
    operands = [x, scale, shift, w.astype(compute_dtype), b]
    in_specs = [
        pl.BlockSpec((1, H, W, Cin), lambda n: (n, 0, 0, 0)),
        pl.BlockSpec((1, Cin), lambda n: (0, 0)),
        pl.BlockSpec((1, Cin), lambda n: (0, 0)),
        pl.BlockSpec((3, 3, Cin, Cout), lambda n: (0, 0, 0, 0)),
        pl.BlockSpec((1, Cout), lambda n: (0, 0)),
    ]

    flops = 2 * N * Ho * Wo * 9 * Cin * Cout
    bytes_accessed = 4 * (x.size + N * Ho * Wo * Cout + scale.size
                          + shift.size + b.size) + w.size * wsize

    if res_mode != "none":
        _, Hr, Wr, Cr = residual.shape
        operands.append(residual)
        in_specs.append(pl.BlockSpec((1, Hr, Wr, Cr), lambda n: (n, 0, 0, 0)))
        bytes_accessed += 4 * residual.size
    if res_mode == "conv1x1":
        operands += [shortcut_w.astype(compute_dtype), shortcut_b]
        in_specs += [
            pl.BlockSpec(shortcut_w.shape, lambda n: (0, 0)),
            pl.BlockSpec((1, Cout), lambda n: (0, 0)),
        ]
        flops += 2 * N * Ho * Wo * shortcut_w.shape[0] * Cout
        bytes_accessed += 4 * shortcut_b.size + shortcut_w.size * wsize

    return pl.pallas_call(
        functools.partial(_bn_relu_conv3x3_kernel, stride=stride,
                          res_mode=res_mode),
        out_shape=jax.ShapeDtypeStruct((N, Ho, Wo, Cout), jnp.float32),
        grid=(N,),
        in_specs=in_specs,
        out_specs=pl.BlockSpec((1, Ho, Wo, Cout), lambda n: (n, 0, 0, 0)),
        scratch_shapes=[
            pltpu.VMEM((H + 2, W + 2, Cin), compute_dtype),  # padded activation
            pltpu.VMEM((Ho * Wo, Cout), jnp.float32),        # conv accumulator
        ],
        compiler_params=pltpu.CompilerParams(
            # Batch axis has no cross-iteration dependence -> shard across
            # TensorCores (2 TCs on v7x); harmless on v5e/v6e.
            dimension_semantics=("parallel",),
            vmem_limit_bytes=64 * 1024 * 1024,
        ),
        cost_estimate=pl.CostEstimate(flops=int(flops), transcendentals=0,
                                      bytes_accessed=int(bytes_accessed)),
    )(*operands)


def init_params(key, in_planes, planes):
    ks = jax.random.split(key, 14)
    nrm = lambda k, shape, s=0.1: jax.random.normal(k, shape, jnp.float32) * s
    return dict(
        g1=1.0 + nrm(ks[0], (in_planes,)), be1=nrm(ks[1], (in_planes,)),
        m1=nrm(ks[2], (in_planes,)),
        v1=jax.random.uniform(ks[3], (in_planes,), jnp.float32, 0.5, 1.5),
        w1=nrm(ks[4], (planes, in_planes, 3, 3)), b1=nrm(ks[5], (planes,)),
        g2=1.0 + nrm(ks[6], (planes,)), be2=nrm(ks[7], (planes,)),
        m2=nrm(ks[8], (planes,)),
        v2=jax.random.uniform(ks[9], (planes,), jnp.float32, 0.5, 1.5),
        w2=nrm(ks[10], (planes, planes, 3, 3)), b2=nrm(ks[11], (planes,)),
        ws=nrm(ks[12], (planes, in_planes, 1, 1)), bs=nrm(ks[13], (planes,)),
    )


def basic_block_forward(x_nchw, p, stride, *, compute_dtype=jnp.float32):
    """Pallas implementation of BasicBlock.forward. x_nchw: (N, C, H, W)."""
    in_planes, planes = p['w1'].shape[1], p['w1'].shape[0]

    def fold_bn(g, be, m, v):
        s = g / jnp.sqrt(v + BN_EPS)
        return s.reshape(1, -1), (be - m * s).reshape(1, -1)

    scale1, shift1 = fold_bn(p['g1'], p['be1'], p['m1'], p['v1'])
    scale2, shift2 = fold_bn(p['g2'], p['be2'], p['m2'], p['v2'])
    w1 = jnp.transpose(p['w1'], (2, 3, 1, 0))   # OIHW -> HWIO
    w2 = jnp.transpose(p['w2'], (2, 3, 1, 0))
    b1, b2 = p['b1'].reshape(1, -1), p['b2'].reshape(1, -1)

    x = jnp.transpose(x_nchw, (0, 2, 3, 1))     # NCHW -> NHWC

    # conv1(relu(bn1(x))) -- conv1 is always stride 1; no residual input.
    out1 = bn_relu_conv3x3(x, scale1, shift1, w1, b1, stride=1,
                           compute_dtype=compute_dtype)

    # conv2(dropout(relu(bn2(out1)))) + shortcut(x), fused in one kernel.
    if stride != 1 or in_planes != planes:
        ws = jnp.transpose(p['ws'].reshape(planes, in_planes), (1, 0))  # (Cr,Cout)
        out = bn_relu_conv3x3(out1, scale2, shift2, w2, b2, stride=stride,
                              residual=x, shortcut_w=ws,
                              shortcut_b=p['bs'].reshape(1, -1),
                              compute_dtype=compute_dtype)
    else:
        out = bn_relu_conv3x3(out1, scale2, shift2, w2, b2, stride=stride,
                              residual=x, compute_dtype=compute_dtype)
    return jnp.transpose(out, (0, 3, 1, 2))     # NHWC -> NCHW


def basic_block_reference(x, p, stride):
    """Pure-JAX reference mirroring the PyTorch forward (eval mode)."""
    def bn(x, g, be, m, v):
        inv = 1.0 / jnp.sqrt(v + BN_EPS)
        return ((x - m[None, :, None, None]) * (g * inv)[None, :, None, None]
                + be[None, :, None, None])

    def conv(x, w, b, s, pad):
        y = jax.lax.conv_general_dilated(
            x, w, (s, s), ((pad, pad), (pad, pad)),
            dimension_numbers=('NCHW', 'OIHW', 'NCHW'))
        return y + b[None, :, None, None]

    out = conv(jax.nn.relu(bn(x, p['g1'], p['be1'], p['m1'], p['v1'])),
               p['w1'], p['b1'], 1, 1)
    out = conv(jax.nn.relu(bn(out, p['g2'], p['be2'], p['m2'], p['v2'])),
               p['w2'], p['b2'], stride, 1)
    in_planes, planes = p['w1'].shape[1], p['w1'].shape[0]
    sc = (conv(x, p['ws'], p['bs'], stride, 0)
          if (stride != 1 or in_planes != planes) else x)
    return out + sc


if __name__ == "__main__":
    N, in_planes, planes, H, W = 2, 4, 8, 16, 16
    stride = 1              # dropout_rate = 0.0 -> dropout is identity
    key = jax.random.PRNGKey(0)
    kx, kp = jax.random.split(key)
    x = jax.random.normal(kx, (N, in_planes, H, W), jnp.float32)
    params = init_params(kp, in_planes, planes)

    out = basic_block_forward(x, params, stride)
    out = jax.block_until_ready(out)

    ref = basic_block_reference(x, params, stride)
    assert out.shape == ref.shape, (out.shape, ref.shape)
    err = float(jnp.max(jnp.abs(out - ref)))
    assert err < 5e-2, f"max abs error {err}"
    print("KERNEL_OK")
</pallas_src>

<mosaic_0001>
module attributes {stable_mosaic.version = 11 : i64} {
  func.func @_bn_relu_conv3x3_kernel(%arg0: i32, %arg1: memref<1x16x16x4xf32, #tpu.memory_space<vmem>>, %arg2: memref<1x4xf32, #tpu.memory_space<vmem>>, %arg3: memref<1x4xf32, #tpu.memory_space<vmem>>, %arg4: memref<3x3x4x8xf32, #tpu.memory_space<vmem>>, %arg5: memref<1x8xf32, #tpu.memory_space<vmem>>, %arg6: memref<1x16x16x8xf32, #tpu.memory_space<vmem>>, %arg7: memref<18x18x4xf32, #tpu.memory_space<vmem>>, %arg8: memref<256x8xf32, #tpu.memory_space<vmem>>) attributes {dimension_semantics = [#tpu.dimension_semantics<parallel>], iteration_bounds = array<i64: 2>, scalar_prefetch = 0 : i64, scratch_operands = 2 : i64, tpu.core_type = #tpu.core_type<tc>, window_params = [{transform_indices = @transform_0, window_bounds = array<i64: 1, 16, 16, 4>}, {pipeline_mode = #tpu.pipeline_mode<synchronous>, transform_indices = @transform_1, window_bounds = array<i64: 1, 4>}, {pipeline_mode = #tpu.pipeline_mode<synchronous>, transform_indices = @transform_2, window_bounds = array<i64: 1, 4>}, {pipeline_mode = #tpu.pipeline_mode<synchronous>, transform_indices = @transform_3, window_bounds = array<i64: 3, 3, 4, 8>}, {pipeline_mode = #tpu.pipeline_mode<synchronous>, transform_indices = @transform_4, window_bounds = array<i64: 1, 8>}, {transform_indices = @transform_5, window_bounds = array<i64: 1, 16, 16, 8>}]} {
    %cst = arith.constant 0.000000e+00 : f32
    %0 = vector.broadcast %cst : f32 to vector<1x18x4xf32>
    %c0 = arith.constant 0 : index
    %c0_0 = arith.constant 0 : index
    %c0_1 = arith.constant 0 : index
    %1 = vector.load %arg7[%c0, %c0_0, %c0_1] : memref<18x18x4xf32, #tpu.memory_space<vmem>>, vector<1x18x4xf32>
    tpu.vector_store %arg7[%c0, %c0_0, %c0_1], %0 {strides = array<i32>} : memref<18x18x4xf32, #tpu.memory_space<vmem>>, vector<1x18x4xf32>,
    %cst_2 = arith.constant 0.000000e+00 : f32
    %2 = vector.broadcast %cst_2 : f32 to vector<1x18x4xf32>
    %c17 = arith.constant 17 : index
    %c0_3 = arith.constant 0 : index
    %c0_4 = arith.constant 0 : index
    %3 = vector.load %arg7[%c17, %c0_3, %c0_4] : memref<18x18x4xf32, #tpu.memory_space<vmem>>, vector<1x18x4xf32>
    tpu.vector_store %arg7[%c17, %c0_3, %c0_4], %2 {strides = array<i32>} : memref<18x18x4xf32, #tpu.memory_space<vmem>>, vector<1x18x4xf32>,
    %cst_5 = arith.constant 0.000000e+00 : f32
    %4 = vector.broadcast %cst_5 : f32 to vector<18x1x4xf32>
    %c0_6 = arith.constant 0 : index
    %c0_7 = arith.constant 0 : index
    %c0_8 = arith.constant 0 : index
    %5 = vector.load %arg7[%c0_6, %c0_7, %c0_8] : memref<18x18x4xf32, #tpu.memory_space<vmem>>, vector<18x1x4xf32>
    tpu.vector_store %arg7[%c0_6, %c0_7, %c0_8], %4 {strides = array<i32>} : memref<18x18x4xf32, #tpu.memory_space<vmem>>, vector<18x1x4xf32>,
    %cst_9 = arith.constant 0.000000e+00 : f32
    %6 = vector.broadcast %cst_9 : f32 to vector<18x1x4xf32>
    %c0_10 = arith.constant 0 : index
    %c17_11 = arith.constant 17 : index
    %c0_12 = arith.constant 0 : index
    %7 = vector.load %arg7[%c0_10, %c17_11, %c0_12] : memref<18x18x4xf32, #tpu.memory_space<vmem>>, vector<18x1x4xf32>
    tpu.vector_store %arg7[%c0_10, %c17_11, %c0_12], %6 {strides = array<i32>} : memref<18x18x4xf32, #tpu.memory_space<vmem>>, vector<18x1x4xf32>,
    %c0_13 = arith.constant 0 : index
    %c0_14 = arith.constant 0 : index
    %c0_15 = arith.constant 0 : index
    %c0_16 = arith.constant 0 : index
    %8 = vector.load %arg1[%c0_13, %c0_14, %c0_15, %c0_16] : memref<1x16x16x4xf32, #tpu.memory_space<vmem>>, vector<1x16x16x4xf32>
    %9 = vector.shape_cast %8 : vector<1x16x16x4xf32> to vector<16x16x4xf32>
    %c0_17 = arith.constant 0 : index
    %c0_18 = arith.constant 0 : index
    %10 = vector.load %arg2[%c0_17, %c0_18] : memref<1x4xf32, #tpu.memory_space<vmem>>, vector<1x4xf32>
    %11 = vector.shape_cast %10 : vector<1x4xf32> to vector<1x1x4xf32>
    %12 = vector.broadcast %11 : vector<1x1x4xf32> to vector<16x16x4xf32>
    %13 = arith.mulf %9, %12 : vector<16x16x4xf32>
    %c0_19 = arith.constant 0 : index
    %c0_20 = arith.constant 0 : index
    %14 = vector.load %arg3[%c0_19, %c0_20] : memref<1x4xf32, #tpu.memory_space<vmem>>, vector<1x4xf32>
    %15 = vector.shape_cast %14 : vector<1x4xf32> to vector<1x1x4xf32>
    %16 = vector.broadcast %15 : vector<1x1x4xf32> to vector<16x16x4xf32>
    %17 = arith.addf %13, %16 : vector<16x16x4xf32>
    %cst_21 = arith.constant 0.000000e+00 : f32
    %18 = vector.broadcast %cst_21 : f32 to vector<16x16x4xf32>
    %19 = arith.maximumf %17, %18 : vector<16x16x4xf32>
    %c1 = arith.constant 1 : index
    %c1_22 = arith.constant 1 : index
    %c0_23 = arith.constant 0 : index
    %20 = vector.load %arg7[%c1, %c1_22, %c0_23] : memref<18x18x4xf32, #tpu.memory_space<vmem>>, vector<16x16x4xf32>
    tpu.vector_store %arg7[%c1, %c1_22, %c0_23], %19 {strides = array<i32>} : memref<18x18x4xf32, #tpu.memory_space<vmem>>, vector<16x16x4xf32>,
    %c0_24 = arith.constant 0 : index
    %c0_25 = arith.constant 0 : index
    %c0_26 = arith.constant 0 : index
    %21 = vector.load %arg7[%c0_24, %c0_25, %c0_26] : memref<18x18x4xf32, #tpu.memory_space<vmem>>, vector<16x16x4xf32>
    %22 = vector.shape_cast %21 : vector<16x16x4xf32> to vector<256x4xf32>
    %c0_27 = arith.constant 0 : index
    %c0_28 = arith.constant 0 : index
    %c0_29 = arith.constant 0 : index
    %c0_30 = arith.constant 0 : index
    %23 = vector.load %arg4[%c0_27, %c0_28, %c0_29, %c0_30] : memref<3x3x4x8xf32, #tpu.memory_space<vmem>>, vector<1x1x4x8xf32>
    %24 = vector.shape_cast %23 : vector<1x1x4x8xf32> to vector<4x8xf32>
    %cst_31 = arith.constant dense<0.000000e+00> : vector<256x8xf32>
    %25 = tpu.matmul %22, %24, %cst_31 {dimension_numbers = #tpu.dot_dimension_numbers<[1], [0], [0], [1], [0, 0, 1, 1], [], []>} : vector<256x4xf32>, vector<4x8xf32>, vector<256x8xf32> -> vector<256x8xf32>
    %c0_32 = arith.constant 0 : index
    %c0_33 = arith.constant 0 : index
    %26 = vector.load %arg8[%c0_32, %c0_33] : memref<256x8xf32, #tpu.memory_space<vmem>>, vector<256x8xf32>
    tpu.vector_store %arg8[%c0_32, %c0_33], %25 {strides = array<i32>} : memref<256x8xf32, #tpu.memory_space<vmem>>, vector<256x8xf32>,
    %c0_34 = arith.constant 0 : index
    %c1_35 = arith.constant 1 : index
    %c0_36 = arith.constant 0 : index
    %27 = vector.load %arg7[%c0_34, %c1_35, %c0_36] : memref<18x18x4xf32, #tpu.memory_space<vmem>>, vector<16x16x4xf32>
    %28 = vector.shape_cast %27 : vector<16x16x4xf32> to vector<256x4xf32>
    %c0_37 = arith.constant 0 : index
    %c1_38 = arith.constant 1 : index
    %c0_39 = arith.constant 0 : index
    %c0_40 = arith.constant 0 : index
    %29 = vector.load %arg4[%c0_37, %c1_38, %c0_39, %c0_40] : memref<3x3x4x8xf32, #tpu.memory_space<vmem>>, vector<1x1x4x8xf32>
    %30 = vector.shape_cast %29 : vector<1x1x4x8xf32> to vector<4x8xf32>
    %cst_41 = arith.constant dense<0.000000e+00> : vector<256x8xf32>
    %31 = tpu.matmul %28, %30, %cst_41 {dimension_numbers = #tpu.dot_dimension_numbers<[1], [0], [0], [1], [0, 0, 1, 1], [], []>} : vector<256x4xf32>, vector<4x8xf32>, vector<256x8xf32> -> vector<256x8xf32>
    %c0_42 = arith.constant 0 : index
    %c0_43 = arith.constant 0 : index
    %32 = vector.load %arg8[%c0_42, %c0_43] : memref<256x8xf32, #tpu.memory_space<vmem>>, vector<256x8xf32>
    %33 = arith.addf %32, %31 : vector<256x8xf32>
    %c0_44 = arith.constant 0 : index
    %c0_45 = arith.constant 0 : index
    %34 = vector.load %arg8[%c0_44, %c0_45] : memref<256x8xf32, #tpu.memory_space<vmem>>, vector<256x8xf32>
    tpu.vector_store %arg8[%c0_44, %c0_45], %33 {strides = array<i32>} : memref<256x8xf32, #tpu.memory_space<vmem>>, vector<256x8xf32>,
    %c0_46 = arith.constant 0 : index
    %c2 = arith.constant 2 : index
    %c0_47 = arith.constant 0 : index
    %35 = vector.load %arg7[%c0_46, %c2, %c0_47] : memref<18x18x4xf32, #tpu.memory_space<vmem>>, vector<16x16x4xf32>
    %36 = vector.shape_cast %35 : vector<16x16x4xf32> to vector<256x4xf32>
    %c0_48 = arith.constant 0 : index
    %c2_49 = arith.constant 2 : index
    %c0_50 = arith.constant 0 : index
    %c0_51 = arith.constant 0 : index
    %37 = vector.load %arg4[%c0_48, %c2_49, %c0_50, %c0_51] : memref<3x3x4x8xf32, #tpu.memory_space<vmem>>, vector<1x1x4x8xf32>
    %38 = vector.shape_cast %37 : vector<1x1x4x8xf32> to vector<4x8xf32>
    %cst_52 = arith.constant dense<0.000000e+00> : vector<256x8xf32>
    %39 = tpu.matmul %36, %38, %cst_52 {dimension_numbers = #tpu.dot_dimension_numbers<[1], [0], [0], [1], [0, 0, 1, 1], [], []>} : vector<256x4xf32>, vector<4x8xf32>, vector<256x8xf32> -> vector<256x8xf32>
    %c0_53 = arith.constant 0 : index
    %c0_54 = arith.constant 0 : index
    %40 = vector.load %arg8[%c0_53, %c0_54] : memref<256x8xf32, #tpu.memory_space<vmem>>, vector<256x8xf32>
    %41 = arith.addf %40, %39 : vector<256x8xf32>
    %c0_55 = arith.constant 0 : index
    %c0_56 = arith.constant 0 : index
    %42 = vector.load %arg8[%c0_55, %c0_56] : memref<256x8xf32, #tpu.memory_space<vmem>>, vector<256x8xf32>
    tpu.vector_store %arg8[%c0_55, %c0_56], %41 {strides = array<i32>} : memref<256x8xf32, #tpu.memory_space<vmem>>, vector<256x8xf32>,
    %c1_57 = arith.constant 1 : index
    %c0_58 = arith.constant 0 : index
    %c0_59 = arith.constant 0 : index
    %43 = vector.load %arg7[%c1_57, %c0_58, %c0_59] : memref<18x18x4xf32, #tpu.memory_space<vmem>>, vector<16x16x4xf32>
    %44 = vector.shape_cast %43 : vector<16x16x4xf32> to vector<256x4xf32>
    %c1_60 = arith.constant 1 : index
    %c0_61 = arith.constant 0 : index
    %c0_62 = arith.constant 0 : index
    %c0_63 = arith.constant 0 : index
    %45 = vector.load %arg4[%c1_60, %c0_61, %c0_62, %c0_63] : memref<3x3x4x8xf32, #tpu.memory_space<vmem>>, vector<1x1x4x8xf32>
    %46 = vector.shape_cast %45 : vector<1x1x4x8xf32> to vector<4x8xf32>
    %cst_64 = arith.constant dense<0.000000e+00> : vector<256x8xf32>
    %47 = tpu.matmul %44, %46, %cst_64 {dimension_numbers = #tpu.dot_dimension_numbers<[1], [0], [0], [1], [0, 0, 1, 1], [], []>} : vector<256x4xf32>, vector<4x8xf32>, vector<256x8xf32> -> vector<256x8xf32>
    %c0_65 = arith.constant 0 : index
    %c0_66 = arith.constant 0 : index
    %48 = vector.load %arg8[%c0_65, %c0_66] : memref<256x8xf32, #tpu.memory_space<vmem>>, vector<256x8xf32>
    %49 = arith.addf %48, %47 : vector<256x8xf32>
    %c0_67 = arith.constant 0 : index
    %c0_68 = arith.constant 0 : index
    %50 = vector.load %arg8[%c0_67, %c0_68] : memref<256x8xf32, #tpu.memory_space<vmem>>, vector<256x8xf32>
    tpu.vector_store %arg8[%c0_67, %c0_68], %49 {strides = array<i32>} : memref<256x8xf32, #tpu.memory_space<vmem>>, vector<256x8xf32>,
    %c1_69 = arith.constant 1 : index
    %c1_70 = arith.constant 1 : index
    %c0_71 = arith.constant 0 : index
    %51 = vector.load %arg7[%c1_69, %c1_70, %c0_71] : memref<18x18x4xf32, #tpu.memory_space<vmem>>, vector<16x16x4xf32>
    %52 = vector.shape_cast %51 : vector<16x16x4xf32> to vector<256x4xf32>
    %c1_72 = arith.constant 1 : index
    %c1_73 = arith.constant 1 : index
    %c0_74 = arith.constant 0 : index
    %c0_75 = arith.constant 0 : index
    %53 = vector.load %arg4[%c1_72, %c1_73, %c0_74, %c0_75] : memref<3x3x4x8xf32, #tpu.memory_space<vmem>>, vector<1x1x4x8xf32>
    %54 = vector.shape_cast %53 : vector<1x1x4x8xf32> to vector<4x8xf32>
    %cst_76 = arith.constant dense<0.000000e+00> : vector<256x8xf32>
    %55 = tpu.matmul %52, %54, %cst_76 {dimension_numbers = #tpu.dot_dimension_numbers<[1], [0], [0], [1], [0, 0, 1, 1], [], []>} : vector<256x4xf32>, vector<4x8xf32>, vector<256x8xf32> -> vector<256x8xf32>
    %c0_77 = arith.constant 0 : index
    %c0_78 = arith.constant 0 : index
    %56 = vector.load %arg8[%c0_77, %c0_78] : memref<256x8xf32, #tpu.memory_space<vmem>>, vector<256x8xf32>
    %57 = arith.addf %56, %55 : vector<256x8xf32>
    %c0_79 = arith.constant 0 : index
    %c0_80 = arith.constant 0 : index
    %58 = vector.load %arg8[%c0_79, %c0_80] : memref<256x8xf32, #tpu.memory_space<vmem>>, vector<256x8xf32>
    tpu.vector_store %arg8[%c0_79, %c0_80], %57 {strides = array<i32>} : memref<256x8xf32, #tpu.memory_space<vmem>>, vector<256x8xf32>,
    %c1_81 = arith.constant 1 : index
    %c2_82 = arith.constant 2 : index
    %c0_83 = arith.constant 0 : index
    %59 = vector.load %arg7[%c1_81, %c2_82, %c0_83] : memref<18x18x4xf32, #tpu.memory_space<vmem>>, vector<16x16x4xf32>
    %60 = vector.shape_cast %59 : vector<16x16x4xf32> to vector<256x4xf32>
    %c1_84 = arith.constant 1 : index
    %c2_85 = arith.constant 2 : index
    %c0_86 = arith.constant 0 : index
    %c0_87 = arith.constant 0 : index
    %61 = vector.load %arg4[%c1_84, %c2_85, %c0_86, %c0_87] : memref<3x3x4x8xf32, #tpu.memory_space<vmem>>, vector<1x1x4x8xf32>
    %62 = vector.shape_cast %61 : vector<1x1x4x8xf32> to vector<4x8xf32>
    %cst_88 = arith.constant dense<0.000000e+00> : vector<256x8xf32>
    %63 = tpu.matmul %60, %62, %cst_88 {dimension_numbers = #tpu.dot_dimension_numbers<[1], [0], [0], [1], [0, 0, 1, 1], [], []>} : vector<256x4xf32>, vector<4x8xf32>, vector<256x8xf32> -> vector<256x8xf32>
    %c0_89 = arith.constant 0 : index
    %c0_90 = arith.constant 0 : index
    %64 = vector.load %arg8[%c0_89, %c0_90] : memref<256x8xf32, #tpu.memory_space<vmem>>, vector<256x8xf32>
    %65 = arith.addf %64, %63 : vector<256x8xf32>
    %c0_91 = arith.constant 0 : index
    %c0_92 = arith.constant 0 : index
    %66 = vector.load %arg8[%c0_91, %c0_92] : memref<256x8xf32, #tpu.memory_space<vmem>>, vector<256x8xf32>
    tpu.vector_store %arg8[%c0_91, %c0_92], %65 {strides = array<i32>} : memref<256x8xf32, #tpu.memory_space<vmem>>, vector<256x8xf32>,
    %c2_93 = arith.constant 2 : index
    %c0_94 = arith.constant 0 : index
    %c0_95 = arith.constant 0 : index
    %67 = vector.load %arg7[%c2_93, %c0_94, %c0_95] : memref<18x18x4xf32, #tpu.memory_space<vmem>>, vector<16x16x4xf32>
    %68 = vector.shape_cast %67 : vector<16x16x4xf32> to vector<256x4xf32>
    %c2_96 = arith.constant 2 : index
    %c0_97 = arith.constant 0 : index
    %c0_98 = arith.constant 0 : index
    %c0_99 = arith.constant 0 : index
    %69 = vector.load %arg4[%c2_96, %c0_97, %c0_98, %c0_99] : memref<3x3x4x8xf32, #tpu.memory_space<vmem>>, vector<1x1x4x8xf32>
    %70 = vector.shape_cast %69 : vector<1x1x4x8xf32> to vector<4x8xf32>
    %cst_100 = arith.constant dense<0.000000e+00> : vector<256x8xf32>
    %71 = tpu.matmul %68, %70, %cst_100 {dimension_numbers = #tpu.dot_dimension_numbers<[1], [0], [0], [1], [0, 0, 1, 1], [], []>} : vector<256x4xf32>, vector<4x8xf32>, vector<256x8xf32> -> vector<256x8xf32>
    %c0_101 = arith.constant 0 : index
    %c0_102 = arith.constant 0 : index
    %72 = vector.load %arg8[%c0_101, %c0_102] : memref<256x8xf32, #tpu.memory_space<vmem>>, vector<256x8xf32>
    %73 = arith.addf %72, %71 : vector<256x8xf32>
    %c0_103 = arith.constant 0 : index
    %c0_104 = arith.constant 0 : index
    %74 = vector.load %arg8[%c0_103, %c0_104] : memref<256x8xf32, #tpu.memory_space<vmem>>, vector<256x8xf32>
    tpu.vector_store %arg8[%c0_103, %c0_104], %73 {strides = array<i32>} : memref<256x8xf32, #tpu.memory_space<vmem>>, vector<256x8xf32>,
    %c2_105 = arith.constant 2 : index
    %c1_106 = arith.constant 1 : index
    %c0_107 = arith.constant 0 : index
    %75 = vector.load %arg7[%c2_105, %c1_106, %c0_107] : memref<18x18x4xf32, #tpu.memory_space<vmem>>, vector<16x16x4xf32>
    %76 = vector.shape_cast %75 : vector<16x16x4xf32> to vector<256x4xf32>
    %c2_108 = arith.constant 2 : index
    %c1_109 = arith.constant 1 : index
    %c0_110 = arith.constant 0 : index
    %c0_111 = arith.constant 0 : index
    %77 = vector.load %arg4[%c2_108, %c1_109, %c0_110, %c0_111] : memref<3x3x4x8xf32, #tpu.memory_space<vmem>>, vector<1x1x4x8xf32>
    %78 = vector.shape_cast %77 : vector<1x1x4x8xf32> to vector<4x8xf32>
    %cst_112 = arith.constant dense<0.000000e+00> : vector<256x8xf32>
    %79 = tpu.matmul %76, %78, %cst_112 {dimension_numbers = #tpu.dot_dimension_numbers<[1], [0], [0], [1], [0, 0, 1, 1], [], []>} : vector<256x4xf32>, vector<4x8xf32>, vector<256x8xf32> -> vector<256x8xf32>
    %c0_113 = arith.constant 0 : index
    %c0_114 = arith.constant 0 : index
    %80 = vector.load %arg8[%c0_113, %c0_114] : memref<256x8xf32, #tpu.memory_space<vmem>>, vector<256x8xf32>
    %81 = arith.addf %80, %79 : vector<256x8xf32>
    %c0_115 = arith.constant 0 : index
    %c0_116 = arith.constant 0 : index
    %82 = vector.load %arg8[%c0_115, %c0_116] : memref<256x8xf32, #tpu.memory_space<vmem>>, vector<256x8xf32>
    tpu.vector_store %arg8[%c0_115, %c0_116], %81 {strides = array<i32>} : memref<256x8xf32, #tpu.memory_space<vmem>>, vector<256x8xf32>,
    %c2_117 = arith.constant 2 : index
    %c2_118 = arith.constant 2 : index
    %c0_119 = arith.constant 0 : index
    %83 = vector.load %arg7[%c2_117, %c2_118, %c0_119] : memref<18x18x4xf32, #tpu.memory_space<vmem>>, vector<16x16x4xf32>
    %84 = vector.shape_cast %83 : vector<16x16x4xf32> to vector<256x4xf32>
    %c2_120 = arith.constant 2 : index
    %c2_121 = arith.constant 2 : index
    %c0_122 = arith.constant 0 : index
    %c0_123 = arith.constant 0 : index
    %85 = vector.load %arg4[%c2_120, %c2_121, %c0_122, %c0_123] : memref<3x3x4x8xf32, #tpu.memory_space<vmem>>, vector<1x1x4x8xf32>
    %86 = vector.shape_cast %85 : vector<1x1x4x8xf32> to vector<4x8xf32>
    %cst_124 = arith.constant dense<0.000000e+00> : vector<256x8xf32>
    %87 = tpu.matmul %84, %86, %cst_124 {dimension_numbers = #tpu.dot_dimension_numbers<[1], [0], [0], [1], [0, 0, 1, 1], [], []>} : vector<256x4xf32>, vector<4x8xf32>, vector<256x8xf32> -> vector<256x8xf32>
    %c0_125 = arith.constant 0 : index
    %c0_126 = arith.constant 0 : index
    %88 = vector.load %arg8[%c0_125, %c0_126] : memref<256x8xf32, #tpu.memory_space<vmem>>, vector<256x8xf32>
    %89 = arith.addf %88, %87 : vector<256x8xf32>
    %c0_127 = arith.constant 0 : index
    %c0_128 = arith.constant 0 : index
    %90 = vector.load %arg8[%c0_127, %c0_128] : memref<256x8xf32, #tpu.memory_space<vmem>>, vector<256x8xf32>
    tpu.vector_store %arg8[%c0_127, %c0_128], %89 {strides = array<i32>} : memref<256x8xf32, #tpu.memory_space<vmem>>, vector<256x8xf32>,
    %c0_129 = arith.constant 0 : index
    %c0_130 = arith.constant 0 : index
    %91 = vector.load %arg8[%c0_129, %c0_130] : memref<256x8xf32, #tpu.memory_space<vmem>>, vector<256x8xf32>
    %92 = vector.shape_cast %91 : vector<256x8xf32> to vector<16x16x8xf32>
    %c0_131 = arith.constant 0 : index
    %c0_132 = arith.constant 0 : index
    %93 = vector.load %arg5[%c0_131, %c0_132] : memref<1x8xf32, #tpu.memory_space<vmem>>, vector<1x8xf32>
    %94 = vector.shape_cast %93 : vector<1x8xf32> to vector<1x1x8xf32>
    %95 = vector.broadcast %94 : vector<1x1x8xf32> to vector<16x16x8xf32>
    %96 = arith.addf %92, %95 : vector<16x16x8xf32>
    %c0_133 = arith.constant 0 : index
    %c0_134 = arith.constant 0 : index
    %c0_135 = arith.constant 0 : index
    %c0_136 = arith.constant 0 : index
    %97 = vector.load %arg6[%c0_133, %c0_134, %c0_135, %c0_136] : memref<1x16x16x8xf32, #tpu.memory_space<vmem>>, vector<1x16x16x8xf32>
    %98 = vector.shape_cast %97 : vector<1x16x16x8xf32> to vector<16x16x8xf32>
    %99 = vector.shape_cast %96 : vector<16x16x8xf32> to vector<1x16x16x8xf32>
    tpu.vector_store %arg6[%c0_133, %c0_134, %c0_135, %c0_136], %99 {strides = array<i32>} : memref<1x16x16x8xf32, #tpu.memory_space<vmem>>, vector<1x16x16x8xf32>,
    return
  }
  func.func @transform_0(%arg0: i32) -> (i32, i32, i32, i32) {
    %c0_i32 = arith.constant 0 : i32
    %c0_i32_0 = arith.constant 0 : i32
    %c0_i32_1 = arith.constant 0 : i32
    %c0_i32_2 = arith.constant 0 : i32
    return %arg0, %c0_i32, %c0_i32_0, %c0_i32_1 : i32, i32, i32, i32
  }
  func.func @transform_1(%arg0: i32) -> (i32, i32) {
    %c0_i32 = arith.constant 0 : i32
    %c0_i32_0 = arith.constant 0 : i32
    %c0_i32_1 = arith.constant 0 : i32
    return %c0_i32, %c0_i32_0 : i32, i32
  }
  func.func @transform_2(%arg0: i32) -> (i32, i32) {
    %c0_i32 = arith.constant 0 : i32
    %c0_i32_0 = arith.constant 0 : i32
    %c0_i32_1 = arith.constant 0 : i32
    return %c0_i32, %c0_i32_0 : i32, i32
  }
  func.func @transform_3(%arg0: i32) -> (i32, i32, i32, i32) {
    %c0_i32 = arith.constant 0 : i32
    %c0_i32_0 = arith.constant 0 : i32
    %c0_i32_1 = arith.constant 0 : i32
    %c0_i32_2 = arith.constant 0 : i32
    %c0_i32_3 = arith.constant 0 : i32
    return %c0_i32, %c0_i32_0, %c0_i32_1, %c0_i32_2 : i32, i32, i32, i32
  }
  func.func @transform_4(%arg0: i32) -> (i32, i32) {
    %c0_i32 = arith.constant 0 : i32
    %c0_i32_0 = arith.constant 0 : i32
    %c0_i32_1 = arith.constant 0 : i32
    return %c0_i32, %c0_i32_0 : i32, i32
  }
  func.func @transform_5(%arg0: i32) -> (i32, i32, i32, i32) {
    %c0_i32 = arith.constant 0 : i32
    %c0_i32_0 = arith.constant 0 : i32
    %c0_i32_1 = arith.constant 0 : i32
    %c0_i32_2 = arith.constant 0 : i32
    return %arg0, %c0_i32, %c0_i32_0, %c0_i32_1 : i32, i32, i32, i32
  }
}

</mosaic_0001>

<llo_original>
// kernel: tpu_custom_call.1
$region0: #{tpu_custom_call.1}
  #allocation0 [shape = 'u32[]', space=smem, size = 0x4, offset = 0x4, fixed_abs, tag = 'smem constant byte address 0x4 - core index']
  #allocation1 [shape = 'u32[144,128]{1,0:T(1,128)}', space=vmem, size = 0x12000, scoped, tag = 'internal scratch']
  #allocation2 [shape = 'f32[18,18,4]{2,1,0:T(8,128)}', space=vmem, size = 0x36000, scoped, tag = 'scratch operand']
  #allocation3 [shape = 'f32[256,8]{1,0:T(8,128)}', space=vmem, size = 0x20000, scoped, tag = 'scratch operand']
  %s0 = inlined_call_operand.hbm [shape: f32[2,16,16,4], index: 0, kind: input, shape index: {}]
  %s1 = inlined_call_operand.hbm [shape: f32[1,4], index: 1, kind: input, shape index: {}]
  %s2 = inlined_call_operand.hbm [shape: f32[1,4], index: 2, kind: input, shape index: {}]
  %s3 = inlined_call_operand.hbm [shape: f32[3,3,4,8], index: 3, kind: input, shape index: {}]
  %s4 = inlined_call_operand.hbm [shape: f32[1,8], index: 4, kind: input, shape index: {}]
  %s5 = inlined_call_operand.hbm [shape: f32[2,16,16,8], index: 5, kind: output, shape index: {}]
  %s6 = sld [smem:[#allocation0]]
  $region73: #{tpu_custom_call.1} parent=0
    _
  %s8 = ssub.s32 1, %s6
  %s9 = scalar_select 0, %s8, %s6
  $region1: #{tpu_custom_call.1} parent=0
    #allocation4 [shape = 'u8[262144]{0}', space=vmem, size = 0x40000, scoped, tag = 'input window, operand 0']
    #allocation5 [shape = 's32[2]{0}', space=sflag, size = 0x8, scoped, tag = 'scoped memory for tpu_custom_call.1']
    #allocation6 [shape = 's32[2]{0}', space=sflag, size = 0x8, scoped, tag = 'scoped memory for tpu_custom_call.1']
    #allocation7 [shape = 'u8[512]{0}', space=vmem, size = 0x400, scoped, tag = 'input window, operand 1, single buffered']
    #allocation8 [shape = 's32[1]{0}', space=sflag, size = 0x4, scoped, tag = 'scoped memory for tpu_custom_call.1']
    #allocation9 [shape = 'u8[512]{0}', space=vmem, size = 0x400, scoped, tag = 'input window, operand 2, single buffered']
    #allocation10 [shape = 'u8[18432]{0}', space=vmem, size = 0x4800, scoped, tag = 'input window, operand 3, single buffered']
    #allocation11 [shape = 's32[1]{0}', space=sflag, size = 0x4, scoped, tag = 'scoped memory for tpu_custom_call.1']
    #allocation12 [shape = 'u8[512]{0}', space=vmem, size = 0x400, scoped, tag = 'input window, operand 4, single buffered']
    #allocation13 [shape = 'u8[262144]{0}', space=vmem, size = 0x40000, scoped, tag = 'output window, operand 0']
    %10 = vsyncpa [#allocation5], 0
    %s11 = scalar_lea.sflag [#allocation5], 1
    %12 = vsyncpa %s11, 0
    %13 = vsyncpa [#allocation8], 0
    %14 = vsyncpa [#allocation11], 0
    %15 = vsyncpa [#allocation6], 0
    %s16 = scalar_lea.sflag [#allocation6], 1
    %17 = vsyncpa %s16, 0
    loop: start=0, step=1, limit=4
    $region2: #{tpu_custom_call.1} parent=1 // loop_pre_header
      _
    $region3: #{tpu_custom_call.1} parent=1 // loop_header
      %s19 = sphi 0, %s23
      %p20 = scmp.ge.s32.totalorder %s19, 4
      %s29 = sphi 0, %s31
      %s32 = sphi 0, %s29
      %s33 = sphi 0, %s32
      %s49 = sphi 0, %s33
      %s53 = sphi 0, %s53
      %s55 = sphi 0, %s53
      %s56 = sphi 0, %s55
      %s70 = sphi 0, %s56
      %s74 = sphi 0, %s74
      %s76 = sphi 0, %s74
      %s77 = sphi 0, %s76
      %s91 = sphi 0, %s77
      %s95 = sphi 0, %s95
      %s97 = sphi 0, %s95
      %s98 = sphi 0, %s97
      %s112 = sphi 0, %s98
      %s116 = sphi 0, %s116
      %s118 = sphi 0, %s116
      %s119 = sphi 0, %s118
      %s133 = sphi 0, %s119
      %s139 = sphi 0, %s141
      %s142 = sphi 0, %s139
      %s143 = sphi 0, %s142
      %s159 = sphi 0, %s143
    $region4: #{tpu_custom_call.1} parent=1 // loop_header_branch
      %22 = sbr.rel (%p20) target = $region8
    $region5: #{tpu_custom_call.1} parent=1 // loop_body
      %s24 = ssub.s32 %s19, 1
      %s25 = ssub.s32 %s19, 2
      %s26 = sadd.s32 %s19, 1
      %s27 = ssub.s32 %s19, %s26
      %p28 = scmp.eq.s32.totalorder %s27, 0
      %s30 = sadd.s32 %s29, 1
      %s31 = scalar_select %p28, %s29, %s30
      %p34 = pneg %p28
      %p35 = scmp.eq.s32.totalorder %s19, 1
      %p36 = por %p34, %p35
      %p37 = scmp.ne.s32.totalorder %s29, %s32
      %p38 = scmp.eq.s32.totalorder %s19, 0
      %p39 = por %p37, %p38
      %p40 = scmp.ne.s32.totalorder %s29, %s32
      %p41 = scmp.eq.s32.totalorder %s24, 1
      %p42 = por %p40, %p41
      %p43 = scmp.ne.s32.totalorder %s32, %s33
      %p44 = scmp.eq.s32.totalorder %s24, 0
      %p45 = por %p43, %p44
      %p46 = scmp.ne.s32.totalorder %s32, %s33
      %p47 = scmp.eq.s32.totalorder %s25, 1
      %p48 = por %p46, %p47
      %p50 = scmp.ne.s32.totalorder %s33, %s49
      %p51 = scmp.eq.s32.totalorder %s25, 0
      %p52 = por %p50, %p51
      %s54 = sadd.s32 %s53, 1
      %p57 = scmp.eq.s32.totalorder %s19, 1
      %p58 = scmp.ne.s32.totalorder %s53, %s55
      %p59 = scmp.eq.s32.totalorder %s19, 0
      %p60 = por %p58, %p59
      %p61 = scmp.ne.s32.totalorder %s53, %s55
      %p62 = scmp.eq.s32.totalorder %s24, 1
      %p63 = por %p61, %p62
      %p64 = scmp.ne.s32.totalorder %s55, %s56
      %p65 = scmp.eq.s32.totalorder %s24, 0
      %p66 = por %p64, %p65
      %p67 = scmp.ne.s32.totalorder %s55, %s56
      %p68 = scmp.eq.s32.totalorder %s25, 1
      %p69 = por %p67, %p68
      %p71 = scmp.ne.s32.totalorder %s56, %s70
      %p72 = scmp.eq.s32.totalorder %s25, 0
      %p73 = por %p71, %p72
      %s75 = sadd.s32 %s74, 1
      %p78 = scmp.eq.s32.totalorder %s19, 1
      %p79 = scmp.ne.s32.totalorder %s74, %s76
      %p80 = scmp.eq.s32.totalorder %s19, 0
      %p81 = por %p79, %p80
      %p82 = scmp.ne.s32.totalorder %s74, %s76
      %p83 = scmp.eq.s32.totalorder %s24, 1
      %p84 = por %p82, %p83
      %p85 = scmp.ne.s32.totalorder %s76, %s77
      %p86 = scmp.eq.s32.totalorder %s24, 0
      %p87 = por %p85, %p86
      %p88 = scmp.ne.s32.totalorder %s76, %s77
      %p89 = scmp.eq.s32.totalorder %s25, 1
      %p90 = por %p88, %p89
      %p92 = scmp.ne.s32.totalorder %s77, %s91
      %p93 = scmp.eq.s32.totalorder %s25, 0
      %p94 = por %p92, %p93
      %s96 = sadd.s32 %s95, 1
      %p99 = scmp.eq.s32.totalorder %s19, 1
      %p100 = scmp.ne.s32.totalorder %s95, %s97
      %p101 = scmp.eq.s32.totalorder %s19, 0
      %p102 = por %p100, %p101
      %p103 = scmp.ne.s32.totalorder %s95, %s97
      %p104 = scmp.eq.s32.totalorder %s24, 1
      %p105 = por %p103, %p104
      %p106 = scmp.ne.s32.totalorder %s97, %s98
      %p107 = scmp.eq.s32.totalorder %s24, 0
      %p108 = por %p106, %p107
      %p109 = scmp.ne.s32.totalorder %s97, %s98
      %p110 = scmp.eq.s32.totalorder %s25, 1
      %p111 = por %p109, %p110
      %p113 = scmp.ne.s32.totalorder %s98, %s112
      %p114 = scmp.eq.s32.totalorder %s25, 0
      %p115 = por %p113, %p114
      %s117 = sadd.s32 %s116, 1
      %p120 = scmp.eq.s32.totalorder %s19, 1
      %p121 = scmp.ne.s32.totalorder %s116, %s118
      %p122 = scmp.eq.s32.totalorder %s19, 0
      %p123 = por %p121, %p122
      %p124 = scmp.ne.s32.totalorder %s116, %s118
      %p125 = scmp.eq.s32.totalorder %s24, 1
      %p126 = por %p124, %p125
      %p127 = scmp.ne.s32.totalorder %s118, %s119
      %p128 = scmp.eq.s32.totalorder %s24, 0
      %p129 = por %p127, %p128
      %p130 = scmp.ne.s32.totalorder %s118, %s119
      %p131 = scmp.eq.s32.totalorder %s25, 1
      %p132 = por %p130, %p131
      %p134 = scmp.ne.s32.totalorder %s119, %s133
      %p135 = scmp.eq.s32.totalorder %s25, 0
      %p136 = por %p134, %p135
      %s137 = ssub.s32 %s19, %s26
      %p138 = scmp.eq.s32.totalorder %s137, 0
      %s140 = sadd.s32 %s139, 1
      %s141 = scalar_select %p138, %s139, %s140
      %p144 = pneg %p138
      %p145 = scmp.eq.s32.totalorder %s19, 1
      %p146 = por %p144, %p145
      %p147 = scmp.ne.s32.totalorder %s139, %s142
      %p148 = scmp.eq.s32.totalorder %s19, 0
      %p149 = por %p147, %p148
      %p150 = scmp.ne.s32.totalorder %s139, %s142
      %p151 = scmp.eq.s32.totalorder %s24, 1
      %p152 = por %p150, %p151
      %p153 = scmp.ne.s32.totalorder %s142, %s143
      %p154 = scmp.eq.s32.totalorder %s24, 0
      %p155 = por %p153, %p154
      %p156 = scmp.ne.s32.totalorder %s142, %s143
      %p157 = scmp.eq.s32.totalorder %s25, 1
      %p158 = por %p156, %p157
      %p160 = scmp.ne.s32.totalorder %s143, %s159
      %p161 = scmp.eq.s32.totalorder %s25, 0
      %p162 = por %p160, %p161
      %p163 = scmp.le.s32.totalorder 1, %s19
      %p164 = scmp.lt.s32.totalorder %s19, 3
      %p165 = pnand %p163, %p164
      %p166 = pneg %p165
      // Predicated region
      $region9: #{tpu_custom_call.1} parent=5 // pred_check
        _
      $region10: #{tpu_custom_call.1} parent=5 // pred_check_branch
        %168 = sbr.rel (%p165) target = $region12
      $region11: #{tpu_custom_call.1} parent=5 // pred_region
        %s169 = ssub.s32 %s19, 1
        // Predicated region
        $region13: #{tpu_custom_call.1} parent=11 // pred_check
          %p170 = pneg %p66
        $region14: #{tpu_custom_call.1} parent=11 // pred_check_branch
          %172 = sbr.rel (%p170) target = $region16
        $region15: #{tpu_custom_call.1} parent=11 // pred_region
          %s174 = ssub.s32 16, 16
          %175 = vsyncadd [#allocation8], %s174
          %s177 = sshll.u32 [#allocation7], 4
          %s178 = int_to_ptr.vmem [resolvable:$true] %s177
          %180 = dma.hbm_to_vmem [thread:$0]  %s1, 16, %s178, [#allocation8]
        $region16: #{tpu_custom_call.1} parent=11 // pred_fallthru
          _
        // Predicated region
        $region17: #{tpu_custom_call.1} parent=11 // pred_check
          %p181 = pneg %p87
        $region18: #{tpu_custom_call.1} parent=11 // pred_check_branch
          %183 = sbr.rel (%p181) target = $region20
        $region19: #{tpu_custom_call.1} parent=11 // pred_region
          %s185 = ssub.s32 16, 16
          %186 = vsyncadd [#allocation8], %s185
          %s188 = sshll.u32 [#allocation9], 4
          %s189 = int_to_ptr.vmem [resolvable:$true] %s188
          %191 = dma.hbm_to_vmem [thread:$0]  %s2, 16, %s189, [#allocation8]
        $region20: #{tpu_custom_call.1} parent=11 // pred_fallthru
          _
        // Predicated region
        $region21: #{tpu_custom_call.1} parent=11 // pred_check
          %p192 = pneg %p108
        $region22: #{tpu_custom_call.1} parent=11 // pred_check_branch
          %194 = sbr.rel (%p192) target = $region24
        $region23: #{tpu_custom_call.1} parent=11 // pred_region
          %s196 = ssub.s32 576, 576
          %197 = vsyncadd [#allocation11], %s196
          %s198 = sshll.u32 [#allocation10], 4
          %s199 = int_to_ptr.vmem [resolvable:$true] %s198
          %204 = dma.hbm_to_vmem [thread:$0]  %s3, 576, %s199, [#allocation11], 64, 64, 4
        $region24: #{tpu_custom_call.1} parent=11 // pred_fallthru
          _
        // Predicated region
        $region25: #{tpu_custom_call.1} parent=11 // pred_check
          %p205 = pneg %p129
        $region26: #{tpu_custom_call.1} parent=11 // pred_check_branch
          %207 = sbr.rel (%p205) target = $region28
        $region27: #{tpu_custom_call.1} parent=11 // pred_region
          %s209 = ssub.s32 16, 16
          %210 = vsyncadd [#allocation11], %s209
          %s212 = sshll.u32 [#allocation12], 4
          %s213 = int_to_ptr.vmem [resolvable:$true] %s212
          %215 = dma.hbm_to_vmem [thread:$0]  %s4, 16, %s213, [#allocation11]
        $region28: #{tpu_custom_call.1} parent=11 // pred_fallthru
          _
      $region12: #{tpu_custom_call.1} parent=5 // pred_fallthru
        _
      %p216 = scmp.lt.s32.totalorder %s19, 2
      // Predicated region
      $region29: #{tpu_custom_call.1} parent=5 // pred_check
        %p217 = pneg %p216
      $region30: #{tpu_custom_call.1} parent=5 // pred_check_branch
        %219 = sbr.rel (%p217) target = $region32
      $region31: #{tpu_custom_call.1} parent=5 // pred_region
        // Predicated region
        $region33: #{tpu_custom_call.1} parent=31 // pred_check
          %p220 = pneg %p39
        $region34: #{tpu_custom_call.1} parent=31 // pred_check_branch
          %222 = sbr.rel (%p220) target = $region36
        $region35: #{tpu_custom_call.1} parent=31 // pred_region
          %s223 = sand.u32 %s29, 1
          %s224 = scalar_lea.sflag [#allocation5], %s223
          %s225 = sand.u32 %s29, 1
          %s226 = smul.addr %s225, 256
          %s227 = scalar_lea.vmem [#allocation4], %s226
          %s229 = ssub.s32 4096, 4096
          %230 = vsyncadd %s224, %s229
          %s231 = smul.addr %s19, 32
          %s232 = smul.addr %s231, 128
          %s233 = scalar_lea.hbm %s0, %s232
          %s234 = sshll.u32 %s227, 4
          %s235 = int_to_ptr.vmem [resolvable:$true] %s234
          %240 = dma.hbm_to_vmem [thread:$0]  %s233, 4096, %s235, %s224, 128, 128, 8
        $region36: #{tpu_custom_call.1} parent=31 // pred_fallthru
          _
      $region32: #{tpu_custom_call.1} parent=5 // pred_fallthru
        _
      %p241 = scmp.le.s32.totalorder 1, %s19
      %p242 = scmp.lt.s32.totalorder %s19, 3
      %p243 = pnand %p241, %p242
      %p244 = pneg %p243
      // Predicated region
      $region37: #{tpu_custom_call.1} parent=5 // pred_check
        _
      $region38: #{tpu_custom_call.1} parent=5 // pred_check_branch
        %246 = sbr.rel (%p243) target = $region40
      $region39: #{tpu_custom_call.1} parent=5 // pred_region
        %s247 = ssub.s32 %s19, 1
        %s248 = sand.u32 %s32, 1
        %s249 = scalar_lea.sflag [#allocation5], %s248
        %s250 = sand.u32 %s32, 1
        %s251 = smul.addr %s250, 256
        %s252 = scalar_lea.vmem [#allocation4], %s251
        // Predicated region
        $region41: #{tpu_custom_call.1} parent=39 // pred_check
          %p253 = pneg %p45
        $region42: #{tpu_custom_call.1} parent=39 // pred_check_branch
          %255 = sbr.rel (%p253) target = $region44
        $region43: #{tpu_custom_call.1} parent=39 // pred_region
          %256 = dma.done %s249, 4096
        $region44: #{tpu_custom_call.1} parent=39 // pred_fallthru
          _
        // Predicated region
        $region45: #{tpu_custom_call.1} parent=39 // pred_check
          %p257 = pneg %p66
        $region46: #{tpu_custom_call.1} parent=39 // pred_check_branch
          %259 = sbr.rel (%p257) target = $region48
        $region47: #{tpu_custom_call.1} parent=39 // pred_region
          %260 = dma.done [#allocation8], 16
        $region48: #{tpu_custom_call.1} parent=39 // pred_fallthru
          _
        // Predicated region
        $region49: #{tpu_custom_call.1} parent=39 // pred_check
          %p261 = pneg %p87
        $region50: #{tpu_custom_call.1} parent=39 // pred_check_branch
          %263 = sbr.rel (%p261) target = $region52
        $region51: #{tpu_custom_call.1} parent=39 // pred_region
          %264 = dma.done [#allocation8], 16
        $region52: #{tpu_custom_call.1} parent=39 // pred_fallthru
          _
        // Predicated region
        $region53: #{tpu_custom_call.1} parent=39 // pred_check
          %p265 = pneg %p108
        $region54: #{tpu_custom_call.1} parent=39 // pred_check_branch
          %267 = sbr.rel (%p265) target = $region56
        $region55: #{tpu_custom_call.1} parent=39 // pred_region
          %268 = dma.done [#allocation11], 576
        $region56: #{tpu_custom_call.1} parent=39 // pred_fallthru
          _
        // Predicated region
        $region57: #{tpu_custom_call.1} parent=39 // pred_check
          %p269 = pneg %p129
        $region58: #{tpu_custom_call.1} parent=39 // pred_check_branch
          %271 = sbr.rel (%p269) target = $region60
        $region59: #{tpu_custom_call.1} parent=39 // pred_region
          %272 = dma.done [#allocation11], 16
        $region60: #{tpu_custom_call.1} parent=39 // pred_fallthru
          _
        %s273 = sand.u32 %s32, 1
        %s274 = scalar_lea.sflag [#allocation5], %s273
        %s275 = sand.u32 %s32, 1
        %s276 = smul.addr %s275, 256
        %s277 = scalar_lea.vmem [#allocation4], %s276
        %p278 = pneg %p45
        %p279 = pneg %p42
        %p280 = pneg %p66
        %p281 = pneg %p63
        %p282 = pneg %p87
        %p283 = pneg %p84
        %p284 = pneg %p108
        %p285 = pneg %p105
        %p286 = pneg %p129
        %p287 = pneg %p126
        %p288 = pneg %p155
        %p289 = pneg %p152
        %s290 = sand.u32 %s142, 1
        %s291 = scalar_lea.sflag [#allocation6], %s290
        %s292 = sand.u32 %s142, 1
        %s293 = smul.addr %s292, 256
        %s294 = scalar_lea.vmem [#allocation13], %s293
        %vm295 = vcmask 31744
        %296 = vst.msk [vmem:[#allocation2] sm:$0xff] %vm295, 0.0
        %297 = vst.msk [vmem:[#allocation2 + $0x8] sm:$0xff] %vm295, 0.0
        %vm298 = vcmask 25600
        %299 = vst.msk [vmem:[#allocation2 + $0x10] sm:$0x3] %vm298, 0.0
        %s300 = scalar_lea.vmem [#allocation2], 408
        %301 = vst.msk [vmem:[%s300] sm:$0xff] %vm295, 0.0
        %302 = vst.msk [vmem:[%s300 + $0x8] sm:$0xff] %vm295, 0.0
        %303 = vst.msk [vmem:[%s300 + $0x10] sm:$0x3] %vm298, 0.0
        %vm304 = vcmask 24576
        %305 = vst.msk [vmem:[#allocation2] sm:$0x1] %vm304, 0.0
        %306 = vst.msk [vmem:[#allocation2 + $0x18] sm:$0x1] %vm304, 0.0
        %307 = vst.msk [vmem:[#allocation2 + $0x30] sm:$0x1] %vm304, 0.0
        %308 = vst.msk [vmem:[#allocation2 + $0x48] sm:$0x1] %vm304, 0.0
        %309 = vst.msk [vmem:[#allocation2 + $0x60] sm:$0x1] %vm304, 0.0
        %310 = vst.msk [vmem:[#allocation2 + $0x78] sm:$0x1] %vm304, 0.0
        %311 = vst.msk [vmem:[#allocation2 + $0x90] sm:$0x1] %vm304, 0.0
        %312 = vst.msk [vmem:[#allocation2 + $0xa8] sm:$0x1] %vm304, 0.0
        %313 = vst.msk [vmem:[#allocation2 + $0xc0] sm:$0x1] %vm304, 0.0
        %314 = vst.msk [vmem:[#allocation2 + $0xd8] sm:$0x1] %vm304, 0.0
        %315 = vst.msk [vmem:[#allocation2 + $0xf0] sm:$0x1] %vm304, 0.0
        %316 = vst.msk [vmem:[#allocation2 + $0x108] sm:$0x1] %vm304, 0.0
        %317 = vst.msk [vmem:[#allocation2 + $0x120] sm:$0x1] %vm304, 0.0
        %318 = vst.msk [vmem:[#allocation2 + $0x138] sm:$0x1] %vm304, 0.0
        %319 = vst.msk [vmem:[#allocation2 + $0x150] sm:$0x1] %vm304, 0.0
        %320 = vst.msk [vmem:[#allocation2 + $0x168] sm:$0x1] %vm304, 0.0
        %321 = vst.msk [vmem:[#allocation2 + $0x180] sm:$0x1] %vm304, 0.0
        %322 = vst.msk [vmem:[#allocation2 + $0x198] sm:$0x1] %vm304, 0.0
        %323 = vst.msk [vmem:[#allocation2 + $0x11] sm:$0x1] %vm304, 0.0
        %324 = vst.msk [vmem:[#allocation2 + $0x29] sm:$0x1] %vm304, 0.0
        %325 = vst.msk [vmem:[#allocation2 + $0x41] sm:$0x1] %vm304, 0.0
        %326 = vst.msk [vmem:[#allocation2 + $0x59] sm:$0x1] %vm304, 0.0
        %327 = vst.msk [vmem:[#allocation2 + $0x71] sm:$0x1] %vm304, 0.0
        %328 = vst.msk [vmem:[#allocation2 + $0x89] sm:$0x1] %vm304, 0.0
        %329 = vst.msk [vmem:[#allocation2 + $0xa1] sm:$0x1] %vm304, 0.0
        %330 = vst.msk [vmem:[#allocation2 + $0xb9] sm:$0x1] %vm304, 0.0
        %331 = vst.msk [vmem:[#allocation2 + $0xd1] sm:$0x1] %vm304, 0.0
        %332 = vst.msk [vmem:[#allocation2 + $0xe9] sm:$0x1] %vm304, 0.0
        %333 = vst.msk [vmem:[#allocation2 + $0x101] sm:$0x1] %vm304, 0.0
        %334 = vst.msk [vmem:[#allocation2 + $0x119] sm:$0x1] %vm304, 0.0
        %335 = vst.msk [vmem:[#allocation2 + $0x131] sm:$0x1] %vm304, 0.0
        %336 = vst.msk [vmem:[#allocation2 + $0x149] sm:$0x1] %vm304, 0.0
        %337 = vst.msk [vmem:[#allocation2 + $0x161] sm:$0x1] %vm304, 0.0
        %338 = vst.msk [vmem:[#allocation2 + $0x179] sm:$0x1] %vm304, 0.0
        %339 = vst.msk [vmem:[#allocation2 + $0x191] sm:$0x1] %vm304, 0.0
        %340 = vst.msk [vmem:[#allocation2 + $0x1a9] sm:$0x1] %vm304, 0.0
        %v341 = vld [vmem:[%s252] sm:$0xff]
        %v342 = vld [vmem:[%s252 + $0x8] sm:$0xff]
        %v343 = vld [vmem:[%s252 + $0x10] sm:$0xff]
        %v344 = vld [vmem:[%s252 + $0x18] sm:$0xff]
        %v345 = vld [vmem:[%s252 + $0x20] sm:$0xff]
        %v346 = vld [vmem:[%s252 + $0x28] sm:$0xff]
        %v347 = vld [vmem:[%s252 + $0x30] sm:$0xff]
        %v348 = vld [vmem:[%s252 + $0x38] sm:$0xff]
        %v349 = vld [vmem:[%s252 + $0x40] sm:$0xff]
        %v350 = vld [vmem:[%s252 + $0x48] sm:$0xff]
        %v351 = vld [vmem:[%s252 + $0x50] sm:$0xff]
        %v352 = vld [vmem:[%s252 + $0x58] sm:$0xff]
        %v353 = vld [vmem:[%s252 + $0x60] sm:$0xff]
        %v354 = vld [vmem:[%s252 + $0x68] sm:$0xff]
        %v355 = vld [vmem:[%s252 + $0x70] sm:$0xff]
        %v356 = vld [vmem:[%s252 + $0x78] sm:$0xff]
        %v357 = vld [vmem:[%s252 + $0x80] sm:$0xff]
        %v358 = vld [vmem:[%s252 + $0x88] sm:$0xff]
        %v359 = vld [vmem:[%s252 + $0x90] sm:$0xff]
        %v360 = vld [vmem:[%s252 + $0x98] sm:$0xff]
        %v361 = vld [vmem:[%s252 + $0xa0] sm:$0xff]
        %v362 = vld [vmem:[%s252 + $0xa8] sm:$0xff]
        %v363 = vld [vmem:[%s252 + $0xb0] sm:$0xff]
        %v364 = vld [vmem:[%s252 + $0xb8] sm:$0xff]
        %v365 = vld [vmem:[%s252 + $0xc0] sm:$0xff]
        %v366 = vld [vmem:[%s252 + $0xc8] sm:$0xff]
        %v367 = vld [vmem:[%s252 + $0xd0] sm:$0xff]
        %v368 = vld [vmem:[%s252 + $0xd8] sm:$0xff]
        %v369 = vld [vmem:[%s252 + $0xe0] sm:$0xff]
        %v370 = vld [vmem:[%s252 + $0xe8] sm:$0xff]
        %v371 = vld [vmem:[%s252 + $0xf0] sm:$0xff]
        %v372 = vld [vmem:[%s252 + $0xf8] sm:$0xff]
        %v373 = vld [vmem:[#allocation7] sm:$0x1]
        %v375 = vlaneseq
        %v376 = vshrl.u32 %v375, 7
        %v377 = vsub.s32 0, %v376
        %v378 = vrot.slane %v373, %v377
        %v380 = vmul.f32 %v341, %v378
        %v381 = vmul.f32 %v342, %v378
        %v382 = vmul.f32 %v343, %v378
        %v383 = vmul.f32 %v344, %v378
        %v384 = vmul.f32 %v345, %v378
        %v385 = vmul.f32 %v346, %v378
        %v386 = vmul.f32 %v347, %v378
        %v387 = vmul.f32 %v348, %v378
        %v388 = vmul.f32 %v349, %v378
        %v389 = vmul.f32 %v350, %v378
        %v390 = vmul.f32 %v351, %v378
        %v391 = vmul.f32 %v352, %v378
        %v392 = vmul.f32 %v353, %v378
        %v393 = vmul.f32 %v354, %v378
        %v394 = vmul.f32 %v355, %v378
        %v395 = vmul.f32 %v356, %v378
        %v396 = vmul.f32 %v357, %v378
        %v397 = vmul.f32 %v358, %v378
        %v398 = vmul.f32 %v359, %v378
        %v399 = vmul.f32 %v360, %v378
        %v400 = vmul.f32 %v361, %v378
        %v401 = vmul.f32 %v362, %v378
        %v402 = vmul.f32 %v363, %v378
        %v403 = vmul.f32 %v364, %v378
        %v404 = vmul.f32 %v365, %v378
        %v405 = vmul.f32 %v366, %v378
        %v406 = vmul.f32 %v367, %v378
        %v407 = vmul.f32 %v368, %v378
        %v408 = vmul.f32 %v369, %v378
        %v409 = vmul.f32 %v370, %v378
        %v410 = vmul.f32 %v371, %v378
        %v411 = vmul.f32 %v372, %v378
        %v412 = vld [vmem:[#allocation9] sm:$0x1]
        %v414 = vlaneseq
        %v415 = vshrl.u32 %v414, 7
        %v416 = vsub.s32 0, %v415
        %v417 = vrot.slane %v412, %v416
        %v419 = vadd.f32 %v380, %v417
        %v420 = vadd.f32 %v381, %v417
        %v421 = vadd.f32 %v382, %v417
        %v422 = vadd.f32 %v383, %v417
        %v423 = vadd.f32 %v384, %v417
        %v424 = vadd.f32 %v385, %v417
        %v425 = vadd.f32 %v386, %v417
        %v426 = vadd.f32 %v387, %v417
        %v427 = vadd.f32 %v388, %v417
        %v428 = vadd.f32 %v389, %v417
        %v429 = vadd.f32 %v390, %v417
        %v430 = vadd.f32 %v391, %v417
        %v431 = vadd.f32 %v392, %v417
        %v432 = vadd.f32 %v393, %v417
        %v433 = vadd.f32 %v394, %v417
        %v434 = vadd.f32 %v395, %v417
        %v435 = vadd.f32 %v396, %v417
        %v436 = vadd.f32 %v397, %v417
        %v437 = vadd.f32 %v398, %v417
        %v438 = vadd.f32 %v399, %v417
        %v439 = vadd.f32 %v400, %v417
        %v440 = vadd.f32 %v401, %v417
        %v441 = vadd.f32 %v402, %v417
        %v442 = vadd.f32 %v403, %v417
        %v443 = vadd.f32 %v404, %v417
        %v444 = vadd.f32 %v405, %v417
        %v445 = vadd.f32 %v406, %v417
        %v446 = vadd.f32 %v407, %v417
        %v447 = vadd.f32 %v408, %v417
        %v448 = vadd.f32 %v409, %v417
        %v449 = vadd.f32 %v410, %v417
        %v450 = vadd.f32 %v411, %v417
        %v451 = vmax.f32 %v419, 0.0
        %v452 = vmax.f32 %v420, 0.0
        %v453 = vmax.f32 %v421, 0.0
        %v454 = vmax.f32 %v422, 0.0
        %v455 = vmax.f32 %v423, 0.0
        %v456 = vmax.f32 %v424, 0.0
        %v457 = vmax.f32 %v425, 0.0
        %v458 = vmax.f32 %v426, 0.0
        %v459 = vmax.f32 %v427, 0.0
        %v460 = vmax.f32 %v428, 0.0
        %v461 = vmax.f32 %v429, 0.0
        %v462 = vmax.f32 %v430, 0.0
        %v463 = vmax.f32 %v431, 0.0
        %v464 = vmax.f32 %v432, 0.0
        %v465 = vmax.f32 %v433, 0.0
        %v466 = vmax.f32 %v434, 0.0
        %v467 = vmax.f32 %v435, 0.0
        %v468 = vmax.f32 %v436, 0.0
        %v469 = vmax.f32 %v437, 0.0
        %v470 = vmax.f32 %v438, 0.0
        %v471 = vmax.f32 %v439, 0.0
        %v472 = vmax.f32 %v440, 0.0
        %v473 = vmax.f32 %v441, 0.0
        %v474 = vmax.f32 %v442, 0.0
        %v475 = vmax.f32 %v443, 0.0
        %v476 = vmax.f32 %v444, 0.0
        %v477 = vmax.f32 %v445, 0.0
        %v478 = vmax.f32 %v446, 0.0
        %v479 = vmax.f32 %v447, 0.0
        %v480 = vmax.f32 %v448, 0.0
        %v481 = vmax.f32 %v449, 0.0
        %v482 = vmax.f32 %v450, 0.0
        %s483 = scalar_lea.vmem [#allocation2], 24
        %484 = vst.msk [vmem:[%s483 + $0x1] sm:$0xff] %vm295, %v451
        %485 = vst.msk [vmem:[%s483 + $0x9] sm:$0xff] %vm295, %v452
        %486 = vst.msk [vmem:[%s483 + $0x19] sm:$0xff] %vm295, %v453
        %487 = vst.msk [vmem:[%s483 + $0x21] sm:$0xff] %vm295, %v454
        %488 = vst.msk [vmem:[%s483 + $0x31] sm:$0xff] %vm295, %v455
        %489 = vst.msk [vmem:[%s483 + $0x39] sm:$0xff] %vm295, %v456
        %490 = vst.msk [vmem:[%s483 + $0x49] sm:$0xff] %vm295, %v457
        %491 = vst.msk [vmem:[%s483 + $0x51] sm:$0xff] %vm295, %v458
        %492 = vst.msk [vmem:[%s483 + $0x61] sm:$0xff] %vm295, %v459
        %493 = vst.msk [vmem:[%s483 + $0x69] sm:$0xff] %vm295, %v460
        %494 = vst.msk [vmem:[%s483 + $0x79] sm:$0xff] %vm295, %v461
        %495 = vst.msk [vmem:[%s483 + $0x81] sm:$0xff] %vm295, %v462
        %496 = vst.msk [vmem:[%s483 + $0x91] sm:$0xff] %vm295, %v463
        %497 = vst.msk [vmem:[%s483 + $0x99] sm:$0xff] %vm295, %v464
        %498 = vst.msk [vmem:[%s483 + $0xa9] sm:$0xff] %vm295, %v465
        %499 = vst.msk [vmem:[%s483 + $0xb1] sm:$0xff] %vm295, %v466
        %500 = vst.msk [vmem:[%s483 + $0xc1] sm:$0xff] %vm295, %v467
        %501 = vst.msk [vmem:[%s483 + $0xc9] sm:$0xff] %vm295, %v468
        %502 = vst.msk [vmem:[%s483 + $0xd9] sm:$0xff] %vm295, %v469
        %503 = vst.msk [vmem:[%s483 + $0xe1] sm:$0xff] %vm295, %v470
        %504 = vst.msk [vmem:[%s483 + $0xf1] sm:$0xff] %vm295, %v471
        %505 = vst.msk [vmem:[%s483 + $0xf9] sm:$0xff] %vm295, %v472
        %506 = vst.msk [vmem:[%s483 + $0x109] sm:$0xff] %vm295, %v473
        %507 = vst.msk [vmem:[%s483 + $0x111] sm:$0xff] %vm295, %v474
        %508 = vst.msk [vmem:[%s483 + $0x121] sm:$0xff] %vm295, %v475
        %509 = vst.msk [vmem:[%s483 + $0x129] sm:$0xff] %vm295, %v476
        %510 = vst.msk [vmem:[%s483 + $0x139] sm:$0xff] %vm295, %v477
        %511 = vst.msk [vmem:[%s483 + $0x141] sm:$0xff] %vm295, %v478
        %512 = vst.msk [vmem:[%s483 + $0x151] sm:$0xff] %vm295, %v479
        %513 = vst.msk [vmem:[%s483 + $0x159] sm:$0xff] %vm295, %v480
        %514 = vst.msk [vmem:[%s483 + $0x169] sm:$0xff] %vm295, %v481
        %515 = vst.msk [vmem:[%s483 + $0x171] sm:$0xff] %vm295, %v482
        %v516 = vld [vmem:[#allocation2] sm:$0xff]
        %v517 = vld [vmem:[#allocation2 + $0x8] sm:$0xff]
        %v518 = vld [vmem:[#allocation2 + $0x18] sm:$0xff]
        %v519 = vld [vmem:[#allocation2 + $0x20] sm:$0xff]
        %v520 = vld [vmem:[#allocation2 + $0x30] sm:$0xff]
        %v521 = vld [vmem:[#allocation2 + $0x38] sm:$0xff]
        %v522 = vld [vmem:[#allocation2 + $0x48] sm:$0xff]
        %v523 = vld [vmem:[#allocation2 + $0x50] sm:$0xff]
        %v524 = vld [vmem:[#allocation2 + $0x60] sm:$0xff]
        %v525 = vld [vmem:[#allocation2 + $0x68] sm:$0xff]
        %v526 = vld [vmem:[#allocation2 + $0x78] sm:$0xff]
        %v527 = vld [vmem:[#allocation2 + $0x80] sm:$0xff]
        %v528 = vld [vmem:[#allocation2 + $0x90] sm:$0xff]
        %v529 = vld [vmem:[#allocation2 + $0x98] sm:$0xff]
        %v530 = vld [vmem:[#allocation2 + $0xa8] sm:$0xff]
        %v531 = vld [vmem:[#allocation2 + $0xb0] sm:$0xff]
        %v532 = vld [vmem:[#allocation2 + $0xc0] sm:$0xff]
        %v533 = vld [vmem:[#allocation2 + $0xc8] sm:$0xff]
        %v534 = vld [vmem:[#allocation2 + $0xd8] sm:$0xff]
        %v535 = vld [vmem:[#allocation2 + $0xe0] sm:$0xff]
        %v536 = vld [vmem:[#allocation2 + $0xf0] sm:$0xff]
        %v537 = vld [vmem:[#allocation2 + $0xf8] sm:$0xff]
        %v538 = vld [vmem:[#allocation2 + $0x108] sm:$0xff]
        %v539 = vld [vmem:[#allocation2 + $0x110] sm:$0xff]
        %v540 = vld [vmem:[#allocation2 + $0x120] sm:$0xff]
        %v541 = vld [vmem:[#allocation2 + $0x128] sm:$0xff]
        %v542 = vld [vmem:[#allocation2 + $0x138] sm:$0xff]
        %v543 = vld [vmem:[#allocation2 + $0x140] sm:$0xff]
        %v544 = vld [vmem:[#allocation2 + $0x150] sm:$0xff]
        %v545 = vld [vmem:[#allocation2 + $0x158] sm:$0xff]
        %v546 = vld [vmem:[#allocation2 + $0x168] sm:$0xff]
        %v547 = vld [vmem:[#allocation2 + $0x170] sm:$0xff]
        %v548 = vld [vmem:[#allocation10] sm:$0xf]
        %v550 = vsel %vm295, %v516, 0
        %v553 = vsel %vm295, %v517, 0
        %v556 = vsel %vm295, %v518, 0
        %v559 = vsel %vm295, %v519, 0
        %v562 = vsel %vm295, %v520, 0
        %v565 = vsel %vm295, %v521, 0
        %v568 = vsel %vm295, %v522, 0
        %v571 = vsel %vm295, %v523, 0
        %v574 = vsel %vm295, %v524, 0
        %v577 = vsel %vm295, %v525, 0
        %v580 = vsel %vm295, %v526, 0
        %v583 = vsel %vm295, %v527, 0
        %v586 = vsel %vm295, %v528, 0
        %v589 = vsel %vm295, %v529, 0
        %v592 = vsel %vm295, %v530, 0
        %v595 = vsel %vm295, %v531, 0
        %v598 = vsel %vm295, %v532, 0
        %v601 = vsel %vm295, %v533, 0
        %v604 = vsel %vm295, %v534, 0
        %v607 = vsel %vm295, %v535, 0
        %v610 = vsel %vm295, %v536, 0
        %v613 = vsel %vm295, %v537, 0
        %v616 = vsel %vm295, %v538, 0
        %v619 = vsel %vm295, %v539, 0
        %v622 = vsel %vm295, %v540, 0
        %v625 = vsel %vm295, %v541, 0
        %v628 = vsel %vm295, %v542, 0
        %v631 = vsel %vm295, %v543, 0
        %v634 = vsel %vm295, %v544, 0
        %v637 = vsel %vm295, %v545, 0
        %v640 = vsel %vm295, %v546, 0
        %v643 = vsel %vm295, %v547, 0
        %vm645 = vcmask 1043456
        %v647 = vsel %vm645, %v548, 0
        %649 = vmatprep.subr.mxu0 0.0
        %650 = vmatpush1.msra.mxu0 %v647
        %651 = vmatprep.subr.mxu0 0.0
        %652 = vmatpush1.msra.mxu0 0.0
        %653 = vmatprep.subr.mxu0 0.0
        %654 = vmatpush1.msra.mxu0 0.0
        %655 = vmatprep.subr.mxu0 0.0
        %656 = vmatpush1.msra.mxu0 0.0
        %657 = vmatprep.subr.mxu0 0.0
        %658 = vmatpush1.msra.mxu0 0.0
        %659 = vmatprep.subr.mxu0 0.0
        %660 = vmatpush1.msra.mxu0 0.0
        %661 = vmatprep.subr.mxu0 0.0
        %662 = vmatpush1.msra.mxu0 0.0
        %663 = vmatprep.subr.mxu0 0.0
        %664 = vmatpush1.msra.mxu0 0.0
        %665 = vmatprep.subr.mxu0 0.0
        %666 = vmatpush1.msra.mxu0 0.0
        %667 = vmatprep.subr.mxu0 0.0
        %668 = vmatpush1.msra.mxu0 0.0
        %669 = vmatprep.subr.mxu0 0.0
        %670 = vmatpush1.msra.mxu0 0.0
        %671 = vmatprep.subr.mxu0 0.0
        %672 = vmatpush1.msra.mxu0 0.0
        %673 = vmatprep.subr.mxu0 0.0
        %674 = vmatpush1.msra.mxu0 0.0
        %675 = vmatprep.subr.mxu0 0.0
        %676 = vmatpush1.msra.mxu0 0.0
        %677 = vmatprep.subr.mxu0 0.0
        %678 = vmatpush1.msra.mxu0 0.0
        %679 = vmatprep.subr.mxu0 0.0
        %680 = vmatpush1.msra.mxu0 0.0
        %681 = vmatprep.subr.mxu0 0.0
        %682 = vmatpush1.msra.mxu0 0.0
        %683 = vmatprep.subr.mxu0 0.0
        %684 = vmatpush1.msra.mxu0 0.0
        %685 = vmatprep.subr.mxu0 0.0
        %686 = vmatpush1.msra.mxu0 0.0
        %687 = vmatprep.subr.mxu0 0.0
        %688 = vmatpush1.msra.mxu0 0.0
        %689 = vmatprep.subr.mxu0 0.0
        %690 = vmatpush1.msra.mxu0 0.0
        %691 = vmatprep.subr.mxu0 0.0
        %692 = vmatpush1.msra.mxu0 0.0
        %693 = vmatprep.subr.mxu0 0.0
        %694 = vmatpush1.msra.mxu0 0.0
        %695 = vmatprep.subr.mxu0 0.0
        %696 = vmatpush1.msra.mxu0 0.0
        %697 = vmatprep.subr.mxu0 0.0
        %698 = vmatpush1.msra.mxu0 0.0
        %699 = vmatprep.subr.mxu0 0.0
        %700 = vmatpush1.msra.mxu0 0.0
        %701 = vmatprep.subr.mxu0 0.0
        %702 = vmatpush1.msra.mxu0 0.0
        %703 = vmatprep.subr.mxu0 0.0
        %704 = vmatpush1.msra.mxu0 0.0
        %705 = vmatprep.subr.mxu0 0.0
        %706 = vmatpush1.msra.mxu0 0.0
        %707 = vmatprep.subr.mxu0 0.0
        %708 = vmatpush1.msra.mxu0 0.0
        %709 = vmatprep.subr.mxu0 0.0
        %710 = vmatpush1.msra.mxu0 0.0
        %711 = vmatprep.subr.mxu0 0.0
        %712 = vmatpush1.msra.mxu0 0.0
        %713 = vmatprep.mubr.f32.mxu0 0.0
        %714 = vmatmul.mubr.f32.gmra.mrb[0].mxu0 %v550
        %v715 = vpop.f32.mrb[0].mxu0
        %v716 = vadd.f32 0.0, %v715
        %v717 = vpop.f32.mrb[0].mxu0
        %718 = vmatprep.mubr.f32.mxu0 0.0
        %719 = vmatmul.mubr.f32.gmra.mrb[0].mxu0 %v553
        %v720 = vpop.f32.mrb[0].mxu0
        %v721 = vadd.f32 0.0, %v720
        %v722 = vpop.f32.mrb[0].mxu0
        %723 = vmatprep.mubr.f32.mxu0 0.0
        %724 = vmatmul.mubr.f32.gmra.mrb[0].mxu0 %v556
        %v725 = vpop.f32.mrb[0].mxu0
        %v726 = vadd.f32 0.0, %v725
        %v727 = vpop.f32.mrb[0].mxu0
        %728 = vmatprep.mubr.f32.mxu0 0.0
        %729 = vmatmul.mubr.f32.gmra.mrb[0].mxu0 %v559
        %v730 = vpop.f32.mrb[0].mxu0
        %v731 = vadd.f32 0.0, %v730
        %v732 = vpop.f32.mrb[0].mxu0
        %733 = vmatprep.mubr.f32.mxu0 0.0
        %734 = vmatmul.mubr.f32.gmra.mrb[0].mxu0 %v562
        %v735 = vpop.f32.mrb[0].mxu0
        %v736 = vadd.f32 0.0, %v735
        %v737 = vpop.f32.mrb[0].mxu0
        %738 = vmatprep.mubr.f32.mxu0 0.0
        %739 = vmatmul.mubr.f32.gmra.mrb[0].mxu0 %v565
        %v740 = vpop.f32.mrb[0].mxu0
        %v741 = vadd.f32 0.0, %v740
        %v742 = vpop.f32.mrb[0].mxu0
        %743 = vmatprep.mubr.f32.mxu0 0.0
        %744 = vmatmul.mubr.f32.gmra.mrb[0].mxu0 %v568
        %v745 = vpop.f32.mrb[0].mxu0
        %v746 = vadd.f32 0.0, %v745
        %v747 = vpop.f32.mrb[0].mxu0
        %748 = vmatprep.mubr.f32.mxu0 0.0
        %749 = vmatmul.mubr.f32.gmra.mrb[0].mxu0 %v571
        %v750 = vpop.f32.mrb[0].mxu0
        %v751 = vadd.f32 0.0, %v750
        %v752 = vpop.f32.mrb[0].mxu0
        %753 = vmatprep.mubr.f32.mxu0 0.0
        %754 = vmatmul.mubr.f32.gmra.mrb[0].mxu0 %v574
        %v755 = vpop.f32.mrb[0].mxu0
        %v756 = vadd.f32 0.0, %v755
        %v757 = vpop.f32.mrb[0].mxu0
        %758 = vmatprep.mubr.f32.mxu0 0.0
        %759 = vmatmul.mubr.f32.gmra.mrb[0].mxu0 %v577
        %v760 = vpop.f32.mrb[0].mxu0
        %v761 = vadd.f32 0.0, %v760
        %v762 = vpop.f32.mrb[0].mxu0
        %763 = vmatprep.mubr.f32.mxu0 0.0
        %764 = vmatmul.mubr.f32.gmra.mrb[0].mxu0 %v580
        %v765 = vpop.f32.mrb[0].mxu0
        %v766 = vadd.f32 0.0, %v765
        %v767 = vpop.f32.mrb[0].mxu0
        %768 = vmatprep.mubr.f32.mxu0 0.0
        %769 = vmatmul.mubr.f32.gmra.mrb[0].mxu0 %v583
        %v770 = vpop.f32.mrb[0].mxu0
        %v771 = vadd.f32 0.0, %v770
        %v772 = vpop.f32.mrb[0].mxu0
        %773 = vmatprep.mubr.f32.mxu0 0.0
        %774 = vmatmul.mubr.f32.gmra.mrb[0].mxu0 %v586
        %v775 = vpop.f32.mrb[0].mxu0
        %v776 = vadd.f32 0.0, %v775
        %v777 = vpop.f32.mrb[0].mxu0
        %778 = vmatprep.mubr.f32.mxu0 0.0
        %779 = vmatmul.mubr.f32.gmra.mrb[0].mxu0 %v589
        %v780 = vpop.f32.mrb[0].mxu0
        %v781 = vadd.f32 0.0, %v780
        %v782 = vpop.f32.mrb[0].mxu0
        %783 = vmatprep.mubr.f32.mxu0 0.0
        %784 = vmatmul.mubr.f32.gmra.mrb[0].mxu0 %v592
        %v785 = vpop.f32.mrb[0].mxu0
        %v786 = vadd.f32 0.0, %v785
        %v787 = vpop.f32.mrb[0].mxu0
        %788 = vmatprep.mubr.f32.mxu0 0.0
        %789 = vmatmul.mubr.f32.gmra.mrb[0].mxu0 %v595
        %v790 = vpop.f32.mrb[0].mxu0
        %v791 = vadd.f32 0.0, %v790
        %v792 = vpop.f32.mrb[0].mxu0
        %793 = vmatprep.mubr.f32.mxu0 0.0
        %794 = vmatmul.mubr.f32.gmra.mrb[0].mxu0 %v598
        %v795 = vpop.f32.mrb[0].mxu0
        %v796 = vadd.f32 0.0, %v795
        %v797 = vpop.f32.mrb[0].mxu0
        %798 = vmatprep.mubr.f32.mxu0 0.0
        %799 = vmatmul.mubr.f32.gmra.mrb[0].mxu0 %v601
        %v800 = vpop.f32.mrb[0].mxu0
        %v801 = vadd.f32 0.0, %v800
        %v802 = vpop.f32.mrb[0].mxu0
        %803 = vmatprep.mubr.f32.mxu0 0.0
        %804 = vmatmul.mubr.f32.gmra.mrb[0].mxu0 %v604
        %v805 = vpop.f32.mrb[0].mxu0
        %v806 = vadd.f32 0.0, %v805
        %v807 = vpop.f32.mrb[0].mxu0
        %808 = vmatprep.mubr.f32.mxu0 0.0
        %809 = vmatmul.mubr.f32.gmra.mrb[0].mxu0 %v607
        %v810 = vpop.f32.mrb[0].mxu0
        %v811 = vadd.f32 0.0, %v810
        %v812 = vpop.f32.mrb[0].mxu0
        %813 = vmatprep.mubr.f32.mxu0 0.0
        %814 = vmatmul.mubr.f32.gmra.mrb[0].mxu0 %v610
        %v815 = vpop.f32.mrb[0].mxu0
        %v816 = vadd.f32 0.0, %v815
        %v817 = vpop.f32.mrb[0].mxu0
        %818 = vmatprep.mubr.f32.mxu0 0.0
        %819 = vmatmul.mubr.f32.gmra.mrb[0].mxu0 %v613
        %v820 = vpop.f32.mrb[0].mxu0
        %v821 = vadd.f32 0.0, %v820
        %v822 = vpop.f32.mrb[0].mxu0
        %823 = vmatprep.mubr.f32.mxu0 0.0
        %824 = vmatmul.mubr.f32.gmra.mrb[0].mxu0 %v616
        %v825 = vpop.f32.mrb[0].mxu0
        %v826 = vadd.f32 0.0, %v825
        %v827 = vpop.f32.mrb[0].mxu0
        %828 = vmatprep.mubr.f32.mxu0 0.0
        %829 = vmatmul.mubr.f32.gmra.mrb[0].mxu0 %v619
        %v830 = vpop.f32.mrb[0].mxu0
        %v831 = vadd.f32 0.0, %v830
        %v832 = vpop.f32.mrb[0].mxu0
        %833 = vmatprep.mubr.f32.mxu0 0.0
        %834 = vmatmul.mubr.f32.gmra.mrb[0].mxu0 %v622
        %v835 = vpop.f32.mrb[0].mxu0
        %v836 = vadd.f32 0.0, %v835
        %v837 = vpop.f32.mrb[0].mxu0
        %838 = vmatprep.mubr.f32.mxu0 0.0
        %839 = vmatmul.mubr.f32.gmra.mrb[0].mxu0 %v625
        %v840 = vpop.f32.mrb[0].mxu0
        %v841 = vadd.f32 0.0, %v840
        %v842 = vpop.f32.mrb[0].mxu0
        %843 = vmatprep.mubr.f32.mxu0 0.0
        %844 = vmatmul.mubr.f32.gmra.mrb[0].mxu0 %v628
        %v845 = vpop.f32.mrb[0].mxu0
        %v846 = vadd.f32 0.0, %v845
        %v847 = vpop.f32.mrb[0].mxu0
        %848 = vmatprep.mubr.f32.mxu0 0.0
        %849 = vmatmul.mubr.f32.gmra.mrb[0].mxu0 %v631
        %v850 = vpop.f32.mrb[0].mxu0
        %v851 = vadd.f32 0.0, %v850
        %v852 = vpop.f32.mrb[0].mxu0
        %853 = vmatprep.mubr.f32.mxu0 0.0
        %854 = vmatmul.mubr.f32.gmra.mrb[0].mxu0 %v634
        %v855 = vpop.f32.mrb[0].mxu0
        %v856 = vadd.f32 0.0, %v855
        %v857 = vpop.f32.mrb[0].mxu0
        %858 = vmatprep.mubr.f32.mxu0 0.0
        %859 = vmatmul.mubr.f32.gmra.mrb[0].mxu0 %v637
        %v860 = vpop.f32.mrb[0].mxu0
        %v861 = vadd.f32 0.0, %v860
        %v862 = vpop.f32.mrb[0].mxu0
        %863 = vmatprep.mubr.f32.mxu0 0.0
        %864 = vmatmul.mubr.f32.gmra.mrb[0].mxu0 %v640
        %v865 = vpop.f32.mrb[0].mxu0
        %v866 = vadd.f32 0.0, %v865
        %v867 = vpop.f32.mrb[0].mxu0
        %868 = vmatprep.mubr.f32.mxu0 0.0
        %869 = vmatmul.mubr.f32.gmra.mrb[0].mxu0 %v643
        %v870 = vpop.f32.mrb[0].mxu0
        %v871 = vadd.f32 0.0, %v870
        %v872 = vpop.f32.mrb[0].mxu0
        %873 = vdwg.mxu0
        %vm874 = vcmask 64512
        %875 = vst.msk [vmem:[#allocation3] sm:$0xff] %vm874, %v716
        %876 = vst.msk [vmem:[#allocation3 + $0x8] sm:$0xff] %vm874, %v721
        %877 = vst.msk [vmem:[#allocation3 + $0x10] sm:$0xff] %vm874, %v726
        %878 = vst.msk [vmem:[#allocation3 + $0x18] sm:$0xff] %vm874, %v731
        %879 = vst.msk [vmem:[#allocation3 + $0x20] sm:$0xff] %vm874, %v736
        %880 = vst.msk [vmem:[#allocation3 + $0x28] sm:$0xff] %vm874, %v741
        %881 = vst.msk [vmem:[#allocation3 + $0x30] sm:$0xff] %vm874, %v746
        %882 = vst.msk [vmem:[#allocation3 + $0x38] sm:$0xff] %vm874, %v751
        %883 = vst.msk [vmem:[#allocation3 + $0x40] sm:$0xff] %vm874, %v756
        %884 = vst.msk [vmem:[#allocation3 + $0x48] sm:$0xff] %vm874, %v761
        %885 = vst.msk [vmem:[#allocation3 + $0x50] sm:$0xff] %vm874, %v766
        %886 = vst.msk [vmem:[#allocation3 + $0x58] sm:$0xff] %vm874, %v771
        %887 = vst.msk [vmem:[#allocation3 + $0x60] sm:$0xff] %vm874, %v776
        %888 = vst.msk [vmem:[#allocation3 + $0x68] sm:$0xff] %vm874, %v781
        %889 = vst.msk [vmem:[#allocation3 + $0x70] sm:$0xff] %vm874, %v786
        %890 = vst.msk [vmem:[#allocation3 + $0x78] sm:$0xff] %vm874, %v791
        %891 = vst.msk [vmem:[#allocation3 + $0x80] sm:$0xff] %vm874, %v796
        %892 = vst.msk [vmem:[#allocation3 + $0x88] sm:$0xff] %vm874, %v801
        %893 = vst.msk [vmem:[#allocation3 + $0x90] sm:$0xff] %vm874, %v806
        %894 = vst.msk [vmem:[#allocation3 + $0x98] sm:$0xff] %vm874, %v811
        %895 = vst.msk [vmem:[#allocation3 + $0xa0] sm:$0xff] %vm874, %v816
        %896 = vst.msk [vmem:[#allocation3 + $0xa8] sm:$0xff] %vm874, %v821
        %897 = vst.msk [vmem:[#allocation3 + $0xb0] sm:$0xff] %vm874, %v826
        %898 = vst.msk [vmem:[#allocation3 + $0xb8] sm:$0xff] %vm874, %v831
        %899 = vst.msk [vmem:[#allocation3 + $0xc0] sm:$0xff] %vm874, %v836
        %900 = vst.msk [vmem:[#allocation3 + $0xc8] sm:$0xff] %vm874, %v841
        %901 = vst.msk [vmem:[#allocation3 + $0xd0] sm:$0xff] %vm874, %v846
        %902 = vst.msk [vmem:[#allocation3 + $0xd8] sm:$0xff] %vm874, %v851
        %903 = vst.msk [vmem:[#allocation3 + $0xe0] sm:$0xff] %vm874, %v856
        %904 = vst.msk [vmem:[#allocation3 + $0xe8] sm:$0xff] %vm874, %v861
        %905 = vst.msk [vmem:[#allocation3 + $0xf0] sm:$0xff] %vm874, %v866
        %906 = vst.msk [vmem:[#allocation3 + $0xf8] sm:$0xff] %vm874, %v871
        %v907 = vld [vmem:[#allocation2 + $0x1] sm:$0xff]
        %v908 = vld [vmem:[#allocation2 + $0x9] sm:$0xff]
        %v909 = vld [vmem:[#allocation2 + $0x19] sm:$0xff]
        %v910 = vld [vmem:[#allocation2 + $0x21] sm:$0xff]
        %v911 = vld [vmem:[#allocation2 + $0x31] sm:$0xff]
        %v912 = vld [vmem:[#allocation2 + $0x39] sm:$0xff]
        %v913 = vld [vmem:[#allocation2 + $0x49] sm:$0xff]
        %v914 = vld [vmem:[#allocation2 + $0x51] sm:$0xff]
        %v915 = vld [vmem:[#allocation2 + $0x61] sm:$0xff]
        %v916 = vld [vmem:[#allocation2 + $0x69] sm:$0xff]
        %v917 = vld [vmem:[#allocation2 + $0x79] sm:$0xff]
        %v918 = vld [vmem:[#allocation2 + $0x81] sm:$0xff]
        %v919 = vld [vmem:[#allocation2 + $0x91] sm:$0xff]
        %v920 = vld [vmem:[#allocation2 + $0x99] sm:$0xff]
        %v921 = vld [vmem:[#allocation2 + $0xa9] sm:$0xff]
        %v922 = vld [vmem:[#allocation2 + $0xb1] sm:$0xff]
        %v923 = vld [vmem:[#allocation2 + $0xc1] sm:$0xff]
        %v924 = vld [vmem:[#allocation2 + $0xc9] sm:$0xff]
        %v925 = vld [vmem:[#allocation2 + $0xd9] sm:$0xff]
        %v926 = vld [vmem:[#allocation2 + $0xe1] sm:$0xff]
        %v927 = vld [vmem:[#allocation2 + $0xf1] sm:$0xff]
        %v928 = vld [vmem:[#allocation2 + $0xf9] sm:$0xff]
        %v929 = vld [vmem:[#allocation2 + $0x109] sm:$0xff]
        %v930 = vld [vmem:[#allocation2 + $0x111] sm:$0xff]
        %v931 = vld [vmem:[#allocation2 + $0x121] sm:$0xff]
        %v932 = vld [vmem:[#allocation2 + $0x129] sm:$0xff]
        %v933 = vld [vmem:[#allocation2 + $0x139] sm:$0xff]
        %v934 = vld [vmem:[#allocation2 + $0x141] sm:$0xff]
        %v935 = vld [vmem:[#allocation2 + $0x151] sm:$0xff]
        %v936 = vld [vmem:[#allocation2 + $0x159] sm:$0xff]
        %v937 = vld [vmem:[#allocation2 + $0x169] sm:$0xff]
        %v938 = vld [vmem:[#allocation2 + $0x171] sm:$0xff]
        %s939 = scalar_lea.vmem [#allocation10], 4
        %v940 = vld [vmem:[%s939] sm:$0xf]
        %v942 = vsel %vm295, %v907, 0
        %v945 = vsel %vm295, %v908, 0
        %v948 = vsel %vm295, %v909, 0
        %v951 = vsel %vm295, %v910, 0
        %v954 = vsel %vm295, %v911, 0
        %v957 = vsel %vm295, %v912, 0
        %v960 = vsel %vm295, %v913, 0
        %v963 = vsel %vm295, %v914, 0
        %v966 = vsel %vm295, %v915, 0
        %v969 = vsel %vm295, %v916, 0
        %v972 = vsel %vm295, %v917, 0
        %v975 = vsel %vm295, %v918, 0
        %v978 = vsel %vm295, %v919, 0
        %v981 = vsel %vm295, %v920, 0
        %v984 = vsel %vm295, %v921, 0
        %v987 = vsel %vm295, %v922, 0
        %v990 = vsel %vm295, %v923, 0
        %v993 = vsel %vm295, %v924, 0
        %v996 = vsel %vm295, %v925, 0
        %v999 = vsel %vm295, %v926, 0
        %v1002 = vsel %vm295, %v927, 0
        %v1005 = vsel %vm295, %v928, 0
        %v1008 = vsel %vm295, %v929, 0
        %v1011 = vsel %vm295, %v930, 0
        %v1014 = vsel %vm295, %v931, 0
        %v1017 = vsel %vm295, %v932, 0
        %v1020 = vsel %vm295, %v933, 0
        %v1023 = vsel %vm295, %v934, 0
        %v1026 = vsel %vm295, %v935, 0
        %v1029 = vsel %vm295, %v936, 0
        %v1032 = vsel %vm295, %v937, 0
        %v1035 = vsel %vm295, %v938, 0
        %v1038 = vsel %vm645, %v940, 0
        %1040 = vmatprep.subr.mxu0 0.0
        %1041 = vmatpush1.msra.mxu0 %v1038
        %1042 = vmatprep.subr.mxu0 0.0
        %1043 = vmatpush1.msra.mxu0 0.0
        %1044 = vmatprep.subr.mxu0 0.0
        %1045 = vmatpush1.msra.mxu0 0.0
        %1046 = vmatprep.subr.mxu0 0.0
        %1047 = vmatpush1.msra.mxu0 0.0
        %1048 = vmatprep.subr.mxu0 0.0
        %1049 = vmatpush1.msra.mxu0 0.0
        %1050 = vmatprep.subr.mxu0 0.0
        %1051 = vmatpush1.msra.mxu0 0.0
        %1052 = vmatprep.subr.mxu0 0.0
        %1053 = vmatpush1.msra.mxu0 0.0
        %1054 = vmatprep.subr.mxu0 0.0
        %1055 = vmatpush1.msra.mxu0 0.0
        %1056 = vmatprep.subr.mxu0 0.0
        %1057 = vmatpush1.msra.mxu0 0.0
        %1058 = vmatprep.subr.mxu0 0.0
        %1059 = vmatpush1.msra.mxu0 0.0
        %1060 = vmatprep.subr.mxu0 0.0
        %1061 = vmatpush1.msra.mxu0 0.0
        %1062 = vmatprep.subr.mxu0 0.0
        %1063 = vmatpush1.msra.mxu0 0.0
        %1064 = vmatprep.subr.mxu0 0.0
        %1065 = vmatpush1.msra.mxu0 0.0
        %1066 = vmatprep.subr.mxu0 0.0
        %1067 = vmatpush1.msra.mxu0 0.0
        %1068 = vmatprep.subr.mxu0 0.0
        %1069 = vmatpush1.msra.mxu0 0.0
        %1070 = vmatprep.subr.mxu0 0.0
        %1071 = vmatpush1.msra.mxu0 0.0
        %1072 = vmatprep.subr.mxu0 0.0
        %1073 = vmatpush1.msra.mxu0 0.0
        %1074 = vmatprep.subr.mxu0 0.0
        %1075 = vmatpush1.msra.mxu0 0.0
        %1076 = vmatprep.subr.mxu0 0.0
        %1077 = vmatpush1.msra.mxu0 0.0
        %1078 = vmatprep.subr.mxu0 0.0
        %1079 = vmatpush1.msra.mxu0 0.0
        %1080 = vmatprep.subr.mxu0 0.0
        %1081 = vmatpush1.msra.mxu0 0.0
        %1082 = vmatprep.subr.mxu0 0.0
        %1083 = vmatpush1.msra.mxu0 0.0
        %1084 = vmatprep.subr.mxu0 0.0
        %1085 = vmatpush1.msra.mxu0 0.0
        %1086 = vmatprep.subr.mxu0 0.0
        %1087 = vmatpush1.msra.mxu0 0.0
        %1088 = vmatprep.subr.mxu0 0.0
        %1089 = vmatpush1.msra.mxu0 0.0
        %1090 = vmatprep.subr.mxu0 0.0
        %1091 = vmatpush1.msra.mxu0 0.0
        %1092 = vmatprep.subr.mxu0 0.0
        %1093 = vmatpush1.msra.mxu0 0.0
        %1094 = vmatprep.subr.mxu0 0.0
        %1095 = vmatpush1.msra.mxu0 0.0
        %1096 = vmatprep.subr.mxu0 0.0
        %1097 = vmatpush1.msra.mxu0 0.0
        %1098 = vmatprep.subr.mxu0 0.0
        %1099 = vmatpush1.msra.mxu0 0.0
        %1100 = vmatprep.subr.mxu0 0.0
        %1101 = vmatpush1.msra.mxu0 0.0
        %1102 = vmatprep.subr.mxu0 0.0
        %1103 = vmatpush1.msra.mxu0 0.0
        %1104 = vmatprep.mubr.f32.mxu0 0.0
        %1105 = vmatmul.mubr.f32.gmra.mrb[0].mxu0 %v942
        %v1106 = vpop.f32.mrb[0].mxu0
        %v1107 = vadd.f32 0.0, %v1106
        %v1108 = vpop.f32.mrb[0].mxu0
        %1109 = vmatprep.mubr.f32.mxu0 0.0
        %1110 = vmatmul.mubr.f32.gmra.mrb[0].mxu0 %v945
        %v1111 = vpop.f32.mrb[0].mxu0
        %v1112 = vadd.f32 0.0, %v1111
        %v1113 = vpop.f32.mrb[0].mxu0
        %1114 = vmatprep.mubr.f32.mxu0 0.0
        %1115 = vmatmul.mubr.f32.gmra.mrb[0].mxu0 %v948
        %v1116 = vpop.f32.mrb[0].mxu0
        %v1117 = vadd.f32 0.0, %v1116
        %v1118 = vpop.f32.mrb[0].mxu0
        %1119 = vmatprep.mubr.f32.mxu0 0.0
        %1120 = vmatmul.mubr.f32.gmra.mrb[0].mxu0 %v951
        %v1121 = vpop.f32.mrb[0].mxu0
        %v1122 = vadd.f32 0.0, %v1121
        %v1123 = vpop.f32.mrb[0].mxu0
        %1124 = vmatprep.mubr.f32.mxu0 0.0
        %1125 = vmatmul.mubr.f32.gmra.mrb[0].mxu0 %v954
        %v1126 = vpop.f32.mrb[0].mxu0
        %v1127 = vadd.f32 0.0, %v1126
        %v1128 = vpop.f32.mrb[0].mxu0
        %1129 = vmatprep.mubr.f32.mxu0 0.0
        %1130 = vmatmul.mubr.f32.gmra.mrb[0].mxu0 %v957
        %v1131 = vpop.f32.mrb[0].mxu0
        %v1132 = vadd.f32 0.0, %v1131
        %v1133 = vpop.f32.mrb[0].mxu0
        %1134 = vmatprep.mubr.f32.mxu0 0.0
        %1135 = vmatmul.mubr.f32.gmra.mrb[0].mxu0 %v960
        %v1136 = vpop.f32.mrb[0].mxu0
        %v1137 = vadd.f32 0.0, %v1136
        %v1138 = vpop.f32.mrb[0].mxu0
        %1139 = vmatprep.mubr.f32.mxu0 0.0
        %1140 = vmatmul.mubr.f32.gmra.mrb[0].mxu0 %v963
        %v1141 = vpop.f32.mrb[0].mxu0
        %v1142 = vadd.f32 0.0, %v1141
        %v1143 = vpop.f32.mrb[0].mxu0
        %1144 = vmatprep.mubr.f32.mxu0 0.0
        %1145 = vmatmul.mubr.f32.gmra.mrb[0].mxu0 %v966
        %v1146 = vpop.f32.mrb[0].mxu0
        %v1147 = vadd.f32 0.0, %v1146
        %v1148 = vpop.f32.mrb[0].mxu0
        %1149 = vmatprep.mubr.f32.mxu0 0.0
        %1150 = vmatmul.mubr.f32.gmra.mrb[0].mxu0 %v969
        %v1151 = vpop.f32.mrb[0].mxu0
        %v1152 = vadd.f32 0.0, %v1151
        %v1153 = vpop.f32.mrb[0].mxu0
        %1154 = vmatprep.mubr.f32.mxu0 0.0
        %1155 = vmatmul.mubr.f32.gmra.mrb[0].mxu0 %v972
        %v1156 = vpop.f32.mrb[0].mxu0
        %v1157 = vadd.f32 0.0, %v1156
        %v1158 = vpop.f32.mrb[0].mxu0
        %1159 = vmatprep.mubr.f32.mxu0 0.0
        %1160 = vmatmul.mubr.f32.gmra.mrb[0].mxu0 %v975
        %v1161 = vpop.f32.mrb[0].mxu0
        %v1162 = vadd.f32 0.0, %v1161
        %v1163 = vpop.f32.mrb[0].mxu0
        %1164 = vmatprep.mubr.f32.mxu0 0.0
        %1165 = vmatmul.mubr.f32.gmra.mrb[0].mxu0 %v978
        %v1166 = vpop.f32.mrb[0].mxu0
        %v1167 = vadd.f32 0.0, %v1166
        %v1168 = vpop.f32.mrb[0].mxu0
        %1169 = vmatprep.mubr.f32.mxu0 0.0
        %1170 = vmatmul.mubr.f32.gmra.mrb[0].mxu0 %v981
        %v1171 = vpop.f32.mrb[0].mxu0
        %v1172 = vadd.f32 0.0, %v1171
        %v1173 = vpop.f32.mrb[0].mxu0
        %1174 = vmatprep.mubr.f32.mxu0 0.0
        %1175 = vmatmul.mubr.f32.gmra.mrb[0].mxu0 %v984
        %v1176 = vpop.f32.mrb[0].mxu0
        %v1177 = vadd.f32 0.0, %v1176
        %v1178 = vpop.f32.mrb[0].mxu0
        %1179 = vmatprep.mubr.f32.mxu0 0.0
        %1180 = vmatmul.mubr.f32.gmra.mrb[0].mxu0 %v987
        %v1181 = vpop.f32.mrb[0].mxu0
        %v1182 = vadd.f32 0.0, %v1181
        %v1183 = vpop.f32.mrb[0].mxu0
        %1184 = vmatprep.mubr.f32.mxu0 0.0
        %1185 = vmatmul.mubr.f32.gmra.mrb[0].mxu0 %v990
        %v1186 = vpop.f32.mrb[0].mxu0
        %v1187 = vadd.f32 0.0, %v1186
        %v1188 = vpop.f32.mrb[0].mxu0
        %1189 = vmatprep.mubr.f32.mxu0 0.0
        %1190 = vmatmul.mubr.f32.gmra.mrb[0].mxu0 %v993
        %v1191 = vpop.f32.mrb[0].mxu0
        %v1192 = vadd.f32 0.0, %v1191
        %v1193 = vpop.f32.mrb[0].mxu0
        %1194 = vmatprep.mubr.f32.mxu0 0.0
        %1195 = vmatmul.mubr.f32.gmra.mrb[0].mxu0 %v996
        %v1196 = vpop.f32.mrb[0].mxu0
        %v1197 = vadd.f32 0.0, %v1196
        %v1198 = vpop.f32.mrb[0].mxu0
        %1199 = vmatprep.mubr.f32.mxu0 0.0
        %1200 = vmatmul.mubr.f32.gmra.mrb[0].mxu0 %v999
        %v1201 = vpop.f32.mrb[0].mxu0
        %v1202 = vadd.f32 0.0, %v1201
        %v1203 = vpop.f32.mrb[0].mxu0
        %1204 = vmatprep.mubr.f32.mxu0 0.0
        %1205 = vmatmul.mubr.f32.gmra.mrb[0].mxu0 %v1002
        %v1206 = vpop.f32.mrb[0].mxu0
        %v1207 = vadd.f32 0.0, %v1206
        %v1208 = vpop.f32.mrb[0].mxu0
        %1209 = vmatprep.mubr.f32.mxu0 0.0
        %1210 = vmatmul.mubr.f32.gmra.mrb[0].mxu0 %v1005
        %v1211 = vpop.f32.mrb[0].mxu0
        %v1212 = vadd.f32 0.0, %v1211
        %v1213 = vpop.f32.mrb[0].mxu0
        %1214 = vmatprep.mubr.f32.mxu0 0.0
        %1215 = vmatmul.mubr.f32.gmra.mrb[0].mxu0 %v1008
        %v1216 = vpop.f32.mrb[0].mxu0
        %v1217 = vadd.f32 0.0, %v1216
        %v1218 = vpop.f32.mrb[0].mxu0
        %1219 = vmatprep.mubr.f32.mxu0 0.0
        %1220 = vmatmul.mubr.f32.gmra.mrb[0].mxu0 %v1011
        %v1221 = vpop.f32.mrb[0].mxu0
        %v1222 = vadd.f32 0.0, %v1221
        %v1223 = vpop.f32.mrb[0].mxu0
        %1224 = vmatprep.mubr.f32.mxu0 0.0
        %1225 = vmatmul.mubr.f32.gmra.mrb[0].mxu0 %v1014
        %v1226 = vpop.f32.mrb[0].mxu0
        %v1227 = vadd.f32 0.0, %v1226
        %v1228 = vpop.f32.mrb[0].mxu0
        %1229 = vmatprep.mubr.f32.mxu0 0.0
        %1230 = vmatmul.mubr.f32.gmra.mrb[0].mxu0 %v1017
        %v1231 = vpop.f32.mrb[0].mxu0
        %v1232 = vadd.f32 0.0, %v1231
        %v1233 = vpop.f32.mrb[0].mxu0
        %1234 = vmatprep.mubr.f32.mxu0 0.0
        %1235 = vmatmul.mubr.f32.gmra.mrb[0].mxu0 %v1020
        %v1236 = vpop.f32.mrb[0].mxu0
        %v1237 = vadd.f32 0.0, %v1236
        %v1238 = vpop.f32.mrb[0].mxu0
        %1239 = vmatprep.mubr.f32.mxu0 0.0
        %1240 = vmatmul.mubr.f32.gmra.mrb[0].mxu0 %v1023
        %v1241 = vpop.f32.mrb[0].mxu0
        %v1242 = vadd.f32 0.0, %v1241
        %v1243 = vpop.f32.mrb[0].mxu0
        %1244 = vmatprep.mubr.f32.mxu0 0.0
        %1245 = vmatmul.mubr.f32.gmra.mrb[0].mxu0 %v1026
        %v1246 = vpop.f32.mrb[0].mxu0
        %v1247 = vadd.f32 0.0, %v1246
        %v1248 = vpop.f32.mrb[0].mxu0
        %1249 = vmatprep.mubr.f32.mxu0 0.0
        %1250 = vmatmul.mubr.f32.gmra.mrb[0].mxu0 %v1029
        %v1251 = vpop.f32.mrb[0].mxu0
        %v1252 = vadd.f32 0.0, %v1251
        %v1253 = vpop.f32.mrb[0].mxu0
        %1254 = vmatprep.mubr.f32.mxu0 0.0
        %1255 = vmatmul.mubr.f32.gmra.mrb[0].mxu0 %v1032
        %v1256 = vpop.f32.mrb[0].mxu0
        %v1257 = vadd.f32 0.0, %v1256
        %v1258 = vpop.f32.mrb[0].mxu0
        %1259 = vmatprep.mubr.f32.mxu0 0.0
        %1260 = vmatmul.mubr.f32.gmra.mrb[0].mxu0 %v1035
        %v1261 = vpop.f32.mrb[0].mxu0
        %v1262 = vadd.f32 0.0, %v1261
        %v1263 = vpop.f32.mrb[0].mxu0
        %1264 = vdwg.mxu0
        %v1265 = vld [vmem:[#allocation3] sm:$0xff]
        %v1266 = vld [vmem:[#allocation3 + $0x8] sm:$0xff]
        %v1267 = vld [vmem:[#allocation3 + $0x10] sm:$0xff]
        %v1268 = vld [vmem:[#allocation3 + $0x18] sm:$0xff]
        %v1269 = vld [vmem:[#allocation3 + $0x20] sm:$0xff]
        %v1270 = vld [vmem:[#allocation3 + $0x28] sm:$0xff]
        %v1271 = vld [vmem:[#allocation3 + $0x30] sm:$0xff]
        %v1272 = vld [vmem:[#allocation3 + $0x38] sm:$0xff]
        %v1273 = vld [vmem:[#allocation3 + $0x40] sm:$0xff]
        %v1274 = vld [vmem:[#allocation3 + $0x48] sm:$0xff]
        %v1275 = vld [vmem:[#allocation3 + $0x50] sm:$0xff]
        %v1276 = vld [vmem:[#allocation3 + $0x58] sm:$0xff]
        %v1277 = vld [vmem:[#allocation3 + $0x60] sm:$0xff]
        %v1278 = vld [vmem:[#allocation3 + $0x68] sm:$0xff]
        %v1279 = vld [vmem:[#allocation3 + $0x70] sm:$0xff]
        %v1280 = vld [vmem:[#allocation3 + $0x78] sm:$0xff]
        %v1281 = vld [vmem:[#allocation3 + $0x80] sm:$0xff]
        %v1282 = vld [vmem:[#allocation3 + $0x88] sm:$0xff]
        %v1283 = vld [vmem:[#allocation3 + $0x90] sm:$0xff]
        %v1284 = vld [vmem:[#allocation3 + $0x98] sm:$0xff]
        %v1285 = vld [vmem:[#allocation3 + $0xa0] sm:$0xff]
        %v1286 = vld [vmem:[#allocation3 + $0xa8] sm:$0xff]
        %v1287 = vld [vmem:[#allocation3 + $0xb0] sm:$0xff]
        %v1288 = vld [vmem:[#allocation3 + $0xb8] sm:$0xff]
        %v1289 = vld [vmem:[#allocation3 + $0xc0] sm:$0xff]
        %v1290 = vld [vmem:[#allocation3 + $0xc8] sm:$0xff]
        %v1291 = vld [vmem:[#allocation3 + $0xd0] sm:$0xff]
        %v1292 = vld [vmem:[#allocation3 + $0xd8] sm:$0xff]
        %v1293 = vld [vmem:[#allocation3 + $0xe0] sm:$0xff]
        %v1294 = vld [vmem:[#allocation3 + $0xe8] sm:$0xff]
        %v1295 = vld [vmem:[#allocation3 + $0xf0] sm:$0xff]
        %v1296 = vld [vmem:[#allocation3 + $0xf8] sm:$0xff]
        %v1297 = vadd.f32 %v1265, %v1107
        %v1298 = vadd.f32 %v1266, %v1112
        %v1299 = vadd.f32 %v1267, %v1117
        %v1300 = vadd.f32 %v1268, %v1122
        %v1301 = vadd.f32 %v1269, %v1127
        %v1302 = vadd.f32 %v1270, %v1132
        %v1303 = vadd.f32 %v1271, %v1137
        %v1304 = vadd.f32 %v1272, %v1142
        %v1305 = vadd.f32 %v1273, %v1147
        %v1306 = vadd.f32 %v1274, %v1152
        %v1307 = vadd.f32 %v1275, %v1157
        %v1308 = vadd.f32 %v1276, %v1162
        %v1309 = vadd.f32 %v1277, %v1167
        %v1310 = vadd.f32 %v1278, %v1172
        %v1311 = vadd.f32 %v1279, %v1177
        %v1312 = vadd.f32 %v1280, %v1182
        %v1313 = vadd.f32 %v1281, %v1187
        %v1314 = vadd.f32 %v1282, %v1192
        %v1315 = vadd.f32 %v1283, %v1197
        %v1316 = vadd.f32 %v1284, %v1202
        %v1317 = vadd.f32 %v1285, %v1207
        %v1318 = vadd.f32 %v1286, %v1212
        %v1319 = vadd.f32 %v1287, %v1217
        %v1320 = vadd.f32 %v1288, %v1222
        %v1321 = vadd.f32 %v1289, %v1227
        %v1322 = vadd.f32 %v1290, %v1232
        %v1323 = vadd.f32 %v1291, %v1237
        %v1324 = vadd.f32 %v1292, %v1242
        %v1325 = vadd.f32 %v1293, %v1247
        %v1326 = vadd.f32 %v1294, %v1252
        %v1327 = vadd.f32 %v1295, %v1257
        %v1328 = vadd.f32 %v1296, %v1262
        %1329 = vst.msk [vmem:[#allocation3] sm:$0xff] %vm874, %v1297
        %1330 = vst.msk [vmem:[#allocation3 + $0x8] sm:$0xff] %vm874, %v1298
        %1331 = vst.msk [vmem:[#allocation3 + $0x10] sm:$0xff] %vm874, %v1299
        %1332 = vst.msk [vmem:[#allocation3 + $0x18] sm:$0xff] %vm874, %v1300
        %1333 = vst.msk [vmem:[#allocation3 + $0x20] sm:$0xff] %vm874, %v1301
        %1334 = vst.msk [vmem:[#allocation3 + $0x28] sm:$0xff] %vm874, %v1302
        %1335 = vst.msk [vmem:[#allocation3 + $0x30] sm:$0xff] %vm874, %v1303
        %1336 = vst.msk [vmem:[#allocation3 + $0x38] sm:$0xff] %vm874, %v1304
        %1337 = vst.msk [vmem:[#allocation3 + $0x40] sm:$0xff] %vm874, %v1305
        %1338 = vst.msk [vmem:[#allocation3 + $0x48] sm:$0xff] %vm874, %v1306
        %1339 = vst.msk [vmem:[#allocation3 + $0x50] sm:$0xff] %vm874, %v1307
        %1340 = vst.msk [vmem:[#allocation3 + $0x58] sm:$0xff] %vm874, %v1308
        %1341 = vst.msk [vmem:[#allocation3 + $0x60] sm:$0xff] %vm874, %v1309
        %1342 = vst.msk [vmem:[#allocation3 + $0x68] sm:$0xff] %vm874, %v1310
        %1343 = vst.msk [vmem:[#allocation3 + $0x70] sm:$0xff] %vm874, %v1311
        %1344 = vst.msk [vmem:[#allocation3 + $0x78] sm:$0xff] %vm874, %v1312
        %1345 = vst.msk [vmem:[#allocation3 + $0x80] sm:$0xff] %vm874, %v1313
        %1346 = vst.msk [vmem:[#allocation3 + $0x88] sm:$0xff] %vm874, %v1314
        %1347 = vst.msk [vmem:[#allocation3 + $0x90] sm:$0xff] %vm874, %v1315
        %1348 = vst.msk [vmem:[#allocation3 + $0x98] sm:$0xff] %vm874, %v1316
        %1349 = vst.msk [vmem:[#allocation3 + $0xa0] sm:$0xff] %vm874, %v1317
        %1350 = vst.msk [vmem:[#allocation3 + $0xa8] sm:$0xff] %vm874, %v1318
        %1351 = vst.msk [vmem:[#allocation3 + $0xb0] sm:$0xff] %vm874, %v1319
        %1352 = vst.msk [vmem:[#allocation3 + $0xb8] sm:$0xff] %vm874, %v1320
        %1353 = vst.msk [vmem:[#allocation3 + $0xc0] sm:$0xff] %vm874, %v1321
        %1354 = vst.msk [vmem:[#allocation3 + $0xc8] sm:$0xff] %vm874, %v1322
        %1355 = vst.msk [vmem:[#allocation3 + $0xd0] sm:$0xff] %vm874, %v1323
        %1356 = vst.msk [vmem:[#allocation3 + $0xd8] sm:$0xff] %vm874, %v1324
        %1357 = vst.msk [vmem:[#allocation3 + $0xe0] sm:$0xff] %vm874, %v1325
        %1358 = vst.msk [vmem:[#allocation3 + $0xe8] sm:$0xff] %vm874, %v1326
        %1359 = vst.msk [vmem:[#allocation3 + $0xf0] sm:$0xff] %vm874, %v1327
        %1360 = vst.msk [vmem:[#allocation3 + $0xf8] sm:$0xff] %vm874, %v1328
        %v1361 = vld [vmem:[#allocation2 + $0x2] sm:$0xff]
        %v1362 = vld [vmem:[#allocation2 + $0xa] sm:$0xff]
        %v1363 = vld [vmem:[#allocation2 + $0x1a] sm:$0xff]
        %v1364 = vld [vmem:[#allocation2 + $0x22] sm:$0xff]
        %v1365 = vld [vmem:[#allocation2 + $0x32] sm:$0xff]
        %v1366 = vld [vmem:[#allocation2 + $0x3a] sm:$0xff]
        %v1367 = vld [vmem:[#allocation2 + $0x4a] sm:$0xff]
        %v1368 = vld [vmem:[#allocation2 + $0x52] sm:$0xff]
        %v1369 = vld [vmem:[#allocation2 + $0x62] sm:$0xff]
        %v1370 = vld [vmem:[#allocation2 + $0x6a] sm:$0xff]
        %v1371 = vld [vmem:[#allocation2 + $0x7a] sm:$0xff]
        %v1372 = vld [vmem:[#allocation2 + $0x82] sm:$0xff]
        %v1373 = vld [vmem:[#allocation2 + $0x92] sm:$0xff]
        %v1374 = vld [vmem:[#allocation2 + $0x9a] sm:$0xff]
        %v1375 = vld [vmem:[#allocation2 + $0xaa] sm:$0xff]
        %v1376 = vld [vmem:[#allocation2 + $0xb2] sm:$0xff]
        %v1377 = vld [vmem:[#allocation2 + $0xc2] sm:$0xff]
        %v1378 = vld [vmem:[#allocation2 + $0xca] sm:$0xff]
        %v1379 = vld [vmem:[#allocation2 + $0xda] sm:$0xff]
        %v1380 = vld [vmem:[#allocation2 + $0xe2] sm:$0xff]
        %v1381 = vld [vmem:[#allocation2 + $0xf2] sm:$0xff]
        %v1382 = vld [vmem:[#allocation2 + $0xfa] sm:$0xff]
        %v1383 = vld [vmem:[#allocation2 + $0x10a] sm:$0xff]
        %v1384 = vld [vmem:[#allocation2 + $0x112] sm:$0xff]
        %v1385 = vld [vmem:[#allocation2 + $0x122] sm:$0xff]
        %v1386 = vld [vmem:[#allocation2 + $0x12a] sm:$0xff]
        %v1387 = vld [vmem:[#allocation2 + $0x13a] sm:$0xff]
        %v1388 = vld [vmem:[#allocation2 + $0x142] sm:$0xff]
        %v1389 = vld [vmem:[#allocation2 + $0x152] sm:$0xff]
        %v1390 = vld [vmem:[#allocation2 + $0x15a] sm:$0xff]
        %v1391 = vld [vmem:[#allocation2 + $0x16a] sm:$0xff]
        %v1392 = vld [vmem:[#allocation2 + $0x172] sm:$0xff]
        %s1393 = scalar_lea.vmem [#allocation10], 8
        %v1394 = vld [vmem:[%s1393] sm:$0xf]
        %v1396 = vsel %vm295, %v1361, 0
        %v1399 = vsel %vm295, %v1362, 0
        %v1402 = vsel %vm295, %v1363, 0
        %v1405 = vsel %vm295, %v1364, 0
        %v1408 = vsel %vm295, %v1365, 0
        %v1411 = vsel %vm295, %v1366, 0
        %v1414 = vsel %vm295, %v1367, 0
        %v1417 = vsel %vm295, %v1368, 0
        %v1420 = vsel %vm295, %v1369, 0
        %v1423 = vsel %vm295, %v1370, 0
        %v1426 = vsel %vm295, %v1371, 0
        %v1429 = vsel %vm295, %v1372, 0
        %v1432 = vsel %vm295, %v1373, 0
        %v1435 = vsel %vm295, %v1374, 0
        %v1438 = vsel %vm295, %v1375, 0
        %v1441 = vsel %vm295, %v1376, 0
        %v1444 = vsel %vm295, %v1377, 0
        %v1447 = vsel %vm295, %v1378, 0
        %v1450 = vsel %vm295, %v1379, 0
        %v1453 = vsel %vm295, %v1380, 0
        %v1456 = vsel %vm295, %v1381, 0
        %v1459 = vsel %vm295, %v1382, 0
        %v1462 = vsel %vm295, %v1383, 0
        %v1465 = vsel %vm295, %v1384, 0
        %v1468 = vsel %vm295, %v1385, 0
        %v1471 = vsel %vm295, %v1386, 0
        %v1474 = vsel %vm295, %v1387, 0
        %v1477 = vsel %vm295, %v1388, 0
        %v1480 = vsel %vm295, %v1389, 0
        %v1483 = vsel %vm295, %v1390, 0
        %v1486 = vsel %vm295, %v1391, 0
        %v1489 = vsel %vm295, %v1392, 0
        %v1492 = vsel %vm645, %v1394, 0
        %1494 = vmatprep.subr.mxu0 0.0
        %1495 = vmatpush1.msra.mxu0 %v1492
        %1496 = vmatprep.subr.mxu0 0.0
        %1497 = vmatpush1.msra.mxu0 0.0
        %1498 = vmatprep.subr.mxu0 0.0
        %1499 = vmatpush1.msra.mxu0 0.0
        %1500 = vmatprep.subr.mxu0 0.0
        %1501 = vmatpush1.msra.mxu0 0.0
        %1502 = vmatprep.subr.mxu0 0.0
        %1503 = vmatpush1.msra.mxu0 0.0
        %1504 = vmatprep.subr.mxu0 0.0
        %1505 = vmatpush1.msra.mxu0 0.0
        %1506 = vmatprep.subr.mxu0 0.0
        %1507 = vmatpush1.msra.mxu0 0.0
        %1508 = vmatprep.subr.mxu0 0.0
        %1509 = vmatpush1.msra.mxu0 0.0
        %1510 = vmatprep.subr.mxu0 0.0
        %1511 = vmatpush1.msra.mxu0 0.0
        %1512 = vmatprep.subr.mxu0 0.0
        %1513 = vmatpush1.msra.mxu0 0.0
        %1514 = vmatprep.subr.mxu0 0.0
        %1515 = vmatpush1.msra.mxu0 0.0
        %1516 = vmatprep.subr.mxu0 0.0
        %1517 = vmatpush1.msra.mxu0 0.0
        %1518 = vmatprep.subr.mxu0 0.0
        %1519 = vmatpush1.msra.mxu0 0.0
        %1520 = vmatprep.subr.mxu0 0.0
        %1521 = vmatpush1.msra.mxu0 0.0
        %1522 = vmatprep.subr.mxu0 0.0
        %1523 = vmatpush1.msra.mxu0 0.0
        %1524 = vmatprep.subr.mxu0 0.0
        %1525 = vmatpush1.msra.mxu0 0.0
        %1526 = vmatprep.subr.mxu0 0.0
        %1527 = vmatpush1.msra.mxu0 0.0
        %1528 = vmatprep.subr.mxu0 0.0
        %1529 = vmatpush1.msra.mxu0 0.0
        %1530 = vmatprep.subr.mxu0 0.0
        %1531 = vmatpush1.msra.mxu0 0.0
        %1532 = vmatprep.subr.mxu0 0.0
        %1533 = vmatpush1.msra.mxu0 0.0
        %1534 = vmatprep.subr.mxu0 0.0
        %1535 = vmatpush1.msra.mxu0 0.0
        %1536 = vmatprep.subr.mxu0 0.0
        %1537 = vmatpush1.msra.mxu0 0.0
        %1538 = vmatprep.subr.mxu0 0.0
        %1539 = vmatpush1.msra.mxu0 0.0
        %1540 = vmatprep.subr.mxu0 0.0
        %1541 = vmatpush1.msra.mxu0 0.0
        %1542 = vmatprep.subr.mxu0 0.0
        %1543 = vmatpush1.msra.mxu0 0.0
        %1544 = vmatprep.subr.mxu0 0.0
        %1545 = vmatpush1.msra.mxu0 0.0
        %1546 = vmatprep.subr.mxu0 0.0
        %1547 = vmatpush1.msra.mxu0 0.0
        %1548 = vmatprep.subr.mxu0 0.0
        %1549 = vmatpush1.msra.mxu0 0.0
        %1550 = vmatprep.subr.mxu0 0.0
        %1551 = vmatpush1.msra.mxu0 0.0
        %1552 = vmatprep.subr.mxu0 0.0
        %1553 = vmatpush1.msra.mxu0 0.0
        %1554 = vmatprep.subr.mxu0 0.0
        %1555 = vmatpush1.msra.mxu0 0.0
        %1556 = vmatprep.subr.mxu0 0.0
        %1557 = vmatpush1.msra.mxu0 0.0
        %1558 = vmatprep.mubr.f32.mxu0 0.0
        %1559 = vmatmul.mubr.f32.gmra.mrb[0].mxu0 %v1396
        %v1560 = vpop.f32.mrb[0].mxu0
        %v1561 = vadd.f32 0.0, %v1560
        %v1562 = vpop.f32.mrb[0].mxu0
        %1563 = vmatprep.mubr.f32.mxu0 0.0
        %1564 = vmatmul.mubr.f32.gmra.mrb[0].mxu0 %v1399
        %v1565 = vpop.f32.mrb[0].mxu0
        %v1566 = vadd.f32 0.0, %v1565
        %v1567 = vpop.f32.mrb[0].mxu0
        %1568 = vmatprep.mubr.f32.mxu0 0.0
        %1569 = vmatmul.mubr.f32.gmra.mrb[0].mxu0 %v1402
        %v1570 = vpop.f32.mrb[0].mxu0
        %v1571 = vadd.f32 0.0, %v1570
        %v1572 = vpop.f32.mrb[0].mxu0
        %1573 = vmatprep.mubr.f32.mxu0 0.0
        %1574 = vmatmul.mubr.f32.gmra.mrb[0].mxu0 %v1405
        %v1575 = vpop.f32.mrb[0].mxu0
        %v1576 = vadd.f32 0.0, %v1575
        %v1577 = vpop.f32.mrb[0].mxu0
        %1578 = vmatprep.mubr.f32.mxu0 0.0
        %1579 = vmatmul.mubr.f32.gmra.mrb[0].mxu0 %v1408
        %v1580 = vpop.f32.mrb[0].mxu0
        %v1581 = vadd.f32 0.0, %v1580
        %v1582 = vpop.f32.mrb[0].mxu0
        %1583 = vmatprep.mubr.f32.mxu0 0.0
        %1584 = vmatmul.mubr.f32.gmra.mrb[0].mxu0 %v1411
        %v1585 = vpop.f32.mrb[0].mxu0
        %v1586 = vadd.f32 0.0, %v1585
        %v1587 = vpop.f32.mrb[0].mxu0
        %1588 = vmatprep.mubr.f32.mxu0 0.0
        %1589 = vmatmul.mubr.f32.gmra.mrb[0].mxu0 %v1414
        %v1590 = vpop.f32.mrb[0].mxu0
        %v1591 = vadd.f32 0.0, %v1590
        %v1592 = vpop.f32.mrb[0].mxu0
        %1593 = vmatprep.mubr.f32.mxu0 0.0
        %1594 = vmatmul.mubr.f32.gmra.mrb[0].mxu0 %v1417
        %v1595 = vpop.f32.mrb[0].mxu0
        %v1596 = vadd.f32 0.0, %v1595
        %v1597 = vpop.f32.mrb[0].mxu0
        %1598 = vmatprep.mubr.f32.mxu0 0.0
        %1599 = vmatmul.mubr.f32.gmra.mrb[0].mxu0 %v1420
        %v1600 = vpop.f32.mrb[0].mxu0
        %v1601 = vadd.f32 0.0, %v1600
        %v1602 = vpop.f32.mrb[0].mxu0
        %1603 = vmatprep.mubr.f32.mxu0 0.0
        %1604 = vmatmul.mubr.f32.gmra.mrb[0].mxu0 %v1423
        %v1605 = vpop.f32.mrb[0].mxu0
        %v1606 = vadd.f32 0.0, %v1605
        %v1607 = vpop.f32.mrb[0].mxu0
        %1608 = vmatprep.mubr.f32.mxu0 0.0
        %1609 = vmatmul.mubr.f32.gmra.mrb[0].mxu0 %v1426
        %v1610 = vpop.f32.mrb[0].mxu0
        %v1611 = vadd.f32 0.0, %v1610
        %v1612 = vpop.f32.mrb[0].mxu0
        %1613 = vmatprep.mubr.f32.mxu0 0.0
        %1614 = vmatmul.mubr.f32.gmra.mrb[0].mxu0 %v1429
        %v1615 = vpop.f32.mrb[0].mxu0
        %v1616 = vadd.f32 0.0, %v1615
        %v1617 = vpop.f32.mrb[0].mxu0
        %1618 = vmatprep.mubr.f32.mxu0 0.0
        %1619 = vmatmul.mubr.f32.gmra.mrb[0].mxu0 %v1432
        %v1620 = vpop.f32.mrb[0].mxu0
        %v1621 = vadd.f32 0.0, %v1620
        %v1622 = vpop.f32.mrb[0].mxu0
        %1623 = vmatprep.mubr.f32.mxu0 0.0
        %1624 = vmatmul.mubr.f32.gmra.mrb[0].mxu0 %v1435
        %v1625 = vpop.f32.mrb[0].mxu0
        %v1626 = vadd.f32 0.0, %v1625
        %v1627 = vpop.f32.mrb[0].mxu0
        %1628 = vmatprep.mubr.f32.mxu0 0.0
        %1629 = vmatmul.mubr.f32.gmra.mrb[0].mxu0 %v1438
        %v1630 = vpop.f32.mrb[0].mxu0
        %v1631 = vadd.f32 0.0, %v1630
        %v1632 = vpop.f32.mrb[0].mxu0
        %1633 = vmatprep.mubr.f32.mxu0 0.0
        %1634 = vmatmul.mubr.f32.gmra.mrb[0].mxu0 %v1441
        %v1635 = vpop.f32.mrb[0].mxu0
        %v1636 = vadd.f32 0.0, %v1635
        %v1637 = vpop.f32.mrb[0].mxu0
        %1638 = vmatprep.mubr.f32.mxu0 0.0
        %1639 = vmatmul.mubr.f32.gmra.mrb[0].mxu0 %v1444
        %v1640 = vpop.f32.mrb[0].mxu0
        %v1641 = vadd.f32 0.0, %v1640
        %v1642 = vpop.f32.mrb[0].mxu0
        %1643 = vmatprep.mubr.f32.mxu0 0.0
        %1644 = vmatmul.mubr.f32.gmra.mrb[0].mxu0 %v1447
        %v1645 = vpop.f32.mrb[0].mxu0
        %v1646 = vadd.f32 0.0, %v1645
        %v1647 = vpop.f32.mrb[0].mxu0
        %1648 = vmatprep.mubr.f32.mxu0 0.0
        %1649 = vmatmul.mubr.f32.gmra.mrb[0].mxu0 %v1450
        %v1650 = vpop.f32.mrb[0].mxu0
        %v1651 = vadd.f32 0.0, %v1650
        %v1652 = vpop.f32.mrb[0].mxu0
        %1653 = vmatprep.mubr.f32.mxu0 0.0
        %1654 = vmatmul.mubr.f32.gmra.mrb[0].mxu0 %v1453
        %v1655 = vpop.f32.mrb[0].mxu0
        %v1656 = vadd.f32 0.0, %v1655
        %v1657 = vpop.f32.mrb[0].mxu0
        %1658 = vmatprep.mubr.f32.mxu0 0.0
        %1659 = vmatmul.mubr.f32.gmra.mrb[0].mxu0 %v1456
        %v1660 = vpop.f32.mrb[0].mxu0
        %v1661 = vadd.f32 0.0, %v1660
        %v1662 = vpop.f32.mrb[0].mxu0
        %1663 = vmatprep.mubr.f32.mxu0 0.0
        %1664 = vmatmul.mubr.f32.gmra.mrb[0].mxu0 %v1459
        %v1665 = vpop.f32.mrb[0].mxu0
        %v1666 = vadd.f32 0.0, %v1665
        %v1667 = vpop.f32.mrb[0].mxu0
        %1668 = vmatprep.mubr.f32.mxu0 0.0
        %1669 = vmatmul.mubr.f32.gmra.mrb[0].mxu0 %v1462
        %v1670 = vpop.f32.mrb[0].mxu0
        %v1671 = vadd.f32 0.0, %v1670
        %v1672 = vpop.f32.mrb[0].mxu0
        %1673 = vmatprep.mubr.f32.mxu0 0.0
        %1674 = vmatmul.mubr.f32.gmra.mrb[0].mxu0 %v1465
        %v1675 = vpop.f32.mrb[0].mxu0
        %v1676 = vadd.f32 0.0, %v1675
        %v1677 = vpop.f32.mrb[0].mxu0
        %1678 = vmatprep.mubr.f32.mxu0 0.0
        %1679 = vmatmul.mubr.f32.gmra.mrb[0].mxu0 %v1468
        %v1680 = vpop.f32.mrb[0].mxu0
        %v1681 = vadd.f32 0.0, %v1680
        %v1682 = vpop.f32.mrb[0].mxu0
        %1683 = vmatprep.mubr.f32.mxu0 0.0
        %1684 = vmatmul.mubr.f32.gmra.mrb[0].mxu0 %v1471
        %v1685 = vpop.f32.mrb[0].mxu0
        %v1686 = vadd.f32 0.0, %v1685
        %v1687 = vpop.f32.mrb[0].mxu0
        %1688 = vmatprep.mubr.f32.mxu0 0.0
        %1689 = vmatmul.mubr.f32.gmra.mrb[0].mxu0 %v1474
        %v1690 = vpop.f32.mrb[0].mxu0
        %v1691 = vadd.f32 0.0, %v1690
        %v1692 = vpop.f32.mrb[0].mxu0
        %1693 = vmatprep.mubr.f32.mxu0 0.0
        %1694 = vmatmul.mubr.f32.gmra.mrb[0].mxu0 %v1477
        %v1695 = vpop.f32.mrb[0].mxu0
        %v1696 = vadd.f32 0.0, %v1695
        %v1697 = vpop.f32.mrb[0].mxu0
        %1698 = vmatprep.mubr.f32.mxu0 0.0
        %1699 = vmatmul.mubr.f32.gmra.mrb[0].mxu0 %v1480
        %v1700 = vpop.f32.mrb[0].mxu0
        %v1701 = vadd.f32 0.0, %v1700
        %v1702 = vpop.f32.mrb[0].mxu0
        %1703 = vmatprep.mubr.f32.mxu0 0.0
        %1704 = vmatmul.mubr.f32.gmra.mrb[0].mxu0 %v1483
        %v1705 = vpop.f32.mrb[0].mxu0
        %v1706 = vadd.f32 0.0, %v1705
        %v1707 = vpop.f32.mrb[0].mxu0
        %1708 = vmatprep.mubr.f32.mxu0 0.0
        %1709 = vmatmul.mubr.f32.gmra.mrb[0].mxu0 %v1486
        %v1710 = vpop.f32.mrb[0].mxu0
        %v1711 = vadd.f32 0.0, %v1710
        %v1712 = vpop.f32.mrb[0].mxu0
        %1713 = vmatprep.mubr.f32.mxu0 0.0
        %1714 = vmatmul.mubr.f32.gmra.mrb[0].mxu0 %v1489
        %v1715 = vpop.f32.mrb[0].mxu0
        %v1716 = vadd.f32 0.0, %v1715
        %v1717 = vpop.f32.mrb[0].mxu0
        %1718 = vdwg.mxu0
        %v1719 = vld [vmem:[#allocation3] sm:$0xff]
        %v1720 = vld [vmem:[#allocation3 + $0x8] sm:$0xff]
        %v1721 = vld [vmem:[#allocation3 + $0x10] sm:$0xff]
        %v1722 = vld [vmem:[#allocation3 + $0x18] sm:$0xff]
        %v1723 = vld [vmem:[#allocation3 + $0x20] sm:$0xff]
        %v1724 = vld [vmem:[#allocation3 + $0x28] sm:$0xff]
        %v1725 = vld [vmem:[#allocation3 + $0x30] sm:$0xff]
        %v1726 = vld [vmem:[#allocation3 + $0x38] sm:$0xff]
        %v1727 = vld [vmem:[#allocation3 + $0x40] sm:$0xff]
        %v1728 = vld [vmem:[#allocation3 + $0x48] sm:$0xff]
        %v1729 = vld [vmem:[#allocation3 + $0x50] sm:$0xff]
        %v1730 = vld [vmem:[#allocation3 + $0x58] sm:$0xff]
        %v1731 = vld [vmem:[#allocation3 + $0x60] sm:$0xff]
        %v1732 = vld [vmem:[#allocation3 + $0x68] sm:$0xff]
        %v1733 = vld [vmem:[#allocation3 + $0x70] sm:$0xff]
        %v1734 = vld [vmem:[#allocation3 + $0x78] sm:$0xff]
        %v1735 = vld [vmem:[#allocation3 + $0x80] sm:$0xff]
        %v1736 = vld [vmem:[#allocation3 + $0x88] sm:$0xff]
        %v1737 = vld [vmem:[#allocation3 + $0x90] sm:$0xff]
        %v1738 = vld [vmem:[#allocation3 + $0x98] sm:$0xff]
        %v1739 = vld [vmem:[#allocation3 + $0xa0] sm:$0xff]
        %v1740 = vld [vmem:[#allocation3 + $0xa8] sm:$0xff]
        %v1741 = vld [vmem:[#allocation3 + $0xb0] sm:$0xff]
        %v1742 = vld [vmem:[#allocation3 + $0xb8] sm:$0xff]
        %v1743 = vld [vmem:[#allocation3 + $0xc0] sm:$0xff]
        %v1744 = vld [vmem:[#allocation3 + $0xc8] sm:$0xff]
        %v1745 = vld [vmem:[#allocation3 + $0xd0] sm:$0xff]
        %v1746 = vld [vmem:[#allocation3 + $0xd8] sm:$0xff]
        %v1747 = vld [vmem:[#allocation3 + $0xe0] sm:$0xff]
        %v1748 = vld [vmem:[#allocation3 + $0xe8] sm:$0xff]
        %v1749 = vld [vmem:[#allocation3 + $0xf0] sm:$0xff]
        %v1750 = vld [vmem:[#allocation3 + $0xf8] sm:$0xff]
        %v1751 = vadd.f32 %v1719, %v1561
        %v1752 = vadd.f32 %v1720, %v1566
        %v1753 = vadd.f32 %v1721, %v1571
        %v1754 = vadd.f32 %v1722, %v1576
        %v1755 = vadd.f32 %v1723, %v1581
        %v1756 = vadd.f32 %v1724, %v1586
        %v1757 = vadd.f32 %v1725, %v1591
        %v1758 = vadd.f32 %v1726, %v1596
        %v1759 = vadd.f32 %v1727, %v1601
        %v1760 = vadd.f32 %v1728, %v1606
        %v1761 = vadd.f32 %v1729, %v1611
        %v1762 = vadd.f32 %v1730, %v1616
        %v1763 = vadd.f32 %v1731, %v1621
        %v1764 = vadd.f32 %v1732, %v1626
        %v1765 = vadd.f32 %v1733, %v1631
        %v1766 = vadd.f32 %v1734, %v1636
        %v1767 = vadd.f32 %v1735, %v1641
        %v1768 = vadd.f32 %v1736, %v1646
        %v1769 = vadd.f32 %v1737, %v1651
        %v1770 = vadd.f32 %v1738, %v1656
        %v1771 = vadd.f32 %v1739, %v1661
        %v1772 = vadd.f32 %v1740, %v1666
        %v1773 = vadd.f32 %v1741, %v1671
        %v1774 = vadd.f32 %v1742, %v1676
        %v1775 = vadd.f32 %v1743, %v1681
        %v1776 = vadd.f32 %v1744, %v1686
        %v1777 = vadd.f32 %v1745, %v1691
        %v1778 = vadd.f32 %v1746, %v1696
        %v1779 = vadd.f32 %v1747, %v1701
        %v1780 = vadd.f32 %v1748, %v1706
        %v1781 = vadd.f32 %v1749, %v1711
        %v1782 = vadd.f32 %v1750, %v1716
        %1783 = vst.msk [vmem:[#allocation3] sm:$0xff] %vm874, %v1751
        %1784 = vst.msk [vmem:[#allocation3 + $0x8] sm:$0xff] %vm874, %v1752
        %1785 = vst.msk [vmem:[#allocation3 + $0x10] sm:$0xff] %vm874, %v1753
        %1786 = vst.msk [vmem:[#allocation3 + $0x18] sm:$0xff] %vm874, %v1754
        %1787 = vst.msk [vmem:[#allocation3 + $0x20] sm:$0xff] %vm874, %v1755
        %1788 = vst.msk [vmem:[#allocation3 + $0x28] sm:$0xff] %vm874, %v1756
        %1789 = vst.msk [vmem:[#allocation3 + $0x30] sm:$0xff] %vm874, %v1757
        %1790 = vst.msk [vmem:[#allocation3 + $0x38] sm:$0xff] %vm874, %v1758
        %1791 = vst.msk [vmem:[#allocation3 + $0x40] sm:$0xff] %vm874, %v1759
        %1792 = vst.msk [vmem:[#allocation3 + $0x48] sm:$0xff] %vm874, %v1760
        %1793 = vst.msk [vmem:[#allocation3 + $0x50] sm:$0xff] %vm874, %v1761
        %1794 = vst.msk [vmem:[#allocation3 + $0x58] sm:$0xff] %vm874, %v1762
        %1795 = vst.msk [vmem:[#allocation3 + $0x60] sm:$0xff] %vm874, %v1763
        %1796 = vst.msk [vmem:[#allocation3 + $0x68] sm:$0xff] %vm874, %v1764
        %1797 = vst.msk [vmem:[#allocation3 + $0x70] sm:$0xff] %vm874, %v1765
        %1798 = vst.msk [vmem:[#allocation3 + $0x78] sm:$0xff] %vm874, %v1766
        %1799 = vst.msk [vmem:[#allocation3 + $0x80] sm:$0xff] %vm874, %v1767
        %1800 = vst.msk [vmem:[#allocation3 + $0x88] sm:$0xff] %vm874, %v1768
        %1801 = vst.msk [vmem:[#allocation3 + $0x90] sm:$0xff] %vm874, %v1769
        %1802 = vst.msk [vmem:[#allocation3 + $0x98] sm:$0xff] %vm874, %v1770
        %1803 = vst.msk [vmem:[#allocation3 + $0xa0] sm:$0xff] %vm874, %v1771
        %1804 = vst.msk [vmem:[#allocation3 + $0xa8] sm:$0xff] %vm874, %v1772
        %1805 = vst.msk [vmem:[#allocation3 + $0xb0] sm:$0xff] %vm874, %v1773
        %1806 = vst.msk [vmem:[#allocation3 + $0xb8] sm:$0xff] %vm874, %v1774
        %1807 = vst.msk [vmem:[#allocation3 + $0xc0] sm:$0xff] %vm874, %v1775
        %1808 = vst.msk [vmem:[#allocation3 + $0xc8] sm:$0xff] %vm874, %v1776
        %1809 = vst.msk [vmem:[#allocation3 + $0xd0] sm:$0xff] %vm874, %v1777
        %1810 = vst.msk [vmem:[#allocation3 + $0xd8] sm:$0xff] %vm874, %v1778
        %1811 = vst.msk [vmem:[#allocation3 + $0xe0] sm:$0xff] %vm874, %v1779
        %1812 = vst.msk [vmem:[#allocation3 + $0xe8] sm:$0xff] %vm874, %v1780
        %1813 = vst.msk [vmem:[#allocation3 + $0xf0] sm:$0xff] %vm874, %v1781
        %1814 = vst.msk [vmem:[#allocation3 + $0xf8] sm:$0xff] %vm874, %v1782
        %v1815 = vld [vmem:[%s483] sm:$0xff]
        %v1816 = vld [vmem:[%s483 + $0x8] sm:$0xff]
        %v1817 = vld [vmem:[%s483 + $0x18] sm:$0xff]
        %v1818 = vld [vmem:[%s483 + $0x20] sm:$0xff]
        %v1819 = vld [vmem:[%s483 + $0x30] sm:$0xff]
        %v1820 = vld [vmem:[%s483 + $0x38] sm:$0xff]
        %v1821 = vld [vmem:[%s483 + $0x48] sm:$0xff]
        %v1822 = vld [vmem:[%s483 + $0x50] sm:$0xff]
        %v1823 = vld [vmem:[%s483 + $0x60] sm:$0xff]
        %v1824 = vld [vmem:[%s483 + $0x68] sm:$0xff]
        %v1825 = vld [vmem:[%s483 + $0x78] sm:$0xff]
        %v1826 = vld [vmem:[%s483 + $0x80] sm:$0xff]
        %v1827 = vld [vmem:[%s483 + $0x90] sm:$0xff]
        %v1828 = vld [vmem:[%s483 + $0x98] sm:$0xff]
        %v1829 = vld [vmem:[%s483 + $0xa8] sm:$0xff]
        %v1830 = vld [vmem:[%s483 + $0xb0] sm:$0xff]
        %v1831 = vld [vmem:[%s483 + $0xc0] sm:$0xff]
        %v1832 = vld [vmem:[%s483 + $0xc8] sm:$0xff]
        %v1833 = vld [vmem:[%s483 + $0xd8] sm:$0xff]
        %v1834 = vld [vmem:[%s483 + $0xe0] sm:$0xff]
        %v1835 = vld [vmem:[%s483 + $0xf0] sm:$0xff]
        %v1836 = vld [vmem:[%s483 + $0xf8] sm:$0xff]
        %v1837 = vld [vmem:[%s483 + $0x108] sm:$0xff]
        %v1838 = vld [vmem:[%s483 + $0x110] sm:$0xff]
        %v1839 = vld [vmem:[%s483 + $0x120] sm:$0xff]
        %v1840 = vld [vmem:[%s483 + $0x128] sm:$0xff]
        %v1841 = vld [vmem:[%s483 + $0x138] sm:$0xff]
        %v1842 = vld [vmem:[%s483 + $0x140] sm:$0xff]
        %v1843 = vld [vmem:[%s483 + $0x150] sm:$0xff]
        %v1844 = vld [vmem:[%s483 + $0x158] sm:$0xff]
        %v1845 = vld [vmem:[%s483 + $0x168] sm:$0xff]
        %v1846 = vld [vmem:[%s483 + $0x170] sm:$0xff]
        %s1847 = scalar_lea.vmem [#allocation10], 12
        %v1848 = vld [vmem:[%s1847] sm:$0xf]
        %v1850 = vsel %vm295, %v1815, 0
        %v1853 = vsel %vm295, %v1816, 0
        %v1856 = vsel %vm295, %v1817, 0
        %v1859 = vsel %vm295, %v1818, 0
        %v1862 = vsel %vm295, %v1819, 0
        %v1865 = vsel %vm295, %v1820, 0
        %v1868 = vsel %vm295, %v1821, 0
        %v1871 = vsel %vm295, %v1822, 0
        %v1874 = vsel %vm295, %v1823, 0
        %v1877 = vsel %vm295, %v1824, 0
        %v1880 = vsel %vm295, %v1825, 0
        %v1883 = vsel %vm295, %v1826, 0
        %v1886 = vsel %vm295, %v1827, 0
        %v1889 = vsel %vm295, %v1828, 0
        %v1892 = vsel %vm295, %v1829, 0
        %v1895 = vsel %vm295, %v1830, 0
        %v1898 = vsel %vm295, %v1831, 0
        %v1901 = vsel %vm295, %v1832, 0
        %v1904 = vsel %vm295, %v1833, 0
        %v1907 = vsel %vm295, %v1834, 0
        %v1910 = vsel %vm295, %v1835, 0
        %v1913 = vsel %vm295, %v1836, 0
        %v1916 = vsel %vm295, %v1837, 0
        %v1919 = vsel %vm295, %v1838, 0
        %v1922 = vsel %vm295, %v1839, 0
        %v1925 = vsel %vm295, %v1840, 0
        %v1928 = vsel %vm295, %v1841, 0
        %v1931 = vsel %vm295, %v1842, 0
        %v1934 = vsel %vm295, %v1843, 0
        %v1937 = vsel %vm295, %v1844, 0
        %v1940 = vsel %vm295, %v1845, 0
        %v1943 = vsel %vm295, %v1846, 0
        %v1946 = vsel %vm645, %v1848, 0
        %1948 = vmatprep.subr.mxu0 0.0
        %1949 = vmatpush1.msra.mxu0 %v1946
        %1950 = vmatprep.subr.mxu0 0.0
        %1951 = vmatpush1.msra.mxu0 0.0
        %1952 = vmatprep.subr.mxu0 0.0
        %1953 = vmatpush1.msra.mxu0 0.0
        %1954 = vmatprep.subr.mxu0 0.0
        %1955 = vmatpush1.msra.mxu0 0.0
        %1956 = vmatprep.subr.mxu0 0.0
        %1957 = vmatpush1.msra.mxu0 0.0
        %1958 = vmatprep.subr.mxu0 0.0
        %1959 = vmatpush1.msra.mxu0 0.0
        %1960 = vmatprep.subr.mxu0 0.0
        %1961 = vmatpush1.msra.mxu0 0.0
        %1962 = vmatprep.subr.mxu0 0.0
        %1963 = vmatpush1.msra.mxu0 0.0
        %1964 = vmatprep.subr.mxu0 0.0
        %1965 = vmatpush1.msra.mxu0 0.0
        %1966 = vmatprep.subr.mxu0 0.0
        %1967 = vmatpush1.msra.mxu0 0.0
        %1968 = vmatprep.subr.mxu0 0.0
        %1969 = vmatpush1.msra.mxu0 0.0
        %1970 = vmatprep.subr.mxu0 0.0
        %1971 = vmatpush1.msra.mxu0 0.0
        %1972 = vmatprep.subr.mxu0 0.0
        %1973 = vmatpush1.msra.mxu0 0.0
        %1974 = vmatprep.subr.mxu0 0.0
        %1975 = vmatpush1.msra.mxu0 0.0
        %1976 = vmatprep.subr.mxu0 0.0
        %1977 = vmatpush1.msra.mxu0 0.0
        %1978 = vmatprep.subr.mxu0 0.0
        %1979 = vmatpush1.msra.mxu0 0.0
        %1980 = vmatprep.subr.mxu0 0.0
        %1981 = vmatpush1.msra.mxu0 0.0
        %1982 = vmatprep.subr.mxu0 0.0
        %1983 = vmatpush1.msra.mxu0 0.0
        %1984 = vmatprep.subr.mxu0 0.0
        %1985 = vmatpush1.msra.mxu0 0.0
        %1986 = vmatprep.subr.mxu0 0.0
        %1987 = vmatpush1.msra.mxu0 0.0
        %1988 = vmatprep.subr.mxu0 0.0
        %1989 = vmatpush1.msra.mxu0 0.0
        %1990 = vmatprep.subr.mxu0 0.0
        %1991 = vmatpush1.msra.mxu0 0.0
        %1992 = vmatprep.subr.mxu0 0.0
        %1993 = vmatpush1.msra.mxu0 0.0
        %1994 = vmatprep.subr.mxu0 0.0
        %1995 = vmatpush1.msra.mxu0 0.0
        %1996 = vmatprep.subr.mxu0 0.0
        %1997 = vmatpush1.msra.mxu0 0.0
        %1998 = vmatprep.subr.mxu0 0.0
        %1999 = vmatpush1.msra.mxu0 0.0
        %2000 = vmatprep.subr.mxu0 0.0
        %2001 = vmatpush1.msra.mxu0 0.0
        %2002 = vmatprep.subr.mxu0 0.0
        %2003 = vmatpush1.msra.mxu0 0.0
        %2004 = vmatprep.subr.mxu0 0.0
        %2005 = vmatpush1.msra.mxu0 0.0
        %2006 = vmatprep.subr.mxu0 0.0
        %2007 = vmatpush1.msra.mxu0 0.0
        %2008 = vmatprep.subr.mxu0 0.0
        %2009 = vmatpush1.msra.mxu0 0.0
        %2010 = vmatprep.subr.mxu0 0.0
        %2011 = vmatpush1.msra.mxu0 0.0
        %2012 = vmatprep.mubr.f32.mxu0 0.0
        %2013 = vmatmul.mubr.f32.gmra.mrb[0].mxu0 %v1850
        %v2014 = vpop.f32.mrb[0].mxu0
        %v2015 = vadd.f32 0.0, %v2014
        %v2016 = vpop.f32.mrb[0].mxu0
        %2017 = vmatprep.mubr.f32.mxu0 0.0
        %2018 = vmatmul.mubr.f32.gmra.mrb[0].mxu0 %v1853
        %v2019 = vpop.f32.mrb[0].mxu0
        %v2020 = vadd.f32 0.0, %v2019
        %v2021 = vpop.f32.mrb[0].mxu0
        %2022 = vmatprep.mubr.f32.mxu0 0.0
        %2023 = vmatmul.mubr.f32.gmra.mrb[0].mxu0 %v1856
        %v2024 = vpop.f32.mrb[0].mxu0
        %v2025 = vadd.f32 0.0, %v2024
        %v2026 = vpop.f32.mrb[0].mxu0
        %2027 = vmatprep.mubr.f32.mxu0 0.0
        %2028 = vmatmul.mubr.f32.gmra.mrb[0].mxu0 %v1859
        %v2029 = vpop.f32.mrb[0].mxu0
        %v2030 = vadd.f32 0.0, %v2029
        %v2031 = vpop.f32.mrb[0].mxu0
        %2032 = vmatprep.mubr.f32.mxu0 0.0
        %2033 = vmatmul.mubr.f32.gmra.mrb[0].mxu0 %v1862
        %v2034 = vpop.f32.mrb[0].mxu0
        %v2035 = vadd.f32 0.0, %v2034
        %v2036 = vpop.f32.mrb[0].mxu0
        %2037 = vmatprep.mubr.f32.mxu0 0.0
        %2038 = vmatmul.mubr.f32.gmra.mrb[0].mxu0 %v1865
        %v2039 = vpop.f32.mrb[0].mxu0
        %v2040 = vadd.f32 0.0, %v2039
        %v2041 = vpop.f32.mrb[0].mxu0
        %2042 = vmatprep.mubr.f32.mxu0 0.0
        %2043 = vmatmul.mubr.f32.gmra.mrb[0].mxu0 %v1868
        %v2044 = vpop.f32.mrb[0].mxu0
        %v2045 = vadd.f32 0.0, %v2044
        %v2046 = vpop.f32.mrb[0].mxu0
        %2047 = vmatprep.mubr.f32.mxu0 0.0
        %2048 = vmatmul.mubr.f32.gmra.mrb[0].mxu0 %v1871
        %v2049 = vpop.f32.mrb[0].mxu0
        %v2050 = vadd.f32 0.0, %v2049
        %v2051 = vpop.f32.mrb[0].mxu0
        %2052 = vmatprep.mubr.f32.mxu0 0.0
        %2053 = vmatmul.mubr.f32.gmra.mrb[0].mxu0 %v1874
        %v2054 = vpop.f32.mrb[0].mxu0
        %v2055 = vadd.f32 0.0, %v2054
        %v2056 = vpop.f32.mrb[0].mxu0
        %2057 = vmatprep.mubr.f32.mxu0 0.0
        %2058 = vmatmul.mubr.f32.gmra.mrb[0].mxu0 %v1877
        %v2059 = vpop.f32.mrb[0].mxu0
        %v2060 = vadd.f32 0.0, %v2059
        %v2061 = vpop.f32.mrb[0].mxu0
        %2062 = vmatprep.mubr.f32.mxu0 0.0
        %2063 = vmatmul.mubr.f32.gmra.mrb[0].mxu0 %v1880
        %v2064 = vpop.f32.mrb[0].mxu0
        %v2065 = vadd.f32 0.0, %v2064
        %v2066 = vpop.f32.mrb[0].mxu0
        %2067 = vmatprep.mubr.f32.mxu0 0.0
        %2068 = vmatmul.mubr.f32.gmra.mrb[0].mxu0 %v1883
        %v2069 = vpop.f32.mrb[0].mxu0
        %v2070 = vadd.f32 0.0, %v2069
        %v2071 = vpop.f32.mrb[0].mxu0
        %2072 = vmatprep.mubr.f32.mxu0 0.0
        %2073 = vmatmul.mubr.f32.gmra.mrb[0].mxu0 %v1886
        %v2074 = vpop.f32.mrb[0].mxu0
        %v2075 = vadd.f32 0.0, %v2074
        %v2076 = vpop.f32.mrb[0].mxu0
        %2077 = vmatprep.mubr.f32.mxu0 0.0
        %2078 = vmatmul.mubr.f32.gmra.mrb[0].mxu0 %v1889
        %v2079 = vpop.f32.mrb[0].mxu0
        %v2080 = vadd.f32 0.0, %v2079
        %v2081 = vpop.f32.mrb[0].mxu0
        %2082 = vmatprep.mubr.f32.mxu0 0.0
        %2083 = vmatmul.mubr.f32.gmra.mrb[0].mxu0 %v1892
        %v2084 = vpop.f32.mrb[0].mxu0
        %v2085 = vadd.f32 0.0, %v2084
        %v2086 = vpop.f32.mrb[0].mxu0
        %2087 = vmatprep.mubr.f32.mxu0 0.0
        %2088 = vmatmul.mubr.f32.gmra.mrb[0].mxu0 %v1895
        %v2089 = vpop.f32.mrb[0].mxu0
        %v2090 = vadd.f32 0.0, %v2089
        %v2091 = vpop.f32.mrb[0].mxu0
        %2092 = vmatprep.mubr.f32.mxu0 0.0
        %2093 = vmatmul.mubr.f32.gmra.mrb[0].mxu0 %v1898
        %v2094 = vpop.f32.mrb[0].mxu0
        %v2095 = vadd.f32 0.0, %v2094
        %v2096 = vpop.f32.mrb[0].mxu0
        %2097 = vmatprep.mubr.f32.mxu0 0.0
        %2098 = vmatmul.mubr.f32.gmra.mrb[0].mxu0 %v1901
        %v2099 = vpop.f32.mrb[0].mxu0
        %v2100 = vadd.f32 0.0, %v2099
        %v2101 = vpop.f32.mrb[0].mxu0
        %2102 = vmatprep.mubr.f32.mxu0 0.0
        %2103 = vmatmul.mubr.f32.gmra.mrb[0].mxu0 %v1904
        %v2104 = vpop.f32.mrb[0].mxu0
        %v2105 = vadd.f32 0.0, %v2104
        %v2106 = vpop.f32.mrb[0].mxu0
        %2107 = vmatprep.mubr.f32.mxu0 0.0
        %2108 = vmatmul.mubr.f32.gmra.mrb[0].mxu0 %v1907
        %v2109 = vpop.f32.mrb[0].mxu0
        %v2110 = vadd.f32 0.0, %v2109
        %v2111 = vpop.f32.mrb[0].mxu0
        %2112 = vmatprep.mubr.f32.mxu0 0.0
        %2113 = vmatmul.mubr.f32.gmra.mrb[0].mxu0 %v1910
        %v2114 = vpop.f32.mrb[0].mxu0
        %v2115 = vadd.f32 0.0, %v2114
        %v2116 = vpop.f32.mrb[0].mxu0
        %2117 = vmatprep.mubr.f32.mxu0 0.0
        %2118 = vmatmul.mubr.f32.gmra.mrb[0].mxu0 %v1913
        %v2119 = vpop.f32.mrb[0].mxu0
        %v2120 = vadd.f32 0.0, %v2119
        %v2121 = vpop.f32.mrb[0].mxu0
        %2122 = vmatprep.mubr.f32.mxu0 0.0
        %2123 = vmatmul.mubr.f32.gmra.mrb[0].mxu0 %v1916
        %v2124 = vpop.f32.mrb[0].mxu0
        %v2125 = vadd.f32 0.0, %v2124
        %v2126 = vpop.f32.mrb[0].mxu0
        %2127 = vmatprep.mubr.f32.mxu0 0.0
        %2128 = vmatmul.mubr.f32.gmra.mrb[0].mxu0 %v1919
        %v2129 = vpop.f32.mrb[0].mxu0
        %v2130 = vadd.f32 0.0, %v2129
        %v2131 = vpop.f32.mrb[0].mxu0
        %2132 = vmatprep.mubr.f32.mxu0 0.0
        %2133 = vmatmul.mubr.f32.gmra.mrb[0].mxu0 %v1922
        %v2134 = vpop.f32.mrb[0].mxu0
        %v2135 = vadd.f32 0.0, %v2134
        %v2136 = vpop.f32.mrb[0].mxu0
        %2137 = vmatprep.mubr.f32.mxu0 0.0
        %2138 = vmatmul.mubr.f32.gmra.mrb[0].mxu0 %v1925
        %v2139 = vpop.f32.mrb[0].mxu0
        %v2140 = vadd.f32 0.0, %v2139
        %v2141 = vpop.f32.mrb[0].mxu0
        %2142 = vmatprep.mubr.f32.mxu0 0.0
        %2143 = vmatmul.mubr.f32.gmra.mrb[0].mxu0 %v1928
        %v2144 = vpop.f32.mrb[0].mxu0
        %v2145 = vadd.f32 0.0, %v2144
        %v2146 = vpop.f32.mrb[0].mxu0
        %2147 = vmatprep.mubr.f32.mxu0 0.0
        %2148 = vmatmul.mubr.f32.gmra.mrb[0].mxu0 %v1931
        %v2149 = vpop.f32.mrb[0].mxu0
        %v2150 = vadd.f32 0.0, %v2149
        %v2151 = vpop.f32.mrb[0].mxu0
        %2152 = vmatprep.mubr.f32.mxu0 0.0
        %2153 = vmatmul.mubr.f32.gmra.mrb[0].mxu0 %v1934
        %v2154 = vpop.f32.mrb[0].mxu0
        %v2155 = vadd.f32 0.0, %v2154
        %v2156 = vpop.f32.mrb[0].mxu0
        %2157 = vmatprep.mubr.f32.mxu0 0.0
        %2158 = vmatmul.mubr.f32.gmra.mrb[0].mxu0 %v1937
        %v2159 = vpop.f32.mrb[0].mxu0
        %v2160 = vadd.f32 0.0, %v2159
        %v2161 = vpop.f32.mrb[0].mxu0
        %2162 = vmatprep.mubr.f32.mxu0 0.0
        %2163 = vmatmul.mubr.f32.gmra.mrb[0].mxu0 %v1940
        %v2164 = vpop.f32.mrb[0].mxu0
        %v2165 = vadd.f32 0.0, %v2164
        %v2166 = vpop.f32.mrb[0].mxu0
        %2167 = vmatprep.mubr.f32.mxu0 0.0
        %2168 = vmatmul.mubr.f32.gmra.mrb[0].mxu0 %v1943
        %v2169 = vpop.f32.mrb[0].mxu0
        %v2170 = vadd.f32 0.0, %v2169
        %v2171 = vpop.f32.mrb[0].mxu0
        %2172 = vdwg.mxu0
        %v2173 = vld [vmem:[#allocation3] sm:$0xff]
        %v2174 = vld [vmem:[#allocation3 + $0x8] sm:$0xff]
        %v2175 = vld [vmem:[#allocation3 + $0x10] sm:$0xff]
        %v2176 = vld [vmem:[#allocation3 + $0x18] sm:$0xff]
        %v2177 = vld [vmem:[#allocation3 + $0x20] sm:$0xff]
        %v2178 = vld [vmem:[#allocation3 + $0x28] sm:$0xff]
        %v2179 = vld [vmem:[#allocation3 + $0x30] sm:$0xff]
        %v2180 = vld [vmem:[#allocation3 + $0x38] sm:$0xff]
        %v2181 = vld [vmem:[#allocation3 + $0x40] sm:$0xff]
        %v2182 = vld [vmem:[#allocation3 + $0x48] sm:$0xff]
        %v2183 = vld [vmem:[#allocation3 + $0x50] sm:$0xff]
        %v2184 = vld [vmem:[#allocation3 + $0x58] sm:$0xff]
        %v2185 = vld [vmem:[#allocation3 + $0x60] sm:$0xff]
        %v2186 = vld [vmem:[#allocation3 + $0x68] sm:$0xff]
        %v2187 = vld [vmem:[#allocation3 + $0x70] sm:$0xff]
        %v2188 = vld [vmem:[#allocation3 + $0x78] sm:$0xff]
        %v2189 = vld [vmem:[#allocation3 + $0x80] sm:$0xff]
        %v2190 = vld [vmem:[#allocation3 + $0x88] sm:$0xff]
        %v2191 = vld [vmem:[#allocation3 + $0x90] sm:$0xff]
        %v2192 = vld [vmem:[#allocation3 + $0x98] sm:$0xff]
        %v2193 = vld [vmem:[#allocation3 + $0xa0] sm:$0xff]
        %v2194 = vld [vmem:[#allocation3 + $0xa8] sm:$0xff]
        %v2195 = vld [vmem:[#allocation3 + $0xb0] sm:$0xff]
        %v2196 = vld [vmem:[#allocation3 + $0xb8] sm:$0xff]
        %v2197 = vld [vmem:[#allocation3 + $0xc0] sm:$0xff]
        %v2198 = vld [vmem:[#allocation3 + $0xc8] sm:$0xff]
        %v2199 = vld [vmem:[#allocation3 + $0xd0] sm:$0xff]
        %v2200 = vld [vmem:[#allocation3 + $0xd8] sm:$0xff]
        %v2201 = vld [vmem:[#allocation3 + $0xe0] sm:$0xff]
        %v2202 = vld [vmem:[#allocation3 + $0xe8] sm:$0xff]
        %v2203 = vld [vmem:[#allocation3 + $0xf0] sm:$0xff]
        %v2204 = vld [vmem:[#allocation3 + $0xf8] sm:$0xff]
        %v2205 = vadd.f32 %v2173, %v2015
        %v2206 = vadd.f32 %v2174, %v2020
        %v2207 = vadd.f32 %v2175, %v2025
        %v2208 = vadd.f32 %v2176, %v2030
        %v2209 = vadd.f32 %v2177, %v2035
        %v2210 = vadd.f32 %v2178, %v2040
        %v2211 = vadd.f32 %v2179, %v2045
        %v2212 = vadd.f32 %v2180, %v2050
        %v2213 = vadd.f32 %v2181, %v2055
        %v2214 = vadd.f32 %v2182, %v2060
        %v2215 = vadd.f32 %v2183, %v2065
        %v2216 = vadd.f32 %v2184, %v2070
        %v2217 = vadd.f32 %v2185, %v2075
        %v2218 = vadd.f32 %v2186, %v2080
        %v2219 = vadd.f32 %v2187, %v2085
        %v2220 = vadd.f32 %v2188, %v2090
        %v2221 = vadd.f32 %v2189, %v2095
        %v2222 = vadd.f32 %v2190, %v2100
        %v2223 = vadd.f32 %v2191, %v2105
        %v2224 = vadd.f32 %v2192, %v2110
        %v2225 = vadd.f32 %v2193, %v2115
        %v2226 = vadd.f32 %v2194, %v2120
        %v2227 = vadd.f32 %v2195, %v2125
        %v2228 = vadd.f32 %v2196, %v2130
        %v2229 = vadd.f32 %v2197, %v2135
        %v2230 = vadd.f32 %v2198, %v2140
        %v2231 = vadd.f32 %v2199, %v2145
        %v2232 = vadd.f32 %v2200, %v2150
        %v2233 = vadd.f32 %v2201, %v2155
        %v2234 = vadd.f32 %v2202, %v2160
        %v2235 = vadd.f32 %v2203, %v2165
        %v2236 = vadd.f32 %v2204, %v2170
        %2237 = vst.msk [vmem:[#allocation3] sm:$0xff] %vm874, %v2205
        %2238 = vst.msk [vmem:[#allocation3 + $0x8] sm:$0xff] %vm874, %v2206
        %2239 = vst.msk [vmem:[#allocation3 + $0x10] sm:$0xff] %vm874, %v2207
        %2240 = vst.msk [vmem:[#allocation3 + $0x18] sm:$0xff] %vm874, %v2208
        %2241 = vst.msk [vmem:[#allocation3 + $0x20] sm:$0xff] %vm874, %v2209
        %2242 = vst.msk [vmem:[#allocation3 + $0x28] sm:$0xff] %vm874, %v2210
        %2243 = vst.msk [vmem:[#allocation3 + $0x30] sm:$0xff] %vm874, %v2211
        %2244 = vst.msk [vmem:[#allocation3 + $0x38] sm:$0xff] %vm874, %v2212
        %2245 = vst.msk [vmem:[#allocation3 + $0x40] sm:$0xff] %vm874, %v2213
        %2246 = vst.msk [vmem:[#allocation3 + $0x48] sm:$0xff] %vm874, %v2214
        %2247 = vst.msk [vmem:[#allocation3 + $0x50] sm:$0xff] %vm874, %v2215
        %2248 = vst.msk [vmem:[#allocation3 + $0x58] sm:$0xff] %vm874, %v2216
        %2249 = vst.msk [vmem:[#allocation3 + $0x60] sm:$0xff] %vm874, %v2217
        %2250 = vst.msk [vmem:[#allocation3 + $0x68] sm:$0xff] %vm874, %v2218
        %2251 = vst.msk [vmem:[#allocation3 + $0x70] sm:$0xff] %vm874, %v2219
        %2252 = vst.msk [vmem:[#allocation3 + $0x78] sm:$0xff] %vm874, %v2220
        %2253 = vst.msk [vmem:[#allocation3 + $0x80] sm:$0xff] %vm874, %v2221
        %2254 = vst.msk [vmem:[#allocation3 + $0x88] sm:$0xff] %vm874, %v2222
        %2255 = vst.msk [vmem:[#allocation3 + $0x90] sm:$0xff] %vm874, %v2223
        %2256 = vst.msk [vmem:[#allocation3 + $0x98] sm:$0xff] %vm874, %v2224
        %2257 = vst.msk [vmem:[#allocation3 + $0xa0] sm:$0xff] %vm874, %v2225
        %2258 = vst.msk [vmem:[#allocation3 + $0xa8] sm:$0xff] %vm874, %v2226
        %2259 = vst.msk [vmem:[#allocation3 + $0xb0] sm:$0xff] %vm874, %v2227
        %2260 = vst.msk [vmem:[#allocation3 + $0xb8] sm:$0xff] %vm874, %v2228
        %2261 = vst.msk [vmem:[#allocation3 + $0xc0] sm:$0xff] %vm874, %v2229
        %2262 = vst.msk [vmem:[#allocation3 + $0xc8] sm:$0xff] %vm874, %v2230
        %2263 = vst.msk [vmem:[#allocation3 + $0xd0] sm:$0xff] %vm874, %v2231
        %2264 = vst.msk [vmem:[#allocation3 + $0xd8] sm:$0xff] %vm874, %v2232
        %2265 = vst.msk [vmem:[#allocation3 + $0xe0] sm:$0xff] %vm874, %v2233
        %2266 = vst.msk [vmem:[#allocation3 + $0xe8] sm:$0xff] %vm874, %v2234
        %2267 = vst.msk [vmem:[#allocation3 + $0xf0] sm:$0xff] %vm874, %v2235
        %2268 = vst.msk [vmem:[#allocation3 + $0xf8] sm:$0xff] %vm874, %v2236
        %v2269 = vld [vmem:[%s483 + $0x1] sm:$0xff]
        %v2270 = vld [vmem:[%s483 + $0x9] sm:$0xff]
        %v2271 = vld [vmem:[%s483 + $0x19] sm:$0xff]
        %v2272 = vld [vmem:[%s483 + $0x21] sm:$0xff]
        %v2273 = vld [vmem:[%s483 + $0x31] sm:$0xff]
        %v2274 = vld [vmem:[%s483 + $0x39] sm:$0xff]
        %v2275 = vld [vmem:[%s483 + $0x49] sm:$0xff]
        %v2276 = vld [vmem:[%s483 + $0x51] sm:$0xff]
        %v2277 = vld [vmem:[%s483 + $0x61] sm:$0xff]
        %v2278 = vld [vmem:[%s483 + $0x69] sm:$0xff]
        %v2279 = vld [vmem:[%s483 + $0x79] sm:$0xff]
        %v2280 = vld [vmem:[%s483 + $0x81] sm:$0xff]
        %v2281 = vld [vmem:[%s483 + $0x91] sm:$0xff]
        %v2282 = vld [vmem:[%s483 + $0x99] sm:$0xff]
        %v2283 = vld [vmem:[%s483 + $0xa9] sm:$0xff]
        %v2284 = vld [vmem:[%s483 + $0xb1] sm:$0xff]
        %v2285 = vld [vmem:[%s483 + $0xc1] sm:$0xff]
        %v2286 = vld [vmem:[%s483 + $0xc9] sm:$0xff]
        %v2287 = vld [vmem:[%s483 + $0xd9] sm:$0xff]
        %v2288 = vld [vmem:[%s483 + $0xe1] sm:$0xff]
        %v2289 = vld [vmem:[%s483 + $0xf1] sm:$0xff]
        %v2290 = vld [vmem:[%s483 + $0xf9] sm:$0xff]
        %v2291 = vld [vmem:[%s483 + $0x109] sm:$0xff]
        %v2292 = vld [vmem:[%s483 + $0x111] sm:$0xff]
        %v2293 = vld [vmem:[%s483 + $0x121] sm:$0xff]
        %v2294 = vld [vmem:[%s483 + $0x129] sm:$0xff]
        %v2295 = vld [vmem:[%s483 + $0x139] sm:$0xff]
        %v2296 = vld [vmem:[%s483 + $0x141] sm:$0xff]
        %v2297 = vld [vmem:[%s483 + $0x151] sm:$0xff]
        %v2298 = vld [vmem:[%s483 + $0x159] sm:$0xff]
        %v2299 = vld [vmem:[%s483 + $0x169] sm:$0xff]
        %v2300 = vld [vmem:[%s483 + $0x171] sm:$0xff]
        %s2301 = scalar_lea.vmem [#allocation10], 16
        %v2302 = vld [vmem:[%s2301] sm:$0xf]
        %v2304 = vsel %vm295, %v2269, 0
        %v2307 = vsel %vm295, %v2270, 0
        %v2310 = vsel %vm295, %v2271, 0
        %v2313 = vsel %vm295, %v2272, 0
        %v2316 = vsel %vm295, %v2273, 0
        %v2319 = vsel %vm295, %v2274, 0
        %v2322 = vsel %vm295, %v2275, 0
        %v2325 = vsel %vm295, %v2276, 0
        %v2328 = vsel %vm295, %v2277, 0
        %v2331 = vsel %vm295, %v2278, 0
        %v2334 = vsel %vm295, %v2279, 0
        %v2337 = vsel %vm295, %v2280, 0
        %v2340 = vsel %vm295, %v2281, 0
        %v2343 = vsel %vm295, %v2282, 0
        %v2346 = vsel %vm295, %v2283, 0
        %v2349 = vsel %vm295, %v2284, 0
        %v2352 = vsel %vm295, %v2285, 0
        %v2355 = vsel %vm295, %v2286, 0
        %v2358 = vsel %vm295, %v2287, 0
        %v2361 = vsel %vm295, %v2288, 0
        %v2364 = vsel %vm295, %v2289, 0
        %v2367 = vsel %vm295, %v2290, 0
        %v2370 = vsel %vm295, %v2291, 0
        %v2373 = vsel %vm295, %v2292, 0
        %v2376 = vsel %vm295, %v2293, 0
        %v2379 = vsel %vm295, %v2294, 0
        %v2382 = vsel %vm295, %v2295, 0
        %v2385 = vsel %vm295, %v2296, 0
        %v2388 = vsel %vm295, %v2297, 0
        %v2391 = vsel %vm295, %v2298, 0
        %v2394 = vsel %vm295, %v2299, 0
        %v2397 = vsel %vm295, %v2300, 0
        %v2400 = vsel %vm645, %v2302, 0
        %2402 = vmatprep.subr.mxu0 0.0
        %2403 = vmatpush1.msra.mxu0 %v2400
        %2404 = vmatprep.subr.mxu0 0.0
        %2405 = vmatpush1.msra.mxu0 0.0
        %2406 = vmatprep.subr.mxu0 0.0
        %2407 = vmatpush1.msra.mxu0 0.0
        %2408 = vmatprep.subr.mxu0 0.0
        %2409 = vmatpush1.msra.mxu0 0.0
        %2410 = vmatprep.subr.mxu0 0.0
        %2411 = vmatpush1.msra.mxu0 0.0
        %2412 = vmatprep.subr.mxu0 0.0
        %2413 = vmatpush1.msra.mxu0 0.0
        %2414 = vmatprep.subr.mxu0 0.0
        %2415 = vmatpush1.msra.mxu0 0.0
        %2416 = vmatprep.subr.mxu0 0.0
        %2417 = vmatpush1.msra.mxu0 0.0
        %2418 = vmatprep.subr.mxu0 0.0
        %2419 = vmatpush1.msra.mxu0 0.0
        %2420 = vmatprep.subr.mxu0 0.0
        %2421 = vmatpush1.msra.mxu0 0.0
        %2422 = vmatprep.subr.mxu0 0.0
        %2423 = vmatpush1.msra.mxu0 0.0
        %2424 = vmatprep.subr.mxu0 0.0
        %2425 = vmatpush1.msra.mxu0 0.0
        %2426 = vmatprep.subr.mxu0 0.0
        %2427 = vmatpush1.msra.mxu0 0.0
        %2428 = vmatprep.subr.mxu0 0.0
        %2429 = vmatpush1.msra.mxu0 0.0
        %2430 = vmatprep.subr.mxu0 0.0
        %2431 = vmatpush1.msra.mxu0 0.0
        %2432 = vmatprep.subr.mxu0 0.0
        %2433 = vmatpush1.msra.mxu0 0.0
        %2434 = vmatprep.subr.mxu0 0.0
        %2435 = vmatpush1.msra.mxu0 0.0
        %2436 = vmatprep.subr.mxu0 0.0
        %2437 = vmatpush1.msra.mxu0 0.0
        %2438 = vmatprep.subr.mxu0 0.0
        %2439 = vmatpush1.msra.mxu0 0.0
        %2440 = vmatprep.subr.mxu0 0.0
        %2441 = vmatpush1.msra.mxu0 0.0
        %2442 = vmatprep.subr.mxu0 0.0
        %2443 = vmatpush1.msra.mxu0 0.0
        %2444 = vmatprep.subr.mxu0 0.0
        %2445 = vmatpush1.msra.mxu0 0.0
        %2446 = vmatprep.subr.mxu0 0.0
        %2447 = vmatpush1.msra.mxu0 0.0
        %2448 = vmatprep.subr.mxu0 0.0
        %2449 = vmatpush1.msra.mxu0 0.0
        %2450 = vmatprep.subr.mxu0 0.0
        %2451 = vmatpush1.msra.mxu0 0.0
        %2452 = vmatprep.subr.mxu0 0.0
        %2453 = vmatpush1.msra.mxu0 0.0
        %2454 = vmatprep.subr.mxu0 0.0
        %2455 = vmatpush1.msra.mxu0 0.0
        %2456 = vmatprep.subr.mxu0 0.0
        %2457 = vmatpush1.msra.mxu0 0.0
        %2458 = vmatprep.subr.mxu0 0.0
        %2459 = vmatpush1.msra.mxu0 0.0
        %2460 = vmatprep.subr.mxu0 0.0
        %2461 = vmatpush1.msra.mxu0 0.0
        %2462 = vmatprep.subr.mxu0 0.0
        %2463 = vmatpush1.msra.mxu0 0.0
        %2464 = vmatprep.subr.mxu0 0.0
        %2465 = vmatpush1.msra.mxu0 0.0
        %2466 = vmatprep.mubr.f32.mxu0 0.0
        %2467 = vmatmul.mubr.f32.gmra.mrb[0].mxu0 %v2304
        %v2468 = vpop.f32.mrb[0].mxu0
        %v2469 = vadd.f32 0.0, %v2468
        %v2470 = vpop.f32.mrb[0].mxu0
        %2471 = vmatprep.mubr.f32.mxu0 0.0
        %2472 = vmatmul.mubr.f32.gmra.mrb[0].mxu0 %v2307
        %v2473 = vpop.f32.mrb[0].mxu0
        %v2474 = vadd.f32 0.0, %v2473
        %v2475 = vpop.f32.mrb[0].mxu0
        %2476 = vmatprep.mubr.f32.mxu0 0.0
        %2477 = vmatmul.mubr.f32.gmra.mrb[0].mxu0 %v2310
        %v2478 = vpop.f32.mrb[0].mxu0
        %v2479 = vadd.f32 0.0, %v2478
        %v2480 = vpop.f32.mrb[0].mxu0
        %2481 = vmatprep.mubr.f32.mxu0 0.0
        %2482 = vmatmul.mubr.f32.gmra.mrb[0].mxu0 %v2313
        %v2483 = vpop.f32.mrb[0].mxu0
        %v2484 = vadd.f32 0.0, %v2483
        %v2485 = vpop.f32.mrb[0].mxu0
        %2486 = vmatprep.mubr.f32.mxu0 0.0
        %2487 = vmatmul.mubr.f32.gmra.mrb[0].mxu0 %v2316
        %v2488 = vpop.f32.mrb[0].mxu0
        %v2489 = vadd.f32 0.0, %v2488
        %v2490 = vpop.f32.mrb[0].mxu0
        %2491 = vmatprep.mubr.f32.mxu0 0.0
        %2492 = vmatmul.mubr.f32.gmra.mrb[0].mxu0 %v2319
        %v2493 = vpop.f32.mrb[0].mxu0
        %v2494 = vadd.f32 0.0, %v2493
        %v2495 = vpop.f32.mrb[0].mxu0
        %2496 = vmatprep.mubr.f32.mxu0 0.0
        %2497 = vmatmul.mubr.f32.gmra.mrb[0].mxu0 %v2322
        %v2498 = vpop.f32.mrb[0].mxu0
        %v2499 = vadd.f32 0.0, %v2498
        %v2500 = vpop.f32.mrb[0].mxu0
        %2501 = vmatprep.mubr.f32.mxu0 0.0
        %2502 = vmatmul.mubr.f32.gmra.mrb[0].mxu0 %v2325
        %v2503 = vpop.f32.mrb[0].mxu0
        %v2504 = vadd.f32 0.0, %v2503
        %v2505 = vpop.f32.mrb[0].mxu0
        %2506 = vmatprep.mubr.f32.mxu0 0.0
        %2507 = vmatmul.mubr.f32.gmra.mrb[0].mxu0 %v2328
        %v2508 = vpop.f32.mrb[0].mxu0
        %v2509 = vadd.f32 0.0, %v2508
        %v2510 = vpop.f32.mrb[0].mxu0
        %2511 = vmatprep.mubr.f32.mxu0 0.0
        %2512 = vmatmul.mubr.f32.gmra.mrb[0].mxu0 %v2331
        %v2513 = vpop.f32.mrb[0].mxu0
        %v2514 = vadd.f32 0.0, %v2513
        %v2515 = vpop.f32.mrb[0].mxu0
        %2516 = vmatprep.mubr.f32.mxu0 0.0
        %2517 = vmatmul.mubr.f32.gmra.mrb[0].mxu0 %v2334
        %v2518 = vpop.f32.mrb[0].mxu0
        %v2519 = vadd.f32 0.0, %v2518
        %v2520 = vpop.f32.mrb[0].mxu0
        %2521 = vmatprep.mubr.f32.mxu0 0.0
        %2522 = vmatmul.mubr.f32.gmra.mrb[0].mxu0 %v2337
        %v2523 = vpop.f32.mrb[0].mxu0
        %v2524 = vadd.f32 0.0, %v2523
        %v2525 = vpop.f32.mrb[0].mxu0
        %2526 = vmatprep.mubr.f32.mxu0 0.0
        %2527 = vmatmul.mubr.f32.gmra.mrb[0].mxu0 %v2340
        %v2528 = vpop.f32.mrb[0].mxu0
        %v2529 = vadd.f32 0.0, %v2528
        %v2530 = vpop.f32.mrb[0].mxu0
        %2531 = vmatprep.mubr.f32.mxu0 0.0
        %2532 = vmatmul.mubr.f32.gmra.mrb[0].mxu0 %v2343
        %v2533 = vpop.f32.mrb[0].mxu0
        %v2534 = vadd.f32 0.0, %v2533
        %v2535 = vpop.f32.mrb[0].mxu0
        %2536 = vmatprep.mubr.f32.mxu0 0.0
        %2537 = vmatmul.mubr.f32.gmra.mrb[0].mxu0 %v2346
        %v2538 = vpop.f32.mrb[0].mxu0
        %v2539 = vadd.f32 0.0, %v2538
        %v2540 = vpop.f32.mrb[0].mxu0
        %2541 = vmatprep.mubr.f32.mxu0 0.0
        %2542 = vmatmul.mubr.f32.gmra.mrb[0].mxu0 %v2349
        %v2543 = vpop.f32.mrb[0].mxu0
        %v2544 = vadd.f32 0.0, %v2543
        %v2545 = vpop.f32.mrb[0].mxu0
        %2546 = vmatprep.mubr.f32.mxu0 0.0
        %2547 = vmatmul.mubr.f32.gmra.mrb[0].mxu0 %v2352
        %v2548 = vpop.f32.mrb[0].mxu0
        %v2549 = vadd.f32 0.0, %v2548
        %v2550 = vpop.f32.mrb[0].mxu0
        %2551 = vmatprep.mubr.f32.mxu0 0.0
        %2552 = vmatmul.mubr.f32.gmra.mrb[0].mxu0 %v2355
        %v2553 = vpop.f32.mrb[0].mxu0
        %v2554 = vadd.f32 0.0, %v2553
        %v2555 = vpop.f32.mrb[0].mxu0
        %2556 = vmatprep.mubr.f32.mxu0 0.0
        %2557 = vmatmul.mubr.f32.gmra.mrb[0].mxu0 %v2358
        %v2558 = vpop.f32.mrb[0].mxu0
        %v2559 = vadd.f32 0.0, %v2558
        %v2560 = vpop.f32.mrb[0].mxu0
        %2561 = vmatprep.mubr.f32.mxu0 0.0
        %2562 = vmatmul.mubr.f32.gmra.mrb[0].mxu0 %v2361
        %v2563 = vpop.f32.mrb[0].mxu0
        %v2564 = vadd.f32 0.0, %v2563
        %v2565 = vpop.f32.mrb[0].mxu0
        %2566 = vmatprep.mubr.f32.mxu0 0.0
        %2567 = vmatmul.mubr.f32.gmra.mrb[0].mxu0 %v2364
        %v2568 = vpop.f32.mrb[0].mxu0
        %v2569 = vadd.f32 0.0, %v2568
        %v2570 = vpop.f32.mrb[0].mxu0
        %2571 = vmatprep.mubr.f32.mxu0 0.0
        %2572 = vmatmul.mubr.f32.gmra.mrb[0].mxu0 %v2367
        %v2573 = vpop.f32.mrb[0].mxu0
        %v2574 = vadd.f32 0.0, %v2573
        %v2575 = vpop.f32.mrb[0].mxu0
        %2576 = vmatprep.mubr.f32.mxu0 0.0
        %2577 = vmatmul.mubr.f32.gmra.mrb[0].mxu0 %v2370
        %v2578 = vpop.f32.mrb[0].mxu0
        %v2579 = vadd.f32 0.0, %v2578
        %v2580 = vpop.f32.mrb[0].mxu0
        %2581 = vmatprep.mubr.f32.mxu0 0.0
        %2582 = vmatmul.mubr.f32.gmra.mrb[0].mxu0 %v2373
        %v2583 = vpop.f32.mrb[0].mxu0
        %v2584 = vadd.f32 0.0, %v2583
        %v2585 = vpop.f32.mrb[0].mxu0
        %2586 = vmatprep.mubr.f32.mxu0 0.0
        %2587 = vmatmul.mubr.f32.gmra.mrb[0].mxu0 %v2376
        %v2588 = vpop.f32.mrb[0].mxu0
        %v2589 = vadd.f32 0.0, %v2588
        %v2590 = vpop.f32.mrb[0].mxu0
        %2591 = vmatprep.mubr.f32.mxu0 0.0
        %2592 = vmatmul.mubr.f32.gmra.mrb[0].mxu0 %v2379
        %v2593 = vpop.f32.mrb[0].mxu0
        %v2594 = vadd.f32 0.0, %v2593
        %v2595 = vpop.f32.mrb[0].mxu0
        %2596 = vmatprep.mubr.f32.mxu0 0.0
        %2597 = vmatmul.mubr.f32.gmra.mrb[0].mxu0 %v2382
        %v2598 = vpop.f32.mrb[0].mxu0
        %v2599 = vadd.f32 0.0, %v2598
        %v2600 = vpop.f32.mrb[0].mxu0
        %2601 = vmatprep.mubr.f32.mxu0 0.0
        %2602 = vmatmul.mubr.f32.gmra.mrb[0].mxu0 %v2385
        %v2603 = vpop.f32.mrb[0].mxu0
        %v2604 = vadd.f32 0.0, %v2603
        %v2605 = vpop.f32.mrb[0].mxu0
        %2606 = vmatprep.mubr.f32.mxu0 0.0
        %2607 = vmatmul.mubr.f32.gmra.mrb[0].mxu0 %v2388
        %v2608 = vpop.f32.mrb[0].mxu0
        %v2609 = vadd.f32 0.0, %v2608
        %v2610 = vpop.f32.mrb[0].mxu0
        %2611 = vmatprep.mubr.f32.mxu0 0.0
        %2612 = vmatmul.mubr.f32.gmra.mrb[0].mxu0 %v2391
        %v2613 = vpop.f32.mrb[0].mxu0
        %v2614 = vadd.f32 0.0, %v2613
        %v2615 = vpop.f32.mrb[0].mxu0
        %2616 = vmatprep.mubr.f32.mxu0 0.0
        %2617 = vmatmul.mubr.f32.gmra.mrb[0].mxu0 %v2394
        %v2618 = vpop.f32.mrb[0].mxu0
        %v2619 = vadd.f32 0.0, %v2618
        %v2620 = vpop.f32.mrb[0].mxu0
        %2621 = vmatprep.mubr.f32.mxu0 0.0
        %2622 = vmatmul.mubr.f32.gmra.mrb[0].mxu0 %v2397
        %v2623 = vpop.f32.mrb[0].mxu0
        %v2624 = vadd.f32 0.0, %v2623
        %v2625 = vpop.f32.mrb[0].mxu0
        %2626 = vdwg.mxu0
        %v2627 = vld [vmem:[#allocation3] sm:$0xff]
        %v2628 = vld [vmem:[#allocation3 + $0x8] sm:$0xff]
        %v2629 = vld [vmem:[#allocation3 + $0x10] sm:$0xff]
        %v2630 = vld [vmem:[#allocation3 + $0x18] sm:$0xff]
        %v2631 = vld [vmem:[#allocation3 + $0x20] sm:$0xff]
        %v2632 = vld [vmem:[#allocation3 + $0x28] sm:$0xff]
        %v2633 = vld [vmem:[#allocation3 + $0x30] sm:$0xff]
        %v2634 = vld [vmem:[#allocation3 + $0x38] sm:$0xff]
        %v2635 = vld [vmem:[#allocation3 + $0x40] sm:$0xff]
        %v2636 = vld [vmem:[#allocation3 + $0x48] sm:$0xff]
        %v2637 = vld [vmem:[#allocation3 + $0x50] sm:$0xff]
        %v2638 = vld [vmem:[#allocation3 + $0x58] sm:$0xff]
        %v2639 = vld [vmem:[#allocation3 + $0x60] sm:$0xff]
        %v2640 = vld [vmem:[#allocation3 + $0x68] sm:$0xff]
        %v2641 = vld [vmem:[#allocation3 + $0x70] sm:$0xff]
        %v2642 = vld [vmem:[#allocation3 + $0x78] sm:$0xff]
        %v2643 = vld [vmem:[#allocation3 + $0x80] sm:$0xff]
        %v2644 = vld [vmem:[#allocation3 + $0x88] sm:$0xff]
        %v2645 = vld [vmem:[#allocation3 + $0x90] sm:$0xff]
        %v2646 = vld [vmem:[#allocation3 + $0x98] sm:$0xff]
        %v2647 = vld [vmem:[#allocation3 + $0xa0] sm:$0xff]
        %v2648 = vld [vmem:[#allocation3 + $0xa8] sm:$0xff]
        %v2649 = vld [vmem:[#allocation3 + $0xb0] sm:$0xff]
        %v2650 = vld [vmem:[#allocation3 + $0xb8] sm:$0xff]
        %v2651 = vld [vmem:[#allocation3 + $0xc0] sm:$0xff]
        %v2652 = vld [vmem:[#allocation3 + $0xc8] sm:$0xff]
        %v2653 = vld [vmem:[#allocation3 + $0xd0] sm:$0xff]
        %v2654 = vld [vmem:[#allocation3 + $0xd8] sm:$0xff]
        %v2655 = vld [vmem:[#allocation3 + $0xe0] sm:$0xff]
        %v2656 = vld [vmem:[#allocation3 + $0xe8] sm:$0xff]
        %v2657 = vld [vmem:[#allocation3 + $0xf0] sm:$0xff]
        %v2658 = vld [vmem:[#allocation3 + $0xf8] sm:$0xff]
        %v2659 = vadd.f32 %v2627, %v2469
        %v2660 = vadd.f32 %v2628, %v2474
        %v2661 = vadd.f32 %v2629, %v2479
        %v2662 = vadd.f32 %v2630, %v2484
        %v2663 = vadd.f32 %v2631, %v2489
        %v2664 = vadd.f32 %v2632, %v2494
        %v2665 = vadd.f32 %v2633, %v2499
        %v2666 = vadd.f32 %v2634, %v2504
        %v2667 = vadd.f32 %v2635, %v2509
        %v2668 = vadd.f32 %v2636, %v2514
        %v2669 = vadd.f32 %v2637, %v2519
        %v2670 = vadd.f32 %v2638, %v2524
        %v2671 = vadd.f32 %v2639, %v2529
        %v2672 = vadd.f32 %v2640, %v2534
        %v2673 = vadd.f32 %v2641, %v2539
        %v2674 = vadd.f32 %v2642, %v2544
        %v2675 = vadd.f32 %v2643, %v2549
        %v2676 = vadd.f32 %v2644, %v2554
        %v2677 = vadd.f32 %v2645, %v2559
        %v2678 = vadd.f32 %v2646, %v2564
        %v2679 = vadd.f32 %v2647, %v2569
        %v2680 = vadd.f32 %v2648, %v2574
        %v2681 = vadd.f32 %v2649, %v2579
        %v2682 = vadd.f32 %v2650, %v2584
        %v2683 = vadd.f32 %v2651, %v2589
        %v2684 = vadd.f32 %v2652, %v2594
        %v2685 = vadd.f32 %v2653, %v2599
        %v2686 = vadd.f32 %v2654, %v2604
        %v2687 = vadd.f32 %v2655, %v2609
        %v2688 = vadd.f32 %v2656, %v2614
        %v2689 = vadd.f32 %v2657, %v2619
        %v2690 = vadd.f32 %v2658, %v2624
        %2691 = vst.msk [vmem:[#allocation3] sm:$0xff] %vm874, %v2659
        %2692 = vst.msk [vmem:[#allocation3 + $0x8] sm:$0xff] %vm874, %v2660
        %2693 = vst.msk [vmem:[#allocation3 + $0x10] sm:$0xff] %vm874, %v2661
        %2694 = vst.msk [vmem:[#allocation3 + $0x18] sm:$0xff] %vm874, %v2662
        %2695 = vst.msk [vmem:[#allocation3 + $0x20] sm:$0xff] %vm874, %v2663
        %2696 = vst.msk [vmem:[#allocation3 + $0x28] sm:$0xff] %vm874, %v2664
        %2697 = vst.msk [vmem:[#allocation3 + $0x30] sm:$0xff] %vm874, %v2665
        %2698 = vst.msk [vmem:[#allocation3 + $0x38] sm:$0xff] %vm874, %v2666
        %2699 = vst.msk [vmem:[#allocation3 + $0x40] sm:$0xff] %vm874, %v2667
        %2700 = vst.msk [vmem:[#allocation3 + $0x48] sm:$0xff] %vm874, %v2668
        %2701 = vst.msk [vmem:[#allocation3 + $0x50] sm:$0xff] %vm874, %v2669
        %2702 = vst.msk [vmem:[#allocation3 + $0x58] sm:$0xff] %vm874, %v2670
        %2703 = vst.msk [vmem:[#allocation3 + $0x60] sm:$0xff] %vm874, %v2671
        %2704 = vst.msk [vmem:[#allocation3 + $0x68] sm:$0xff] %vm874, %v2672
        %2705 = vst.msk [vmem:[#allocation3 + $0x70] sm:$0xff] %vm874, %v2673
        %2706 = vst.msk [vmem:[#allocation3 + $0x78] sm:$0xff] %vm874, %v2674
        %2707 = vst.msk [vmem:[#allocation3 + $0x80] sm:$0xff] %vm874, %v2675
        %2708 = vst.msk [vmem:[#allocation3 + $0x88] sm:$0xff] %vm874, %v2676
        %2709 = vst.msk [vmem:[#allocation3 + $0x90] sm:$0xff] %vm874, %v2677
        %2710 = vst.msk [vmem:[#allocation3 + $0x98] sm:$0xff] %vm874, %v2678
        %2711 = vst.msk [vmem:[#allocation3 + $0xa0] sm:$0xff] %vm874, %v2679
        %2712 = vst.msk [vmem:[#allocation3 + $0xa8] sm:$0xff] %vm874, %v2680
        %2713 = vst.msk [vmem:[#allocation3 + $0xb0] sm:$0xff] %vm874, %v2681
        %2714 = vst.msk [vmem:[#allocation3 + $0xb8] sm:$0xff] %vm874, %v2682
        %2715 = vst.msk [vmem:[#allocation3 + $0xc0] sm:$0xff] %vm874, %v2683
        %2716 = vst.msk [vmem:[#allocation3 + $0xc8] sm:$0xff] %vm874, %v2684
        %2717 = vst.msk [vmem:[#allocation3 + $0xd0] sm:$0xff] %vm874, %v2685
        %2718 = vst.msk [vmem:[#allocation3 + $0xd8] sm:$0xff] %vm874, %v2686
        %2719 = vst.msk [vmem:[#allocation3 + $0xe0] sm:$0xff] %vm874, %v2687
        %2720 = vst.msk [vmem:[#allocation3 + $0xe8] sm:$0xff] %vm874, %v2688
        %2721 = vst.msk [vmem:[#allocation3 + $0xf0] sm:$0xff] %vm874, %v2689
        %2722 = vst.msk [vmem:[#allocation3 + $0xf8] sm:$0xff] %vm874, %v2690
        %v2723 = vld [vmem:[%s483 + $0x2] sm:$0xff]
        %v2724 = vld [vmem:[%s483 + $0xa] sm:$0xff]
        %v2725 = vld [vmem:[%s483 + $0x1a] sm:$0xff]
        %v2726 = vld [vmem:[%s483 + $0x22] sm:$0xff]
        %v2727 = vld [vmem:[%s483 + $0x32] sm:$0xff]
        %v2728 = vld [vmem:[%s483 + $0x3a] sm:$0xff]
        %v2729 = vld [vmem:[%s483 + $0x4a] sm:$0xff]
        %v2730 = vld [vmem:[%s483 + $0x52] sm:$0xff]
        %v2731 = vld [vmem:[%s483 + $0x62] sm:$0xff]
        %v2732 = vld [vmem:[%s483 + $0x6a] sm:$0xff]
        %v2733 = vld [vmem:[%s483 + $0x7a] sm:$0xff]
        %v2734 = vld [vmem:[%s483 + $0x82] sm:$0xff]
        %v2735 = vld [vmem:[%s483 + $0x92] sm:$0xff]
        %v2736 = vld [vmem:[%s483 + $0x9a] sm:$0xff]
        %v2737 = vld [vmem:[%s483 + $0xaa] sm:$0xff]
        %v2738 = vld [vmem:[%s483 + $0xb2] sm:$0xff]
        %v2739 = vld [vmem:[%s483 + $0xc2] sm:$0xff]
        %v2740 = vld [vmem:[%s483 + $0xca] sm:$0xff]
        %v2741 = vld [vmem:[%s483 + $0xda] sm:$0xff]
        %v2742 = vld [vmem:[%s483 + $0xe2] sm:$0xff]
        %v2743 = vld [vmem:[%s483 + $0xf2] sm:$0xff]
        %v2744 = vld [vmem:[%s483 + $0xfa] sm:$0xff]
        %v2745 = vld [vmem:[%s483 + $0x10a] sm:$0xff]
        %v2746 = vld [vmem:[%s483 + $0x112] sm:$0xff]
        %v2747 = vld [vmem:[%s483 + $0x122] sm:$0xff]
        %v2748 = vld [vmem:[%s483 + $0x12a] sm:$0xff]
        %v2749 = vld [vmem:[%s483 + $0x13a] sm:$0xff]
        %v2750 = vld [vmem:[%s483 + $0x142] sm:$0xff]
        %v2751 = vld [vmem:[%s483 + $0x152] sm:$0xff]
        %v2752 = vld [vmem:[%s483 + $0x15a] sm:$0xff]
        %v2753 = vld [vmem:[%s483 + $0x16a] sm:$0xff]
        %v2754 = vld [vmem:[%s483 + $0x172] sm:$0xff]
        %s2755 = scalar_lea.vmem [#allocation10], 20
        %v2756 = vld [vmem:[%s2755] sm:$0xf]
        %v2758 = vsel %vm295, %v2723, 0
        %v2761 = vsel %vm295, %v2724, 0
        %v2764 = vsel %vm295, %v2725, 0
        %v2767 = vsel %vm295, %v2726, 0
        %v2770 = vsel %vm295, %v2727, 0
        %v2773 = vsel %vm295, %v2728, 0
        %v2776 = vsel %vm295, %v2729, 0
        %v2779 = vsel %vm295, %v2730, 0
        %v2782 = vsel %vm295, %v2731, 0
        %v2785 = vsel %vm295, %v2732, 0
        %v2788 = vsel %vm295, %v2733, 0
        %v2791 = vsel %vm295, %v2734, 0
        %v2794 = vsel %vm295, %v2735, 0
        %v2797 = vsel %vm295, %v2736, 0
        %v2800 = vsel %vm295, %v2737, 0
        %v2803 = vsel %vm295, %v2738, 0
        %v2806 = vsel %vm295, %v2739, 0
        %v2809 = vsel %vm295, %v2740, 0
        %v2812 = vsel %vm295, %v2741, 0
        %v2815 = vsel %vm295, %v2742, 0
        %v2818 = vsel %vm295, %v2743, 0
        %v2821 = vsel %vm295, %v2744, 0
        %v2824 = vsel %vm295, %v2745, 0
        %v2827 = vsel %vm295, %v2746, 0
        %v2830 = vsel %vm295, %v2747, 0
        %v2833 = vsel %vm295, %v2748, 0
        %v2836 = vsel %vm295, %v2749, 0
        %v2839 = vsel %vm295, %v2750, 0
        %v2842 = vsel %vm295, %v2751, 0
        %v2845 = vsel %vm295, %v2752, 0
        %v2848 = vsel %vm295, %v2753, 0
        %v2851 = vsel %vm295, %v2754, 0
        %v2854 = vsel %vm645, %v2756, 0
        %2856 = vmatprep.subr.mxu0 0.0
        %2857 = vmatpush1.msra.mxu0 %v2854
        %2858 = vmatprep.subr.mxu0 0.0
        %2859 = vmatpush1.msra.mxu0 0.0
        %2860 = vmatprep.subr.mxu0 0.0
        %2861 = vmatpush1.msra.mxu0 0.0
        %2862 = vmatprep.subr.mxu0 0.0
        %2863 = vmatpush1.msra.mxu0 0.0
        %2864 = vmatprep.subr.mxu0 0.0
        %2865 = vmatpush1.msra.mxu0 0.0
        %2866 = vmatprep.subr.mxu0 0.0
        %2867 = vmatpush1.msra.mxu0 0.0
        %2868 = vmatprep.subr.mxu0 0.0
        %2869 = vmatpush1.msra.mxu0 0.0
        %2870 = vmatprep.subr.mxu0 0.0
        %2871 = vmatpush1.msra.mxu0 0.0
        %2872 = vmatprep.subr.mxu0 0.0
        %2873 = vmatpush1.msra.mxu0 0.0
        %2874 = vmatprep.subr.mxu0 0.0
        %2875 = vmatpush1.msra.mxu0 0.0
        %2876 = vmatprep.subr.mxu0 0.0
        %2877 = vmatpush1.msra.mxu0 0.0
        %2878 = vmatprep.subr.mxu0 0.0
        %2879 = vmatpush1.msra.mxu0 0.0
        %2880 = vmatprep.subr.mxu0 0.0
        %2881 = vmatpush1.msra.mxu0 0.0
        %2882 = vmatprep.subr.mxu0 0.0
        %2883 = vmatpush1.msra.mxu0 0.0
        %2884 = vmatprep.subr.mxu0 0.0
        %2885 = vmatpush1.msra.mxu0 0.0
        %2886 = vmatprep.subr.mxu0 0.0
        %2887 = vmatpush1.msra.mxu0 0.0
        %2888 = vmatprep.subr.mxu0 0.0
        %2889 = vmatpush1.msra.mxu0 0.0
        %2890 = vmatprep.subr.mxu0 0.0
        %2891 = vmatpush1.msra.mxu0 0.0
        %2892 = vmatprep.subr.mxu0 0.0
        %2893 = vmatpush1.msra.mxu0 0.0
        %2894 = vmatprep.subr.mxu0 0.0
        %2895 = vmatpush1.msra.mxu0 0.0
        %2896 = vmatprep.subr.mxu0 0.0
        %2897 = vmatpush1.msra.mxu0 0.0
        %2898 = vmatprep.subr.mxu0 0.0
        %2899 = vmatpush1.msra.mxu0 0.0
        %2900 = vmatprep.subr.mxu0 0.0
        %2901 = vmatpush1.msra.mxu0 0.0
        %2902 = vmatprep.subr.mxu0 0.0
        %2903 = vmatpush1.msra.mxu0 0.0
        %2904 = vmatprep.subr.mxu0 0.0
        %2905 = vmatpush1.msra.mxu0 0.0
        %2906 = vmatprep.subr.mxu0 0.0
        %2907 = vmatpush1.msra.mxu0 0.0
        %2908 = vmatprep.subr.mxu0 0.0
        %2909 = vmatpush1.msra.mxu0 0.0
        %2910 = vmatprep.subr.mxu0 0.0
        %2911 = vmatpush1.msra.mxu0 0.0
        %2912 = vmatprep.subr.mxu0 0.0
        %2913 = vmatpush1.msra.mxu0 0.0
        %2914 = vmatprep.subr.mxu0 0.0
        %2915 = vmatpush1.msra.mxu0 0.0
        %2916 = vmatprep.subr.mxu0 0.0
        %2917 = vmatpush1.msra.mxu0 0.0
        %2918 = vmatprep.subr.mxu0 0.0
        %2919 = vmatpush1.msra.mxu0 0.0
        %2920 = vmatprep.mubr.f32.mxu0 0.0
        %2921 = vmatmul.mubr.f32.gmra.mrb[0].mxu0 %v2758
        %v2922 = vpop.f32.mrb[0].mxu0
        %v2923 = vadd.f32 0.0, %v2922
        %v2924 = vpop.f32.mrb[0].mxu0
        %2925 = vmatprep.mubr.f32.mxu0 0.0
        %2926 = vmatmul.mubr.f32.gmra.mrb[0].mxu0 %v2761
        %v2927 = vpop.f32.mrb[0].mxu0
        %v2928 = vadd.f32 0.0, %v2927
        %v2929 = vpop.f32.mrb[0].mxu0
        %2930 = vmatprep.mubr.f32.mxu0 0.0
        %2931 = vmatmul.mubr.f32.gmra.mrb[0].mxu0 %v2764
        %v2932 = vpop.f32.mrb[0].mxu0
        %v2933 = vadd.f32 0.0, %v2932
        %v2934 = vpop.f32.mrb[0].mxu0
        %2935 = vmatprep.mubr.f32.mxu0 0.0
        %2936 = vmatmul.mubr.f32.gmra.mrb[0].mxu0 %v2767
        %v2937 = vpop.f32.mrb[0].mxu0
        %v2938 = vadd.f32 0.0, %v2937
        %v2939 = vpop.f32.mrb[0].mxu0
        %2940 = vmatprep.mubr.f32.mxu0 0.0
        %2941 = vmatmul.mubr.f32.gmra.mrb[0].mxu0 %v2770
        %v2942 = vpop.f32.mrb[0].mxu0
        %v2943 = vadd.f32 0.0, %v2942
        %v2944 = vpop.f32.mrb[0].mxu0
        %2945 = vmatprep.mubr.f32.mxu0 0.0
        %2946 = vmatmul.mubr.f32.gmra.mrb[0].mxu0 %v2773
        %v2947 = vpop.f32.mrb[0].mxu0
        %v2948 = vadd.f32 0.0, %v2947
        %v2949 = vpop.f32.mrb[0].mxu0
        %2950 = vmatprep.mubr.f32.mxu0 0.0
        %2951 = vmatmul.mubr.f32.gmra.mrb[0].mxu0 %v2776
        %v2952 = vpop.f32.mrb[0].mxu0
        %v2953 = vadd.f32 0.0, %v2952
        %v2954 = vpop.f32.mrb[0].mxu0
        %2955 = vmatprep.mubr.f32.mxu0 0.0
        %2956 = vmatmul.mubr.f32.gmra.mrb[0].mxu0 %v2779
        %v2957 = vpop.f32.mrb[0].mxu0
        %v2958 = vadd.f32 0.0, %v2957
        %v2959 = vpop.f32.mrb[0].mxu0
        %2960 = vmatprep.mubr.f32.mxu0 0.0
        %2961 = vmatmul.mubr.f32.gmra.mrb[0].mxu0 %v2782
        %v2962 = vpop.f32.mrb[0].mxu0
        %v2963 = vadd.f32 0.0, %v2962
        %v2964 = vpop.f32.mrb[0].mxu0
        %2965 = vmatprep.mubr.f32.mxu0 0.0
        %2966 = vmatmul.mubr.f32.gmra.mrb[0].mxu0 %v2785
        %v2967 = vpop.f32.mrb[0].mxu0
        %v2968 = vadd.f32 0.0, %v2967
        %v2969 = vpop.f32.mrb[0].mxu0
        %2970 = vmatprep.mubr.f32.mxu0 0.0
        %2971 = vmatmul.mubr.f32.gmra.mrb[0].mxu0 %v2788
        %v2972 = vpop.f32.mrb[0].mxu0
        %v2973 = vadd.f32 0.0, %v2972
        %v2974 = vpop.f32.mrb[0].mxu0
        %2975 = vmatprep.mubr.f32.mxu0 0.0
        %2976 = vmatmul.mubr.f32.gmra.mrb[0].mxu0 %v2791
        %v2977 = vpop.f32.mrb[0].mxu0
        %v2978 = vadd.f32 0.0, %v2977
        %v2979 = vpop.f32.mrb[0].mxu0
        %2980 = vmatprep.mubr.f32.mxu0 0.0
        %2981 = vmatmul.mubr.f32.gmra.mrb[0].mxu0 %v2794
        %v2982 = vpop.f32.mrb[0].mxu0
        %v2983 = vadd.f32 0.0, %v2982
        %v2984 = vpop.f32.mrb[0].mxu0
        %2985 = vmatprep.mubr.f32.mxu0 0.0
        %2986 = vmatmul.mubr.f32.gmra.mrb[0].mxu0 %v2797
        %v2987 = vpop.f32.mrb[0].mxu0
        %v2988 = vadd.f32 0.0, %v2987
        %v2989 = vpop.f32.mrb[0].mxu0
        %2990 = vmatprep.mubr.f32.mxu0 0.0
        %2991 = vmatmul.mubr.f32.gmra.mrb[0].mxu0 %v2800
        %v2992 = vpop.f32.mrb[0].mxu0
        %v2993 = vadd.f32 0.0, %v2992
        %v2994 = vpop.f32.mrb[0].mxu0
        %2995 = vmatprep.mubr.f32.mxu0 0.0
        %2996 = vmatmul.mubr.f32.gmra.mrb[0].mxu0 %v2803
        %v2997 = vpop.f32.mrb[0].mxu0
        %v2998 = vadd.f32 0.0, %v2997
        %v2999 = vpop.f32.mrb[0].mxu0
        %3000 = vmatprep.mubr.f32.mxu0 0.0
        %3001 = vmatmul.mubr.f32.gmra.mrb[0].mxu0 %v2806
        %v3002 = vpop.f32.mrb[0].mxu0
        %v3003 = vadd.f32 0.0, %v3002
        %v3004 = vpop.f32.mrb[0].mxu0
        %3005 = vmatprep.mubr.f32.mxu0 0.0
        %3006 = vmatmul.mubr.f32.gmra.mrb[0].mxu0 %v2809
        %v3007 = vpop.f32.mrb[0].mxu0
        %v3008 = vadd.f32 0.0, %v3007
        %v3009 = vpop.f32.mrb[0].mxu0
        %3010 = vmatprep.mubr.f32.mxu0 0.0
        %3011 = vmatmul.mubr.f32.gmra.mrb[0].mxu0 %v2812
        %v3012 = vpop.f32.mrb[0].mxu0
        %v3013 = vadd.f32 0.0, %v3012
        %v3014 = vpop.f32.mrb[0].mxu0
        %3015 = vmatprep.mubr.f32.mxu0 0.0
        %3016 = vmatmul.mubr.f32.gmra.mrb[0].mxu0 %v2815
        %v3017 = vpop.f32.mrb[0].mxu0
        %v3018 = vadd.f32 0.0, %v3017
        %v3019 = vpop.f32.mrb[0].mxu0
        %3020 = vmatprep.mubr.f32.mxu0 0.0
        %3021 = vmatmul.mubr.f32.gmra.mrb[0].mxu0 %v2818
        %v3022 = vpop.f32.mrb[0].mxu0
        %v3023 = vadd.f32 0.0, %v3022
        %v3024 = vpop.f32.mrb[0].mxu0
        %3025 = vmatprep.mubr.f32.mxu0 0.0
        %3026 = vmatmul.mubr.f32.gmra.mrb[0].mxu0 %v2821
        %v3027 = vpop.f32.mrb[0].mxu0
        %v3028 = vadd.f32 0.0, %v3027
        %v3029 = vpop.f32.mrb[0].mxu0
        %3030 = vmatprep.mubr.f32.mxu0 0.0
        %3031 = vmatmul.mubr.f32.gmra.mrb[0].mxu0 %v2824
        %v3032 = vpop.f32.mrb[0].mxu0
        %v3033 = vadd.f32 0.0, %v3032
        %v3034 = vpop.f32.mrb[0].mxu0
        %3035 = vmatprep.mubr.f32.mxu0 0.0
        %3036 = vmatmul.mubr.f32.gmra.mrb[0].mxu0 %v2827
        %v3037 = vpop.f32.mrb[0].mxu0
        %v3038 = vadd.f32 0.0, %v3037
        %v3039 = vpop.f32.mrb[0].mxu0
        %3040 = vmatprep.mubr.f32.mxu0 0.0
        %3041 = vmatmul.mubr.f32.gmra.mrb[0].mxu0 %v2830
        %v3042 = vpop.f32.mrb[0].mxu0
        %v3043 = vadd.f32 0.0, %v3042
        %v3044 = vpop.f32.mrb[0].mxu0
        %3045 = vmatprep.mubr.f32.mxu0 0.0
        %3046 = vmatmul.mubr.f32.gmra.mrb[0].mxu0 %v2833
        %v3047 = vpop.f32.mrb[0].mxu0
        %v3048 = vadd.f32 0.0, %v3047
        %v3049 = vpop.f32.mrb[0].mxu0
        %3050 = vmatprep.mubr.f32.mxu0 0.0
        %3051 = vmatmul.mubr.f32.gmra.mrb[0].mxu0 %v2836
        %v3052 = vpop.f32.mrb[0].mxu0
        %v3053 = vadd.f32 0.0, %v3052
        %v3054 = vpop.f32.mrb[0].mxu0
        %3055 = vmatprep.mubr.f32.mxu0 0.0
        %3056 = vmatmul.mubr.f32.gmra.mrb[0].mxu0 %v2839
        %v3057 = vpop.f32.mrb[0].mxu0
        %v3058 = vadd.f32 0.0, %v3057
        %v3059 = vpop.f32.mrb[0].mxu0
        %3060 = vmatprep.mubr.f32.mxu0 0.0
        %3061 = vmatmul.mubr.f32.gmra.mrb[0].mxu0 %v2842
        %v3062 = vpop.f32.mrb[0].mxu0
        %v3063 = vadd.f32 0.0, %v3062
        %v3064 = vpop.f32.mrb[0].mxu0
        %3065 = vmatprep.mubr.f32.mxu0 0.0
        %3066 = vmatmul.mubr.f32.gmra.mrb[0].mxu0 %v2845
        %v3067 = vpop.f32.mrb[0].mxu0
        %v3068 = vadd.f32 0.0, %v3067
        %v3069 = vpop.f32.mrb[0].mxu0
        %3070 = vmatprep.mubr.f32.mxu0 0.0
        %3071 = vmatmul.mubr.f32.gmra.mrb[0].mxu0 %v2848
        %v3072 = vpop.f32.mrb[0].mxu0
        %v3073 = vadd.f32 0.0, %v3072
        %v3074 = vpop.f32.mrb[0].mxu0
        %3075 = vmatprep.mubr.f32.mxu0 0.0
        %3076 = vmatmul.mubr.f32.gmra.mrb[0].mxu0 %v2851
        %v3077 = vpop.f32.mrb[0].mxu0
        %v3078 = vadd.f32 0.0, %v3077
        %v3079 = vpop.f32.mrb[0].mxu0
        %3080 = vdwg.mxu0
        %v3081 = vld [vmem:[#allocation3] sm:$0xff]
        %v3082 = vld [vmem:[#allocation3 + $0x8] sm:$0xff]
        %v3083 = vld [vmem:[#allocation3 + $0x10] sm:$0xff]
        %v3084 = vld [vmem:[#allocation3 + $0x18] sm:$0xff]
        %v3085 = vld [vmem:[#allocation3 + $0x20] sm:$0xff]
        %v3086 = vld [vmem:[#allocation3 + $0x28] sm:$0xff]
        %v3087 = vld [vmem:[#allocation3 + $0x30] sm:$0xff]
        %v3088 = vld [vmem:[#allocation3 + $0x38] sm:$0xff]
        %v3089 = vld [vmem:[#allocation3 + $0x40] sm:$0xff]
        %v3090 = vld [vmem:[#allocation3 + $0x48] sm:$0xff]
        %v3091 = vld [vmem:[#allocation3 + $0x50] sm:$0xff]
        %v3092 = vld [vmem:[#allocation3 + $0x58] sm:$0xff]
        %v3093 = vld [vmem:[#allocation3 + $0x60] sm:$0xff]
        %v3094 = vld [vmem:[#allocation3 + $0x68] sm:$0xff]
        %v3095 = vld [vmem:[#allocation3 + $0x70] sm:$0xff]
        %v3096 = vld [vmem:[#allocation3 + $0x78] sm:$0xff]
        %v3097 = vld [vmem:[#allocation3 + $0x80] sm:$0xff]
        %v3098 = vld [vmem:[#allocation3 + $0x88] sm:$0xff]
        %v3099 = vld [vmem:[#allocation3 + $0x90] sm:$0xff]
        %v3100 = vld [vmem:[#allocation3 + $0x98] sm:$0xff]
        %v3101 = vld [vmem:[#allocation3 + $0xa0] sm:$0xff]
        %v3102 = vld [vmem:[#allocation3 + $0xa8] sm:$0xff]
        %v3103 = vld [vmem:[#allocation3 + $0xb0] sm:$0xff]
        %v3104 = vld [vmem:[#allocation3 + $0xb8] sm:$0xff]
        %v3105 = vld [vmem:[#allocation3 + $0xc0] sm:$0xff]
        %v3106 = vld [vmem:[#allocation3 + $0xc8] sm:$0xff]
        %v3107 = vld [vmem:[#allocation3 + $0xd0] sm:$0xff]
        %v3108 = vld [vmem:[#allocation3 + $0xd8] sm:$0xff]
        %v3109 = vld [vmem:[#allocation3 + $0xe0] sm:$0xff]
        %v3110 = vld [vmem:[#allocation3 + $0xe8] sm:$0xff]
        %v3111 = vld [vmem:[#allocation3 + $0xf0] sm:$0xff]
        %v3112 = vld [vmem:[#allocation3 + $0xf8] sm:$0xff]
        %v3113 = vadd.f32 %v3081, %v2923
        %v3114 = vadd.f32 %v3082, %v2928
        %v3115 = vadd.f32 %v3083, %v2933
        %v3116 = vadd.f32 %v3084, %v2938
        %v3117 = vadd.f32 %v3085, %v2943
        %v3118 = vadd.f32 %v3086, %v2948
        %v3119 = vadd.f32 %v3087, %v2953
        %v3120 = vadd.f32 %v3088, %v2958
        %v3121 = vadd.f32 %v3089, %v2963
        %v3122 = vadd.f32 %v3090, %v2968
        %v3123 = vadd.f32 %v3091, %v2973
        %v3124 = vadd.f32 %v3092, %v2978
        %v3125 = vadd.f32 %v3093, %v2983
        %v3126 = vadd.f32 %v3094, %v2988
        %v3127 = vadd.f32 %v3095, %v2993
        %v3128 = vadd.f32 %v3096, %v2998
        %v3129 = vadd.f32 %v3097, %v3003
        %v3130 = vadd.f32 %v3098, %v3008
        %v3131 = vadd.f32 %v3099, %v3013
        %v3132 = vadd.f32 %v3100, %v3018
        %v3133 = vadd.f32 %v3101, %v3023
        %v3134 = vadd.f32 %v3102, %v3028
        %v3135 = vadd.f32 %v3103, %v3033
        %v3136 = vadd.f32 %v3104, %v3038
        %v3137 = vadd.f32 %v3105, %v3043
        %v3138 = vadd.f32 %v3106, %v3048
        %v3139 = vadd.f32 %v3107, %v3053
        %v3140 = vadd.f32 %v3108, %v3058
        %v3141 = vadd.f32 %v3109, %v3063
        %v3142 = vadd.f32 %v3110, %v3068
        %v3143 = vadd.f32 %v3111, %v3073
        %v3144 = vadd.f32 %v3112, %v3078
        %3145 = vst.msk [vmem:[#allocation3] sm:$0xff] %vm874, %v3113
        %3146 = vst.msk [vmem:[#allocation3 + $0x8] sm:$0xff] %vm874, %v3114
        %3147 = vst.msk [vmem:[#allocation3 + $0x10] sm:$0xff] %vm874, %v3115
        %3148 = vst.msk [vmem:[#allocation3 + $0x18] sm:$0xff] %vm874, %v3116
        %3149 = vst.msk [vmem:[#allocation3 + $0x20] sm:$0xff] %vm874, %v3117
        %3150 = vst.msk [vmem:[#allocation3 + $0x28] sm:$0xff] %vm874, %v3118
        %3151 = vst.msk [vmem:[#allocation3 + $0x30] sm:$0xff] %vm874, %v3119
        %3152 = vst.msk [vmem:[#allocation3 + $0x38] sm:$0xff] %vm874, %v3120
        %3153 = vst.msk [vmem:[#allocation3 + $0x40] sm:$0xff] %vm874, %v3121
        %3154 = vst.msk [vmem:[#allocation3 + $0x48] sm:$0xff] %vm874, %v3122
        %3155 = vst.msk [vmem:[#allocation3 + $0x50] sm:$0xff] %vm874, %v3123
        %3156 = vst.msk [vmem:[#allocation3 + $0x58] sm:$0xff] %vm874, %v3124
        %3157 = vst.msk [vmem:[#allocation3 + $0x60] sm:$0xff] %vm874, %v3125
        %3158 = vst.msk [vmem:[#allocation3 + $0x68] sm:$0xff] %vm874, %v3126
        %3159 = vst.msk [vmem:[#allocation3 + $0x70] sm:$0xff] %vm874, %v3127
        %3160 = vst.msk [vmem:[#allocation3 + $0x78] sm:$0xff] %vm874, %v3128
        %3161 = vst.msk [vmem:[#allocation3 + $0x80] sm:$0xff] %vm874, %v3129
        %3162 = vst.msk [vmem:[#allocation3 + $0x88] sm:$0xff] %vm874, %v3130
        %3163 = vst.msk [vmem:[#allocation3 + $0x90] sm:$0xff] %vm874, %v3131
        %3164 = vst.msk [vmem:[#allocation3 + $0x98] sm:$0xff] %vm874, %v3132
        %3165 = vst.msk [vmem:[#allocation3 + $0xa0] sm:$0xff] %vm874, %v3133
        %3166 = vst.msk [vmem:[#allocation3 + $0xa8] sm:$0xff] %vm874, %v3134
        %3167 = vst.msk [vmem:[#allocation3 + $0xb0] sm:$0xff] %vm874, %v3135
        %3168 = vst.msk [vmem:[#allocation3 + $0xb8] sm:$0xff] %vm874, %v3136
        %3169 = vst.msk [vmem:[#allocation3 + $0xc0] sm:$0xff] %vm874, %v3137
        %3170 = vst.msk [vmem:[#allocation3 + $0xc8] sm:$0xff] %vm874, %v3138
        %3171 = vst.msk [vmem:[#allocation3 + $0xd0] sm:$0xff] %vm874, %v3139
        %3172 = vst.msk [vmem:[#allocation3 + $0xd8] sm:$0xff] %vm874, %v3140
        %3173 = vst.msk [vmem:[#allocation3 + $0xe0] sm:$0xff] %vm874, %v3141
        %3174 = vst.msk [vmem:[#allocation3 + $0xe8] sm:$0xff] %vm874, %v3142
        %3175 = vst.msk [vmem:[#allocation3 + $0xf0] sm:$0xff] %vm874, %v3143
        %3176 = vst.msk [vmem:[#allocation3 + $0xf8] sm:$0xff] %vm874, %v3144
        %s3177 = scalar_lea.vmem [#allocation2], 48
        %v3178 = vld [vmem:[%s3177] sm:$0xff]
        %v3179 = vld [vmem:[%s3177 + $0x8] sm:$0xff]
        %v3180 = vld [vmem:[%s3177 + $0x18] sm:$0xff]
        %v3181 = vld [vmem:[%s3177 + $0x20] sm:$0xff]
        %v3182 = vld [vmem:[%s3177 + $0x30] sm:$0xff]
        %v3183 = vld [vmem:[%s3177 + $0x38] sm:$0xff]
        %v3184 = vld [vmem:[%s3177 + $0x48] sm:$0xff]
        %v3185 = vld [vmem:[%s3177 + $0x50] sm:$0xff]
        %v3186 = vld [vmem:[%s3177 + $0x60] sm:$0xff]
        %v3187 = vld [vmem:[%s3177 + $0x68] sm:$0xff]
        %v3188 = vld [vmem:[%s3177 + $0x78] sm:$0xff]
        %v3189 = vld [vmem:[%s3177 + $0x80] sm:$0xff]
        %v3190 = vld [vmem:[%s3177 + $0x90] sm:$0xff]
        %v3191 = vld [vmem:[%s3177 + $0x98] sm:$0xff]
        %v3192 = vld [vmem:[%s3177 + $0xa8] sm:$0xff]
        %v3193 = vld [vmem:[%s3177 + $0xb0] sm:$0xff]
        %v3194 = vld [vmem:[%s3177 + $0xc0] sm:$0xff]
        %v3195 = vld [vmem:[%s3177 + $0xc8] sm:$0xff]
        %v3196 = vld [vmem:[%s3177 + $0xd8] sm:$0xff]
        %v3197 = vld [vmem:[%s3177 + $0xe0] sm:$0xff]
        %v3198 = vld [vmem:[%s3177 + $0xf0] sm:$0xff]
        %v3199 = vld [vmem:[%s3177 + $0xf8] sm:$0xff]
        %v3200 = vld [vmem:[%s3177 + $0x108] sm:$0xff]
        %v3201 = vld [vmem:[%s3177 + $0x110] sm:$0xff]
        %v3202 = vld [vmem:[%s3177 + $0x120] sm:$0xff]
        %v3203 = vld [vmem:[%s3177 + $0x128] sm:$0xff]
        %v3204 = vld [vmem:[%s3177 + $0x138] sm:$0xff]
        %v3205 = vld [vmem:[%s3177 + $0x140] sm:$0xff]
        %v3206 = vld [vmem:[%s3177 + $0x150] sm:$0xff]
        %v3207 = vld [vmem:[%s3177 + $0x158] sm:$0xff]
        %v3208 = vld [vmem:[%s3177 + $0x168] sm:$0xff]
        %v3209 = vld [vmem:[%s3177 + $0x170] sm:$0xff]
        %s3210 = scalar_lea.vmem [#allocation10], 24
        %v3211 = vld [vmem:[%s3210] sm:$0xf]
        %v3213 = vsel %vm295, %v3178, 0
        %v3216 = vsel %vm295, %v3179, 0
        %v3219 = vsel %vm295, %v3180, 0
        %v3222 = vsel %vm295, %v3181, 0
        %v3225 = vsel %vm295, %v3182, 0
        %v3228 = vsel %vm295, %v3183, 0
        %v3231 = vsel %vm295, %v3184, 0
        %v3234 = vsel %vm295, %v3185, 0
        %v3237 = vsel %vm295, %v3186, 0
        %v3240 = vsel %vm295, %v3187, 0
        %v3243 = vsel %vm295, %v3188, 0
        %v3246 = vsel %vm295, %v3189, 0
        %v3249 = vsel %vm295, %v3190, 0
        %v3252 = vsel %vm295, %v3191, 0
        %v3255 = vsel %vm295, %v3192, 0
        %v3258 = vsel %vm295, %v3193, 0
        %v3261 = vsel %vm295, %v3194, 0
        %v3264 = vsel %vm295, %v3195, 0
        %v3267 = vsel %vm295, %v3196, 0
        %v3270 = vsel %vm295, %v3197, 0
        %v3273 = vsel %vm295, %v3198, 0
        %v3276 = vsel %vm295, %v3199, 0
        %v3279 = vsel %vm295, %v3200, 0
        %v3282 = vsel %vm295, %v3201, 0
        %v3285 = vsel %vm295, %v3202, 0
        %v3288 = vsel %vm295, %v3203, 0
        %v3291 = vsel %vm295, %v3204, 0
        %v3294 = vsel %vm295, %v3205, 0
        %v3297 = vsel %vm295, %v3206, 0
        %v3300 = vsel %vm295, %v3207, 0
        %v3303 = vsel %vm295, %v3208, 0
        %v3306 = vsel %vm295, %v3209, 0
        %v3309 = vsel %vm645, %v3211, 0
        %3311 = vmatprep.subr.mxu0 0.0
        %3312 = vmatpush1.msra.mxu0 %v3309
        %3313 = vmatprep.subr.mxu0 0.0
        %3314 = vmatpush1.msra.mxu0 0.0
        %3315 = vmatprep.subr.mxu0 0.0
        %3316 = vmatpush1.msra.mxu0 0.0
        %3317 = vmatprep.subr.mxu0 0.0
        %3318 = vmatpush1.msra.mxu0 0.0
        %3319 = vmatprep.subr.mxu0 0.0
        %3320 = vmatpush1.msra.mxu0 0.0
        %3321 = vmatprep.subr.mxu0 0.0
        %3322 = vmatpush1.msra.mxu0 0.0
        %3323 = vmatprep.subr.mxu0 0.0
        %3324 = vmatpush1.msra.mxu0 0.0
        %3325 = vmatprep.subr.mxu0 0.0
        %3326 = vmatpush1.msra.mxu0 0.0
        %3327 = vmatprep.subr.mxu0 0.0
        %3328 = vmatpush1.msra.mxu0 0.0
        %3329 = vmatprep.subr.mxu0 0.0
        %3330 = vmatpush1.msra.mxu0 0.0
        %3331 = vmatprep.subr.mxu0 0.0
        %3332 = vmatpush1.msra.mxu0 0.0
        %3333 = vmatprep.subr.mxu0 0.0
        %3334 = vmatpush1.msra.mxu0 0.0
        %3335 = vmatprep.subr.mxu0 0.0
        %3336 = vmatpush1.msra.mxu0 0.0
        %3337 = vmatprep.subr.mxu0 0.0
        %3338 = vmatpush1.msra.mxu0 0.0
        %3339 = vmatprep.subr.mxu0 0.0
        %3340 = vmatpush1.msra.mxu0 0.0
        %3341 = vmatprep.subr.mxu0 0.0
        %3342 = vmatpush1.msra.mxu0 0.0
        %3343 = vmatprep.subr.mxu0 0.0
        %3344 = vmatpush1.msra.mxu0 0.0
        %3345 = vmatprep.subr.mxu0 0.0
        %3346 = vmatpush1.msra.mxu0 0.0
        %3347 = vmatprep.subr.mxu0 0.0
        %3348 = vmatpush1.msra.mxu0 0.0
        %3349 = vmatprep.subr.mxu0 0.0
        %3350 = vmatpush1.msra.mxu0 0.0
        %3351 = vmatprep.subr.mxu0 0.0
        %3352 = vmatpush1.msra.mxu0 0.0
        %3353 = vmatprep.subr.mxu0 0.0
        %3354 = vmatpush1.msra.mxu0 0.0
        %3355 = vmatprep.subr.mxu0 0.0
        %3356 = vmatpush1.msra.mxu0 0.0
        %3357 = vmatprep.subr.mxu0 0.0
        %3358 = vmatpush1.msra.mxu0 0.0
        %3359 = vmatprep.subr.mxu0 0.0
        %3360 = vmatpush1.msra.mxu0 0.0
        %3361 = vmatprep.subr.mxu0 0.0
        %3362 = vmatpush1.msra.mxu0 0.0
        %3363 = vmatprep.subr.mxu0 0.0
        %3364 = vmatpush1.msra.mxu0 0.0
        %3365 = vmatprep.subr.mxu0 0.0
        %3366 = vmatpush1.msra.mxu0 0.0
        %3367 = vmatprep.subr.mxu0 0.0
        %3368 = vmatpush1.msra.mxu0 0.0
        %3369 = vmatprep.subr.mxu0 0.0
        %3370 = vmatpush1.msra.mxu0 0.0
        %3371 = vmatprep.subr.mxu0 0.0
        %3372 = vmatpush1.msra.mxu0 0.0
        %3373 = vmatprep.subr.mxu0 0.0
        %3374 = vmatpush1.msra.mxu0 0.0
        %3375 = vmatprep.mubr.f32.mxu0 0.0
        %3376 = vmatmul.mubr.f32.gmra.mrb[0].mxu0 %v3213
        %v3377 = vpop.f32.mrb[0].mxu0
        %v3378 = vadd.f32 0.0, %v3377
        %v3379 = vpop.f32.mrb[0].mxu0
        %3380 = vmatprep.mubr.f32.mxu0 0.0
        %3381 = vmatmul.mubr.f32.gmra.mrb[0].mxu0 %v3216
        %v3382 = vpop.f32.mrb[0].mxu0
        %v3383 = vadd.f32 0.0, %v3382
        %v3384 = vpop.f32.mrb[0].mxu0
        %3385 = vmatprep.mubr.f32.mxu0 0.0
        %3386 = vmatmul.mubr.f32.gmra.mrb[0].mxu0 %v3219
        %v3387 = vpop.f32.mrb[0].mxu0
        %v3388 = vadd.f32 0.0, %v3387
        %v3389 = vpop.f32.mrb[0].mxu0
        %3390 = vmatprep.mubr.f32.mxu0 0.0
        %3391 = vmatmul.mubr.f32.gmra.mrb[0].mxu0 %v3222
        %v3392 = vpop.f32.mrb[0].mxu0
        %v3393 = vadd.f32 0.0, %v3392
        %v3394 = vpop.f32.mrb[0].mxu0
        %3395 = vmatprep.mubr.f32.mxu0 0.0
        %3396 = vmatmul.mubr.f32.gmra.mrb[0].mxu0 %v3225
        %v3397 = vpop.f32.mrb[0].mxu0
        %v3398 = vadd.f32 0.0, %v3397
        %v3399 = vpop.f32.mrb[0].mxu0
        %3400 = vmatprep.mubr.f32.mxu0 0.0
        %3401 = vmatmul.mubr.f32.gmra.mrb[0].mxu0 %v3228
        %v3402 = vpop.f32.mrb[0].mxu0
        %v3403 = vadd.f32 0.0, %v3402
        %v3404 = vpop.f32.mrb[0].mxu0
        %3405 = vmatprep.mubr.f32.mxu0 0.0
        %3406 = vmatmul.mubr.f32.gmra.mrb[0].mxu0 %v3231
        %v3407 = vpop.f32.mrb[0].mxu0
        %v3408 = vadd.f32 0.0, %v3407
        %v3409 = vpop.f32.mrb[0].mxu0
        %3410 = vmatprep.mubr.f32.mxu0 0.0
        %3411 = vmatmul.mubr.f32.gmra.mrb[0].mxu0 %v3234
        %v3412 = vpop.f32.mrb[0].mxu0
        %v3413 = vadd.f32 0.0, %v3412
        %v3414 = vpop.f32.mrb[0].mxu0
        %3415 = vmatprep.mubr.f32.mxu0 0.0
        %3416 = vmatmul.mubr.f32.gmra.mrb[0].mxu0 %v3237
        %v3417 = vpop.f32.mrb[0].mxu0
        %v3418 = vadd.f32 0.0, %v3417
        %v3419 = vpop.f32.mrb[0].mxu0
        %3420 = vmatprep.mubr.f32.mxu0 0.0
        %3421 = vmatmul.mubr.f32.gmra.mrb[0].mxu0 %v3240
        %v3422 = vpop.f32.mrb[0].mxu0
        %v3423 = vadd.f32 0.0, %v3422
        %v3424 = vpop.f32.mrb[0].mxu0
        %3425 = vmatprep.mubr.f32.mxu0 0.0
        %3426 = vmatmul.mubr.f32.gmra.mrb[0].mxu0 %v3243
        %v3427 = vpop.f32.mrb[0].mxu0
        %v3428 = vadd.f32 0.0, %v3427
        %v3429 = vpop.f32.mrb[0].mxu0
        %3430 = vmatprep.mubr.f32.mxu0 0.0
        %3431 = vmatmul.mubr.f32.gmra.mrb[0].mxu0 %v3246
        %v3432 = vpop.f32.mrb[0].mxu0
        %v3433 = vadd.f32 0.0, %v3432
        %v3434 = vpop.f32.mrb[0].mxu0
        %3435 = vmatprep.mubr.f32.mxu0 0.0
        %3436 = vmatmul.mubr.f32.gmra.mrb[0].mxu0 %v3249
        %v3437 = vpop.f32.mrb[0].mxu0
        %v3438 = vadd.f32 0.0, %v3437
        %v3439 = vpop.f32.mrb[0].mxu0
        %3440 = vmatprep.mubr.f32.mxu0 0.0
        %3441 = vmatmul.mubr.f32.gmra.mrb[0].mxu0 %v3252
        %v3442 = vpop.f32.mrb[0].mxu0
        %v3443 = vadd.f32 0.0, %v3442
        %v3444 = vpop.f32.mrb[0].mxu0
        %3445 = vmatprep.mubr.f32.mxu0 0.0
        %3446 = vmatmul.mubr.f32.gmra.mrb[0].mxu0 %v3255
        %v3447 = vpop.f32.mrb[0].mxu0
        %v3448 = vadd.f32 0.0, %v3447
        %v3449 = vpop.f32.mrb[0].mxu0
        %3450 = vmatprep.mubr.f32.mxu0 0.0
        %3451 = vmatmul.mubr.f32.gmra.mrb[0].mxu0 %v3258
        %v3452 = vpop.f32.mrb[0].mxu0
        %v3453 = vadd.f32 0.0, %v3452
        %v3454 = vpop.f32.mrb[0].mxu0
        %3455 = vmatprep.mubr.f32.mxu0 0.0
        %3456 = vmatmul.mubr.f32.gmra.mrb[0].mxu0 %v3261
        %v3457 = vpop.f32.mrb[0].mxu0
        %v3458 = vadd.f32 0.0, %v3457
        %v3459 = vpop.f32.mrb[0].mxu0
        %3460 = vmatprep.mubr.f32.mxu0 0.0
        %3461 = vmatmul.mubr.f32.gmra.mrb[0].mxu0 %v3264
        %v3462 = vpop.f32.mrb[0].mxu0
        %v3463 = vadd.f32 0.0, %v3462
        %v3464 = vpop.f32.mrb[0].mxu0
        %3465 = vmatprep.mubr.f32.mxu0 0.0
        %3466 = vmatmul.mubr.f32.gmra.mrb[0].mxu0 %v3267
        %v3467 = vpop.f32.mrb[0].mxu0
        %v3468 = vadd.f32 0.0, %v3467
        %v3469 = vpop.f32.mrb[0].mxu0
        %3470 = vmatprep.mubr.f32.mxu0 0.0
        %3471 = vmatmul.mubr.f32.gmra.mrb[0].mxu0 %v3270
        %v3472 = vpop.f32.mrb[0].mxu0
        %v3473 = vadd.f32 0.0, %v3472
        %v3474 = vpop.f32.mrb[0].mxu0
        %3475 = vmatprep.mubr.f32.mxu0 0.0
        %3476 = vmatmul.mubr.f32.gmra.mrb[0].mxu0 %v3273
        %v3477 = vpop.f32.mrb[0].mxu0
        %v3478 = vadd.f32 0.0, %v3477
        %v3479 = vpop.f32.mrb[0].mxu0
        %3480 = vmatprep.mubr.f32.mxu0 0.0
        %3481 = vmatmul.mubr.f32.gmra.mrb[0].mxu0 %v3276
        %v3482 = vpop.f32.mrb[0].mxu0
        %v3483 = vadd.f32 0.0, %v3482
        %v3484 = vpop.f32.mrb[0].mxu0
        %3485 = vmatprep.mubr.f32.mxu0 0.0
        %3486 = vmatmul.mubr.f32.gmra.mrb[0].mxu0 %v3279
        %v3487 = vpop.f32.mrb[0].mxu0
        %v3488 = vadd.f32 0.0, %v3487
        %v3489 = vpop.f32.mrb[0].mxu0
        %3490 = vmatprep.mubr.f32.mxu0 0.0
        %3491 = vmatmul.mubr.f32.gmra.mrb[0].mxu0 %v3282
        %v3492 = vpop.f32.mrb[0].mxu0
        %v3493 = vadd.f32 0.0, %v3492
        %v3494 = vpop.f32.mrb[0].mxu0
        %3495 = vmatprep.mubr.f32.mxu0 0.0
        %3496 = vmatmul.mubr.f32.gmra.mrb[0].mxu0 %v3285
        %v3497 = vpop.f32.mrb[0].mxu0
        %v3498 = vadd.f32 0.0, %v3497
        %v3499 = vpop.f32.mrb[0].mxu0
        %3500 = vmatprep.mubr.f32.mxu0 0.0
        %3501 = vmatmul.mubr.f32.gmra.mrb[0].mxu0 %v3288
        %v3502 = vpop.f32.mrb[0].mxu0
        %v3503 = vadd.f32 0.0, %v3502
        %v3504 = vpop.f32.mrb[0].mxu0
        %3505 = vmatprep.mubr.f32.mxu0 0.0
        %3506 = vmatmul.mubr.f32.gmra.mrb[0].mxu0 %v3291
        %v3507 = vpop.f32.mrb[0].mxu0
        %v3508 = vadd.f32 0.0, %v3507
        %v3509 = vpop.f32.mrb[0].mxu0
        %3510 = vmatprep.mubr.f32.mxu0 0.0
        %3511 = vmatmul.mubr.f32.gmra.mrb[0].mxu0 %v3294
        %v3512 = vpop.f32.mrb[0].mxu0
        %v3513 = vadd.f32 0.0, %v3512
        %v3514 = vpop.f32.mrb[0].mxu0
        %3515 = vmatprep.mubr.f32.mxu0 0.0
        %3516 = vmatmul.mubr.f32.gmra.mrb[0].mxu0 %v3297
        %v3517 = vpop.f32.mrb[0].mxu0
        %v3518 = vadd.f32 0.0, %v3517
        %v3519 = vpop.f32.mrb[0].mxu0
        %3520 = vmatprep.mubr.f32.mxu0 0.0
        %3521 = vmatmul.mubr.f32.gmra.mrb[0].mxu0 %v3300
        %v3522 = vpop.f32.mrb[0].mxu0
        %v3523 = vadd.f32 0.0, %v3522
        %v3524 = vpop.f32.mrb[0].mxu0
        %3525 = vmatprep.mubr.f32.mxu0 0.0
        %3526 = vmatmul.mubr.f32.gmra.mrb[0].mxu0 %v3303
        %v3527 = vpop.f32.mrb[0].mxu0
        %v3528 = vadd.f32 0.0, %v3527
        %v3529 = vpop.f32.mrb[0].mxu0
        %3530 = vmatprep.mubr.f32.mxu0 0.0
        %3531 = vmatmul.mubr.f32.gmra.mrb[0].mxu0 %v3306
        %v3532 = vpop.f32.mrb[0].mxu0
        %v3533 = vadd.f32 0.0, %v3532
        %v3534 = vpop.f32.mrb[0].mxu0
        %3535 = vdwg.mxu0
        %v3536 = vld [vmem:[#allocation3] sm:$0xff]
        %v3537 = vld [vmem:[#allocation3 + $0x8] sm:$0xff]
        %v3538 = vld [vmem:[#allocation3 + $0x10] sm:$0xff]
        %v3539 = vld [vmem:[#allocation3 + $0x18] sm:$0xff]
        %v3540 = vld [vmem:[#allocation3 + $0x20] sm:$0xff]
        %v3541 = vld [vmem:[#allocation3 + $0x28] sm:$0xff]
        %v3542 = vld [vmem:[#allocation3 + $0x30] sm:$0xff]
        %v3543 = vld [vmem:[#allocation3 + $0x38] sm:$0xff]
        %v3544 = vld [vmem:[#allocation3 + $0x40] sm:$0xff]
        %v3545 = vld [vmem:[#allocation3 + $0x48] sm:$0xff]
        %v3546 = vld [vmem:[#allocation3 + $0x50] sm:$0xff]
        %v3547 = vld [vmem:[#allocation3 + $0x58] sm:$0xff]
        %v3548 = vld [vmem:[#allocation3 + $0x60] sm:$0xff]
        %v3549 = vld [vmem:[#allocation3 + $0x68] sm:$0xff]
        %v3550 = vld [vmem:[#allocation3 + $0x70] sm:$0xff]
        %v3551 = vld [vmem:[#allocation3 + $0x78] sm:$0xff]
        %v3552 = vld [vmem:[#allocation3 + $0x80] sm:$0xff]
        %v3553 = vld [vmem:[#allocation3 + $0x88] sm:$0xff]
        %v3554 = vld [vmem:[#allocation3 + $0x90] sm:$0xff]
        %v3555 = vld [vmem:[#allocation3 + $0x98] sm:$0xff]
        %v3556 = vld [vmem:[#allocation3 + $0xa0] sm:$0xff]
        %v3557 = vld [vmem:[#allocation3 + $0xa8] sm:$0xff]
        %v3558 = vld [vmem:[#allocation3 + $0xb0] sm:$0xff]
        %v3559 = vld [vmem:[#allocation3 + $0xb8] sm:$0xff]
        %v3560 = vld [vmem:[#allocation3 + $0xc0] sm:$0xff]
        %v3561 = vld [vmem:[#allocation3 + $0xc8] sm:$0xff]
        %v3562 = vld [vmem:[#allocation3 + $0xd0] sm:$0xff]
        %v3563 = vld [vmem:[#allocation3 + $0xd8] sm:$0xff]
        %v3564 = vld [vmem:[#allocation3 + $0xe0] sm:$0xff]
        %v3565 = vld [vmem:[#allocation3 + $0xe8] sm:$0xff]
        %v3566 = vld [vmem:[#allocation3 + $0xf0] sm:$0xff]
        %v3567 = vld [vmem:[#allocation3 + $0xf8] sm:$0xff]
        %v3568 = vadd.f32 %v3536, %v3378
        %v3569 = vadd.f32 %v3537, %v3383
        %v3570 = vadd.f32 %v3538, %v3388
        %v3571 = vadd.f32 %v3539, %v3393
        %v3572 = vadd.f32 %v3540, %v3398
        %v3573 = vadd.f32 %v3541, %v3403
        %v3574 = vadd.f32 %v3542, %v3408
        %v3575 = vadd.f32 %v3543, %v3413
        %v3576 = vadd.f32 %v3544, %v3418
        %v3577 = vadd.f32 %v3545, %v3423
        %v3578 = vadd.f32 %v3546, %v3428
        %v3579 = vadd.f32 %v3547, %v3433
        %v3580 = vadd.f32 %v3548, %v3438
        %v3581 = vadd.f32 %v3549, %v3443
        %v3582 = vadd.f32 %v3550, %v3448
        %v3583 = vadd.f32 %v3551, %v3453
        %v3584 = vadd.f32 %v3552, %v3458
        %v3585 = vadd.f32 %v3553, %v3463
        %v3586 = vadd.f32 %v3554, %v3468
        %v3587 = vadd.f32 %v3555, %v3473
        %v3588 = vadd.f32 %v3556, %v3478
        %v3589 = vadd.f32 %v3557, %v3483
        %v3590 = vadd.f32 %v3558, %v3488
        %v3591 = vadd.f32 %v3559, %v3493
        %v3592 = vadd.f32 %v3560, %v3498
        %v3593 = vadd.f32 %v3561, %v3503
        %v3594 = vadd.f32 %v3562, %v3508
        %v3595 = vadd.f32 %v3563, %v3513
        %v3596 = vadd.f32 %v3564, %v3518
        %v3597 = vadd.f32 %v3565, %v3523
        %v3598 = vadd.f32 %v3566, %v3528
        %v3599 = vadd.f32 %v3567, %v3533
        %3600 = vst.msk [vmem:[#allocation3] sm:$0xff] %vm874, %v3568
        %3601 = vst.msk [vmem:[#allocation3 + $0x8] sm:$0xff] %vm874, %v3569
        %3602 = vst.msk [vmem:[#allocation3 + $0x10] sm:$0xff] %vm874, %v3570
        %3603 = vst.msk [vmem:[#allocation3 + $0x18] sm:$0xff] %vm874, %v3571
        %3604 = vst.msk [vmem:[#allocation3 + $0x20] sm:$0xff] %vm874, %v3572
        %3605 = vst.msk [vmem:[#allocation3 + $0x28] sm:$0xff] %vm874, %v3573
        %3606 = vst.msk [vmem:[#allocation3 + $0x30] sm:$0xff] %vm874, %v3574
        %3607 = vst.msk [vmem:[#allocation3 + $0x38] sm:$0xff] %vm874, %v3575
        %3608 = vst.msk [vmem:[#allocation3 + $0x40] sm:$0xff] %vm874, %v3576
        %3609 = vst.msk [vmem:[#allocation3 + $0x48] sm:$0xff] %vm874, %v3577
        %3610 = vst.msk [vmem:[#allocation3 + $0x50] sm:$0xff] %vm874, %v3578
        %3611 = vst.msk [vmem:[#allocation3 + $0x58] sm:$0xff] %vm874, %v3579
        %3612 = vst.msk [vmem:[#allocation3 + $0x60] sm:$0xff] %vm874, %v3580
        %3613 = vst.msk [vmem:[#allocation3 + $0x68] sm:$0xff] %vm874, %v3581
        %3614 = vst.msk [vmem:[#allocation3 + $0x70] sm:$0xff] %vm874, %v3582
        %3615 = vst.msk [vmem:[#allocation3 + $0x78] sm:$0xff] %vm874, %v3583
        %3616 = vst.msk [vmem:[#allocation3 + $0x80] sm:$0xff] %vm874, %v3584
        %3617 = vst.msk [vmem:[#allocation3 + $0x88] sm:$0xff] %vm874, %v3585
        %3618 = vst.msk [vmem:[#allocation3 + $0x90] sm:$0xff] %vm874, %v3586
        %3619 = vst.msk [vmem:[#allocation3 + $0x98] sm:$0xff] %vm874, %v3587
        %3620 = vst.msk [vmem:[#allocation3 + $0xa0] sm:$0xff] %vm874, %v3588
        %3621 = vst.msk [vmem:[#allocation3 + $0xa8] sm:$0xff] %vm874, %v3589
        %3622 = vst.msk [vmem:[#allocation3 + $0xb0] sm:$0xff] %vm874, %v3590
        %3623 = vst.msk [vmem:[#allocation3 + $0xb8] sm:$0xff] %vm874, %v3591
        %3624 = vst.msk [vmem:[#allocation3 + $0xc0] sm:$0xff] %vm874, %v3592
        %3625 = vst.msk [vmem:[#allocation3 + $0xc8] sm:$0xff] %vm874, %v3593
        %3626 = vst.msk [vmem:[#allocation3 + $0xd0] sm:$0xff] %vm874, %v3594
        %3627 = vst.msk [vmem:[#allocation3 + $0xd8] sm:$0xff] %vm874, %v3595
        %3628 = vst.msk [vmem:[#allocation3 + $0xe0] sm:$0xff] %vm874, %v3596
        %3629 = vst.msk [vmem:[#allocation3 + $0xe8] sm:$0xff] %vm874, %v3597
        %3630 = vst.msk [vmem:[#allocation3 + $0xf0] sm:$0xff] %vm874, %v3598
        %3631 = vst.msk [vmem:[#allocation3 + $0xf8] sm:$0xff] %vm874, %v3599
        %v3632 = vld [vmem:[%s3177 + $0x1] sm:$0xff]
        %v3633 = vld [vmem:[%s3177 + $0x9] sm:$0xff]
        %v3634 = vld [vmem:[%s3177 + $0x19] sm:$0xff]
        %v3635 = vld [vmem:[%s3177 + $0x21] sm:$0xff]
        %v3636 = vld [vmem:[%s3177 + $0x31] sm:$0xff]
        %v3637 = vld [vmem:[%s3177 + $0x39] sm:$0xff]
        %v3638 = vld [vmem:[%s3177 + $0x49] sm:$0xff]
        %v3639 = vld [vmem:[%s3177 + $0x51] sm:$0xff]
        %v3640 = vld [vmem:[%s3177 + $0x61] sm:$0xff]
        %v3641 = vld [vmem:[%s3177 + $0x69] sm:$0xff]
        %v3642 = vld [vmem:[%s3177 + $0x79] sm:$0xff]
        %v3643 = vld [vmem:[%s3177 + $0x81] sm:$0xff]
        %v3644 = vld [vmem:[%s3177 + $0x91] sm:$0xff]
        %v3645 = vld [vmem:[%s3177 + $0x99] sm:$0xff]
        %v3646 = vld [vmem:[%s3177 + $0xa9] sm:$0xff]
        %v3647 = vld [vmem:[%s3177 + $0xb1] sm:$0xff]
        %v3648 = vld [vmem:[%s3177 + $0xc1] sm:$0xff]
        %v3649 = vld [vmem:[%s3177 + $0xc9] sm:$0xff]
        %v3650 = vld [vmem:[%s3177 + $0xd9] sm:$0xff]
        %v3651 = vld [vmem:[%s3177 + $0xe1] sm:$0xff]
        %v3652 = vld [vmem:[%s3177 + $0xf1] sm:$0xff]
        %v3653 = vld [vmem:[%s3177 + $0xf9] sm:$0xff]
        %v3654 = vld [vmem:[%s3177 + $0x109] sm:$0xff]
        %v3655 = vld [vmem:[%s3177 + $0x111] sm:$0xff]
        %v3656 = vld [vmem:[%s3177 + $0x121] sm:$0xff]
        %v3657 = vld [vmem:[%s3177 + $0x129] sm:$0xff]
        %v3658 = vld [vmem:[%s3177 + $0x139] sm:$0xff]
        %v3659 = vld [vmem:[%s3177 + $0x141] sm:$0xff]
        %v3660 = vld [vmem:[%s3177 + $0x151] sm:$0xff]
        %v3661 = vld [vmem:[%s3177 + $0x159] sm:$0xff]
        %v3662 = vld [vmem:[%s3177 + $0x169] sm:$0xff]
        %v3663 = vld [vmem:[%s3177 + $0x171] sm:$0xff]
        %s3664 = scalar_lea.vmem [#allocation10], 28
        %v3665 = vld [vmem:[%s3664] sm:$0xf]
        %v3667 = vsel %vm295, %v3632, 0
        %v3670 = vsel %vm295, %v3633, 0
        %v3673 = vsel %vm295, %v3634, 0
        %v3676 = vsel %vm295, %v3635, 0
        %v3679 = vsel %vm295, %v3636, 0
        %v3682 = vsel %vm295, %v3637, 0
        %v3685 = vsel %vm295, %v3638, 0
        %v3688 = vsel %vm295, %v3639, 0
        %v3691 = vsel %vm295, %v3640, 0
        %v3694 = vsel %vm295, %v3641, 0
        %v3697 = vsel %vm295, %v3642, 0
        %v3700 = vsel %vm295, %v3643, 0
        %v3703 = vsel %vm295, %v3644, 0
        %v3706 = vsel %vm295, %v3645, 0
        %v3709 = vsel %vm295, %v3646, 0
        %v3712 = vsel %vm295, %v3647, 0
        %v3715 = vsel %vm295, %v3648, 0
        %v3718 = vsel %vm295, %v3649, 0
        %v3721 = vsel %vm295, %v3650, 0
        %v3724 = vsel %vm295, %v3651, 0
        %v3727 = vsel %vm295, %v3652, 0
        %v3730 = vsel %vm295, %v3653, 0
        %v3733 = vsel %vm295, %v3654, 0
        %v3736 = vsel %vm295, %v3655, 0
        %v3739 = vsel %vm295, %v3656, 0
        %v3742 = vsel %vm295, %v3657, 0
        %v3745 = vsel %vm295, %v3658, 0
        %v3748 = vsel %vm295, %v3659, 0
        %v3751 = vsel %vm295, %v3660, 0
        %v3754 = vsel %vm295, %v3661, 0
        %v3757 = vsel %vm295, %v3662, 0
        %v3760 = vsel %vm295, %v3663, 0
        %v3763 = vsel %vm645, %v3665, 0
        %3765 = vmatprep.subr.mxu0 0.0
        %3766 = vmatpush1.msra.mxu0 %v3763
        %3767 = vmatprep.subr.mxu0 0.0
        %3768 = vmatpush1.msra.mxu0 0.0
        %3769 = vmatprep.subr.mxu0 0.0
        %3770 = vmatpush1.msra.mxu0 0.0
        %3771 = vmatprep.subr.mxu0 0.0
        %3772 = vmatpush1.msra.mxu0 0.0
        %3773 = vmatprep.subr.mxu0 0.0
        %3774 = vmatpush1.msra.mxu0 0.0
        %3775 = vmatprep.subr.mxu0 0.0
        %3776 = vmatpush1.msra.mxu0 0.0
        %3777 = vmatprep.subr.mxu0 0.0
        %3778 = vmatpush1.msra.mxu0 0.0
        %3779 = vmatprep.subr.mxu0 0.0
        %3780 = vmatpush1.msra.mxu0 0.0
        %3781 = vmatprep.subr.mxu0 0.0
        %3782 = vmatpush1.msra.mxu0 0.0
        %3783 = vmatprep.subr.mxu0 0.0
        %3784 = vmatpush1.msra.mxu0 0.0
        %3785 = vmatprep.subr.mxu0 0.0
        %3786 = vmatpush1.msra.mxu0 0.0
        %3787 = vmatprep.subr.mxu0 0.0
        %3788 = vmatpush1.msra.mxu0 0.0
        %3789 = vmatprep.subr.mxu0 0.0
        %3790 = vmatpush1.msra.mxu0 0.0
        %3791 = vmatprep.subr.mxu0 0.0
        %3792 = vmatpush1.msra.mxu0 0.0
        %3793 = vmatprep.subr.mxu0 0.0
        %3794 = vmatpush1.msra.mxu0 0.0
        %3795 = vmatprep.subr.mxu0 0.0
        %3796 = vmatpush1.msra.mxu0 0.0
        %3797 = vmatprep.subr.mxu0 0.0
        %3798 = vmatpush1.msra.mxu0 0.0
        %3799 = vmatprep.subr.mxu0 0.0
        %3800 = vmatpush1.msra.mxu0 0.0
        %3801 = vmatprep.subr.mxu0 0.0
        %3802 = vmatpush1.msra.mxu0 0.0
        %3803 = vmatprep.subr.mxu0 0.0
        %3804 = vmatpush1.msra.mxu0 0.0
        %3805 = vmatprep.subr.mxu0 0.0
        %3806 = vmatpush1.msra.mxu0 0.0
        %3807 = vmatprep.subr.mxu0 0.0
        %3808 = vmatpush1.msra.mxu0 0.0
        %3809 = vmatprep.subr.mxu0 0.0
        %3810 = vmatpush1.msra.mxu0 0.0
        %3811 = vmatprep.subr.mxu0 0.0
        %3812 = vmatpush1.msra.mxu0 0.0
        %3813 = vmatprep.subr.mxu0 0.0
        %3814 = vmatpush1.msra.mxu0 0.0
        %3815 = vmatprep.subr.mxu0 0.0
        %3816 = vmatpush1.msra.mxu0 0.0
        %3817 = vmatprep.subr.mxu0 0.0
        %3818 = vmatpush1.msra.mxu0 0.0
        %3819 = vmatprep.subr.mxu0 0.0
        %3820 = vmatpush1.msra.mxu0 0.0
        %3821 = vmatprep.subr.mxu0 0.0
        %3822 = vmatpush1.msra.mxu0 0.0
        %3823 = vmatprep.subr.mxu0 0.0
        %3824 = vmatpush1.msra.mxu0 0.0
        %3825 = vmatprep.subr.mxu0 0.0
        %3826 = vmatpush1.msra.mxu0 0.0
        %3827 = vmatprep.subr.mxu0 0.0
        %3828 = vmatpush1.msra.mxu0 0.0
        %3829 = vmatprep.mubr.f32.mxu0 0.0
        %3830 = vmatmul.mubr.f32.gmra.mrb[0].mxu0 %v3667
        %v3831 = vpop.f32.mrb[0].mxu0
        %v3832 = vadd.f32 0.0, %v3831
        %v3833 = vpop.f32.mrb[0].mxu0
        %3834 = vmatprep.mubr.f32.mxu0 0.0
        %3835 = vmatmul.mubr.f32.gmra.mrb[0].mxu0 %v3670
        %v3836 = vpop.f32.mrb[0].mxu0
        %v3837 = vadd.f32 0.0, %v3836
        %v3838 = vpop.f32.mrb[0].mxu0
        %3839 = vmatprep.mubr.f32.mxu0 0.0
        %3840 = vmatmul.mubr.f32.gmra.mrb[0].mxu0 %v3673
        %v3841 = vpop.f32.mrb[0].mxu0
        %v3842 = vadd.f32 0.0, %v3841
        %v3843 = vpop.f32.mrb[0].mxu0
        %3844 = vmatprep.mubr.f32.mxu0 0.0
        %3845 = vmatmul.mubr.f32.gmra.mrb[0].mxu0 %v3676
        %v3846 = vpop.f32.mrb[0].mxu0
        %v3847 = vadd.f32 0.0, %v3846
        %v3848 = vpop.f32.mrb[0].mxu0
        %3849 = vmatprep.mubr.f32.mxu0 0.0
        %3850 = vmatmul.mubr.f32.gmra.mrb[0].mxu0 %v3679
        %v3851 = vpop.f32.mrb[0].mxu0
        %v3852 = vadd.f32 0.0, %v3851
        %v3853 = vpop.f32.mrb[0].mxu0
        %3854 = vmatprep.mubr.f32.mxu0 0.0
        %3855 = vmatmul.mubr.f32.gmra.mrb[0].mxu0 %v3682
        %v3856 = vpop.f32.mrb[0].mxu0
        %v3857 = vadd.f32 0.0, %v3856
        %v3858 = vpop.f32.mrb[0].mxu0
        %3859 = vmatprep.mubr.f32.mxu0 0.0
        %3860 = vmatmul.mubr.f32.gmra.mrb[0].mxu0 %v3685
        %v3861 = vpop.f32.mrb[0].mxu0
        %v3862 = vadd.f32 0.0, %v3861
        %v3863 = vpop.f32.mrb[0].mxu0
        %3864 = vmatprep.mubr.f32.mxu0 0.0
        %3865 = vmatmul.mubr.f32.gmra.mrb[0].mxu0 %v3688
        %v3866 = vpop.f32.mrb[0].mxu0
        %v3867 = vadd.f32 0.0, %v3866
        %v3868 = vpop.f32.mrb[0].mxu0
        %3869 = vmatprep.mubr.f32.mxu0 0.0
        %3870 = vmatmul.mubr.f32.gmra.mrb[0].mxu0 %v3691
        %v3871 = vpop.f32.mrb[0].mxu0
        %v3872 = vadd.f32 0.0, %v3871
        %v3873 = vpop.f32.mrb[0].mxu0
        %3874 = vmatprep.mubr.f32.mxu0 0.0
        %3875 = vmatmul.mubr.f32.gmra.mrb[0].mxu0 %v3694
        %v3876 = vpop.f32.mrb[0].mxu0
        %v3877 = vadd.f32 0.0, %v3876
        %v3878 = vpop.f32.mrb[0].mxu0
        %3879 = vmatprep.mubr.f32.mxu0 0.0
        %3880 = vmatmul.mubr.f32.gmra.mrb[0].mxu0 %v3697
        %v3881 = vpop.f32.mrb[0].mxu0
        %v3882 = vadd.f32 0.0, %v3881
        %v3883 = vpop.f32.mrb[0].mxu0
        %3884 = vmatprep.mubr.f32.mxu0 0.0
        %3885 = vmatmul.mubr.f32.gmra.mrb[0].mxu0 %v3700
        %v3886 = vpop.f32.mrb[0].mxu0
        %v3887 = vadd.f32 0.0, %v3886
        %v3888 = vpop.f32.mrb[0].mxu0
        %3889 = vmatprep.mubr.f32.mxu0 0.0
        %3890 = vmatmul.mubr.f32.gmra.mrb[0].mxu0 %v3703
        %v3891 = vpop.f32.mrb[0].mxu0
        %v3892 = vadd.f32 0.0, %v3891
        %v3893 = vpop.f32.mrb[0].mxu0
        %3894 = vmatprep.mubr.f32.mxu0 0.0
        %3895 = vmatmul.mubr.f32.gmra.mrb[0].mxu0 %v3706
        %v3896 = vpop.f32.mrb[0].mxu0
        %v3897 = vadd.f32 0.0, %v3896
        %v3898 = vpop.f32.mrb[0].mxu0
        %3899 = vmatprep.mubr.f32.mxu0 0.0
        %3900 = vmatmul.mubr.f32.gmra.mrb[0].mxu0 %v3709
        %v3901 = vpop.f32.mrb[0].mxu0
        %v3902 = vadd.f32 0.0, %v3901
        %v3903 = vpop.f32.mrb[0].mxu0
        %3904 = vmatprep.mubr.f32.mxu0 0.0
        %3905 = vmatmul.mubr.f32.gmra.mrb[0].mxu0 %v3712
        %v3906 = vpop.f32.mrb[0].mxu0
        %v3907 = vadd.f32 0.0, %v3906
        %v3908 = vpop.f32.mrb[0].mxu0
        %3909 = vmatprep.mubr.f32.mxu0 0.0
        %3910 = vmatmul.mubr.f32.gmra.mrb[0].mxu0 %v3715
        %v3911 = vpop.f32.mrb[0].mxu0
        %v3912 = vadd.f32 0.0, %v3911
        %v3913 = vpop.f32.mrb[0].mxu0
        %3914 = vmatprep.mubr.f32.mxu0 0.0
        %3915 = vmatmul.mubr.f32.gmra.mrb[0].mxu0 %v3718
        %v3916 = vpop.f32.mrb[0].mxu0
        %v3917 = vadd.f32 0.0, %v3916
        %v3918 = vpop.f32.mrb[0].mxu0
        %3919 = vmatprep.mubr.f32.mxu0 0.0
        %3920 = vmatmul.mubr.f32.gmra.mrb[0].mxu0 %v3721
        %v3921 = vpop.f32.mrb[0].mxu0
        %v3922 = vadd.f32 0.0, %v3921
        %v3923 = vpop.f32.mrb[0].mxu0
        %3924 = vmatprep.mubr.f32.mxu0 0.0
        %3925 = vmatmul.mubr.f32.gmra.mrb[0].mxu0 %v3724
        %v3926 = vpop.f32.mrb[0].mxu0
        %v3927 = vadd.f32 0.0, %v3926
        %v3928 = vpop.f32.mrb[0].mxu0
        %3929 = vmatprep.mubr.f32.mxu0 0.0
        %3930 = vmatmul.mubr.f32.gmra.mrb[0].mxu0 %v3727
        %v3931 = vpop.f32.mrb[0].mxu0
        %v3932 = vadd.f32 0.0, %v3931
        %v3933 = vpop.f32.mrb[0].mxu0
        %3934 = vmatprep.mubr.f32.mxu0 0.0
        %3935 = vmatmul.mubr.f32.gmra.mrb[0].mxu0 %v3730
        %v3936 = vpop.f32.mrb[0].mxu0
        %v3937 = vadd.f32 0.0, %v3936
        %v3938 = vpop.f32.mrb[0].mxu0
        %3939 = vmatprep.mubr.f32.mxu0 0.0
        %3940 = vmatmul.mubr.f32.gmra.mrb[0].mxu0 %v3733
        %v3941 = vpop.f32.mrb[0].mxu0
        %v3942 = vadd.f32 0.0, %v3941
        %v3943 = vpop.f32.mrb[0].mxu0
        %3944 = vmatprep.mubr.f32.mxu0 0.0
        %3945 = vmatmul.mubr.f32.gmra.mrb[0].mxu0 %v3736
        %v3946 = vpop.f32.mrb[0].mxu0
        %v3947 = vadd.f32 0.0, %v3946
        %v3948 = vpop.f32.mrb[0].mxu0
        %3949 = vmatprep.mubr.f32.mxu0 0.0
        %3950 = vmatmul.mubr.f32.gmra.mrb[0].mxu0 %v3739
        %v3951 = vpop.f32.mrb[0].mxu0
        %v3952 = vadd.f32 0.0, %v3951
        %v3953 = vpop.f32.mrb[0].mxu0
        %3954 = vmatprep.mubr.f32.mxu0 0.0
        %3955 = vmatmul.mubr.f32.gmra.mrb[0].mxu0 %v3742
        %v3956 = vpop.f32.mrb[0].mxu0
        %v3957 = vadd.f32 0.0, %v3956
        %v3958 = vpop.f32.mrb[0].mxu0
        %3959 = vmatprep.mubr.f32.mxu0 0.0
        %3960 = vmatmul.mubr.f32.gmra.mrb[0].mxu0 %v3745
        %v3961 = vpop.f32.mrb[0].mxu0
        %v3962 = vadd.f32 0.0, %v3961
        %v3963 = vpop.f32.mrb[0].mxu0
        %3964 = vmatprep.mubr.f32.mxu0 0.0
        %3965 = vmatmul.mubr.f32.gmra.mrb[0].mxu0 %v3748
        %v3966 = vpop.f32.mrb[0].mxu0
        %v3967 = vadd.f32 0.0, %v3966
        %v3968 = vpop.f32.mrb[0].mxu0
        %3969 = vmatprep.mubr.f32.mxu0 0.0
        %3970 = vmatmul.mubr.f32.gmra.mrb[0].mxu0 %v3751
        %v3971 = vpop.f32.mrb[0].mxu0
        %v3972 = vadd.f32 0.0, %v3971
        %v3973 = vpop.f32.mrb[0].mxu0
        %3974 = vmatprep.mubr.f32.mxu0 0.0
        %3975 = vmatmul.mubr.f32.gmra.mrb[0].mxu0 %v3754
        %v3976 = vpop.f32.mrb[0].mxu0
        %v3977 = vadd.f32 0.0, %v3976
        %v3978 = vpop.f32.mrb[0].mxu0
        %3979 = vmatprep.mubr.f32.mxu0 0.0
        %3980 = vmatmul.mubr.f32.gmra.mrb[0].mxu0 %v3757
        %v3981 = vpop.f32.mrb[0].mxu0
        %v3982 = vadd.f32 0.0, %v3981
        %v3983 = vpop.f32.mrb[0].mxu0
        %3984 = vmatprep.mubr.f32.mxu0 0.0
        %3985 = vmatmul.mubr.f32.gmra.mrb[0].mxu0 %v3760
        %v3986 = vpop.f32.mrb[0].mxu0
        %v3987 = vadd.f32 0.0, %v3986
        %v3988 = vpop.f32.mrb[0].mxu0
        %3989 = vdwg.mxu0
        %v3990 = vld [vmem:[#allocation3] sm:$0xff]
        %v3991 = vld [vmem:[#allocation3 + $0x8] sm:$0xff]
        %v3992 = vld [vmem:[#allocation3 + $0x10] sm:$0xff]
        %v3993 = vld [vmem:[#allocation3 + $0x18] sm:$0xff]
        %v3994 = vld [vmem:[#allocation3 + $0x20] sm:$0xff]
        %v3995 = vld [vmem:[#allocation3 + $0x28] sm:$0xff]
        %v3996 = vld [vmem:[#allocation3 + $0x30] sm:$0xff]
        %v3997 = vld [vmem:[#allocation3 + $0x38] sm:$0xff]
        %v3998 = vld [vmem:[#allocation3 + $0x40] sm:$0xff]
        %v3999 = vld [vmem:[#allocation3 + $0x48] sm:$0xff]
        %v4000 = vld [vmem:[#allocation3 + $0x50] sm:$0xff]
        %v4001 = vld [vmem:[#allocation3 + $0x58] sm:$0xff]
        %v4002 = vld [vmem:[#allocation3 + $0x60] sm:$0xff]
        %v4003 = vld [vmem:[#allocation3 + $0x68] sm:$0xff]
        %v4004 = vld [vmem:[#allocation3 + $0x70] sm:$0xff]
        %v4005 = vld [vmem:[#allocation3 + $0x78] sm:$0xff]
        %v4006 = vld [vmem:[#allocation3 + $0x80] sm:$0xff]
        %v4007 = vld [vmem:[#allocation3 + $0x88] sm:$0xff]
        %v4008 = vld [vmem:[#allocation3 + $0x90] sm:$0xff]
        %v4009 = vld [vmem:[#allocation3 + $0x98] sm:$0xff]
        %v4010 = vld [vmem:[#allocation3 + $0xa0] sm:$0xff]
        %v4011 = vld [vmem:[#allocation3 + $0xa8] sm:$0xff]
        %v4012 = vld [vmem:[#allocation3 + $0xb0] sm:$0xff]
        %v4013 = vld [vmem:[#allocation3 + $0xb8] sm:$0xff]
        %v4014 = vld [vmem:[#allocation3 + $0xc0] sm:$0xff]
        %v4015 = vld [vmem:[#allocation3 + $0xc8] sm:$0xff]
        %v4016 = vld [vmem:[#allocation3 + $0xd0] sm:$0xff]
        %v4017 = vld [vmem:[#allocation3 + $0xd8] sm:$0xff]
        %v4018 = vld [vmem:[#allocation3 + $0xe0] sm:$0xff]
        %v4019 = vld [vmem:[#allocation3 + $0xe8] sm:$0xff]
        %v4020 = vld [vmem:[#allocation3 + $0xf0] sm:$0xff]
        %v4021 = vld [vmem:[#allocation3 + $0xf8] sm:$0xff]
        %v4022 = vadd.f32 %v3990, %v3832
        %v4023 = vadd.f32 %v3991, %v3837
        %v4024 = vadd.f32 %v3992, %v3842
        %v4025 = vadd.f32 %v3993, %v3847
        %v4026 = vadd.f32 %v3994, %v3852
        %v4027 = vadd.f32 %v3995, %v3857
        %v4028 = vadd.f32 %v3996, %v3862
        %v4029 = vadd.f32 %v3997, %v3867
        %v4030 = vadd.f32 %v3998, %v3872
        %v4031 = vadd.f32 %v3999, %v3877
        %v4032 = vadd.f32 %v4000, %v3882
        %v4033 = vadd.f32 %v4001, %v3887
        %v4034 = vadd.f32 %v4002, %v3892
        %v4035 = vadd.f32 %v4003, %v3897
        %v4036 = vadd.f32 %v4004, %v3902
        %v4037 = vadd.f32 %v4005, %v3907
        %v4038 = vadd.f32 %v4006, %v3912
        %v4039 = vadd.f32 %v4007, %v3917
        %v4040 = vadd.f32 %v4008, %v3922
        %v4041 = vadd.f32 %v4009, %v3927
        %v4042 = vadd.f32 %v4010, %v3932
        %v4043 = vadd.f32 %v4011, %v3937
        %v4044 = vadd.f32 %v4012, %v3942
        %v4045 = vadd.f32 %v4013, %v3947
        %v4046 = vadd.f32 %v4014, %v3952
        %v4047 = vadd.f32 %v4015, %v3957
        %v4048 = vadd.f32 %v4016, %v3962
        %v4049 = vadd.f32 %v4017, %v3967
        %v4050 = vadd.f32 %v4018, %v3972
        %v4051 = vadd.f32 %v4019, %v3977
        %v4052 = vadd.f32 %v4020, %v3982
        %v4053 = vadd.f32 %v4021, %v3987
        %4054 = vst.msk [vmem:[#allocation3] sm:$0xff] %vm874, %v4022
        %4055 = vst.msk [vmem:[#allocation3 + $0x8] sm:$0xff] %vm874, %v4023
        %4056 = vst.msk [vmem:[#allocation3 + $0x10] sm:$0xff] %vm874, %v4024
        %4057 = vst.msk [vmem:[#allocation3 + $0x18] sm:$0xff] %vm874, %v4025
        %4058 = vst.msk [vmem:[#allocation3 + $0x20] sm:$0xff] %vm874, %v4026
        %4059 = vst.msk [vmem:[#allocation3 + $0x28] sm:$0xff] %vm874, %v4027
        %4060 = vst.msk [vmem:[#allocation3 + $0x30] sm:$0xff] %vm874, %v4028
        %4061 = vst.msk [vmem:[#allocation3 + $0x38] sm:$0xff] %vm874, %v4029
        %4062 = vst.msk [vmem:[#allocation3 + $0x40] sm:$0xff] %vm874, %v4030
        %4063 = vst.msk [vmem:[#allocation3 + $0x48] sm:$0xff] %vm874, %v4031
        %4064 = vst.msk [vmem:[#allocation3 + $0x50] sm:$0xff] %vm874, %v4032
        %4065 = vst.msk [vmem:[#allocation3 + $0x58] sm:$0xff] %vm874, %v4033
        %4066 = vst.msk [vmem:[#allocation3 + $0x60] sm:$0xff] %vm874, %v4034
        %4067 = vst.msk [vmem:[#allocation3 + $0x68] sm:$0xff] %vm874, %v4035
        %4068 = vst.msk [vmem:[#allocation3 + $0x70] sm:$0xff] %vm874, %v4036
        %4069 = vst.msk [vmem:[#allocation3 + $0x78] sm:$0xff] %vm874, %v4037
        %4070 = vst.msk [vmem:[#allocation3 + $0x80] sm:$0xff] %vm874, %v4038
        %4071 = vst.msk [vmem:[#allocation3 + $0x88] sm:$0xff] %vm874, %v4039
        %4072 = vst.msk [vmem:[#allocation3 + $0x90] sm:$0xff] %vm874, %v4040
        %4073 = vst.msk [vmem:[#allocation3 + $0x98] sm:$0xff] %vm874, %v4041
        %4074 = vst.msk [vmem:[#allocation3 + $0xa0] sm:$0xff] %vm874, %v4042
        %4075 = vst.msk [vmem:[#allocation3 + $0xa8] sm:$0xff] %vm874, %v4043
        %4076 = vst.msk [vmem:[#allocation3 + $0xb0] sm:$0xff] %vm874, %v4044
        %4077 = vst.msk [vmem:[#allocation3 + $0xb8] sm:$0xff] %vm874, %v4045
        %4078 = vst.msk [vmem:[#allocation3 + $0xc0] sm:$0xff] %vm874, %v4046
        %4079 = vst.msk [vmem:[#allocation3 + $0xc8] sm:$0xff] %vm874, %v4047
        %4080 = vst.msk [vmem:[#allocation3 + $0xd0] sm:$0xff] %vm874, %v4048
        %4081 = vst.msk [vmem:[#allocation3 + $0xd8] sm:$0xff] %vm874, %v4049
        %4082 = vst.msk [vmem:[#allocation3 + $0xe0] sm:$0xff] %vm874, %v4050
        %4083 = vst.msk [vmem:[#allocation3 + $0xe8] sm:$0xff] %vm874, %v4051
        %4084 = vst.msk [vmem:[#allocation3 + $0xf0] sm:$0xff] %vm874, %v4052
        %4085 = vst.msk [vmem:[#allocation3 + $0xf8] sm:$0xff] %vm874, %v4053
        %v4086 = vld [vmem:[%s3177 + $0x2] sm:$0xff]
        %v4087 = vld [vmem:[%s3177 + $0xa] sm:$0xff]
        %v4088 = vld [vmem:[%s3177 + $0x1a] sm:$0xff]
        %v4089 = vld [vmem:[%s3177 + $0x22] sm:$0xff]
        %v4090 = vld [vmem:[%s3177 + $0x32] sm:$0xff]
        %v4091 = vld [vmem:[%s3177 + $0x3a] sm:$0xff]
        %v4092 = vld [vmem:[%s3177 + $0x4a] sm:$0xff]
        %v4093 = vld [vmem:[%s3177 + $0x52] sm:$0xff]
        %v4094 = vld [vmem:[%s3177 + $0x62] sm:$0xff]
        %v4095 = vld [vmem:[%s3177 + $0x6a] sm:$0xff]
        %v4096 = vld [vmem:[%s3177 + $0x7a] sm:$0xff]
        %v4097 = vld [vmem:[%s3177 + $0x82] sm:$0xff]
        %v4098 = vld [vmem:[%s3177 + $0x92] sm:$0xff]
        %v4099 = vld [vmem:[%s3177 + $0x9a] sm:$0xff]
        %v4100 = vld [vmem:[%s3177 + $0xaa] sm:$0xff]
        %v4101 = vld [vmem:[%s3177 + $0xb2] sm:$0xff]
        %v4102 = vld [vmem:[%s3177 + $0xc2] sm:$0xff]
        %v4103 = vld [vmem:[%s3177 + $0xca] sm:$0xff]
        %v4104 = vld [vmem:[%s3177 + $0xda] sm:$0xff]
        %v4105 = vld [vmem:[%s3177 + $0xe2] sm:$0xff]
        %v4106 = vld [vmem:[%s3177 + $0xf2] sm:$0xff]
        %v4107 = vld [vmem:[%s3177 + $0xfa] sm:$0xff]
        %v4108 = vld [vmem:[%s3177 + $0x10a] sm:$0xff]
        %v4109 = vld [vmem:[%s3177 + $0x112] sm:$0xff]
        %v4110 = vld [vmem:[%s3177 + $0x122] sm:$0xff]
        %v4111 = vld [vmem:[%s3177 + $0x12a] sm:$0xff]
        %v4112 = vld [vmem:[%s3177 + $0x13a] sm:$0xff]
        %v4113 = vld [vmem:[%s3177 + $0x142] sm:$0xff]
        %v4114 = vld [vmem:[%s3177 + $0x152] sm:$0xff]
        %v4115 = vld [vmem:[%s3177 + $0x15a] sm:$0xff]
        %v4116 = vld [vmem:[%s3177 + $0x16a] sm:$0xff]
        %v4117 = vld [vmem:[%s3177 + $0x172] sm:$0xff]
        %s4118 = scalar_lea.vmem [#allocation10], 32
        %v4119 = vld [vmem:[%s4118] sm:$0xf]
        %v4121 = vsel %vm295, %v4086, 0
        %v4124 = vsel %vm295, %v4087, 0
        %v4127 = vsel %vm295, %v4088, 0
        %v4130 = vsel %vm295, %v4089, 0
        %v4133 = vsel %vm295, %v4090, 0
        %v4136 = vsel %vm295, %v4091, 0
        %v4139 = vsel %vm295, %v4092, 0
        %v4142 = vsel %vm295, %v4093, 0
        %v4145 = vsel %vm295, %v4094, 0
        %v4148 = vsel %vm295, %v4095, 0
        %v4151 = vsel %vm295, %v4096, 0
        %v4154 = vsel %vm295, %v4097, 0
        %v4157 = vsel %vm295, %v4098, 0
        %v4160 = vsel %vm295, %v4099, 0
        %v4163 = vsel %vm295, %v4100, 0
        %v4166 = vsel %vm295, %v4101, 0
        %v4169 = vsel %vm295, %v4102, 0
        %v4172 = vsel %vm295, %v4103, 0
        %v4175 = vsel %vm295, %v4104, 0
        %v4178 = vsel %vm295, %v4105, 0
        %v4181 = vsel %vm295, %v4106, 0
        %v4184 = vsel %vm295, %v4107, 0
        %v4187 = vsel %vm295, %v4108, 0
        %v4190 = vsel %vm295, %v4109, 0
        %v4193 = vsel %vm295, %v4110, 0
        %v4196 = vsel %vm295, %v4111, 0
        %v4199 = vsel %vm295, %v4112, 0
        %v4202 = vsel %vm295, %v4113, 0
        %v4205 = vsel %vm295, %v4114, 0
        %v4208 = vsel %vm295, %v4115, 0
        %v4211 = vsel %vm295, %v4116, 0
        %v4214 = vsel %vm295, %v4117, 0
        %v4217 = vsel %vm645, %v4119, 0
        %4219 = vmatprep.subr.mxu0 0.0
        %4220 = vmatpush1.msra.mxu0 %v4217
        %4221 = vmatprep.subr.mxu0 0.0
        %4222 = vmatpush1.msra.mxu0 0.0
        %4223 = vmatprep.subr.mxu0 0.0
        %4224 = vmatpush1.msra.mxu0 0.0
        %4225 = vmatprep.subr.mxu0 0.0
        %4226 = vmatpush1.msra.mxu0 0.0
        %4227 = vmatprep.subr.mxu0 0.0
        %4228 = vmatpush1.msra.mxu0 0.0
        %4229 = vmatprep.subr.mxu0 0.0
        %4230 = vmatpush1.msra.mxu0 0.0
        %4231 = vmatprep.subr.mxu0 0.0
        %4232 = vmatpush1.msra.mxu0 0.0
        %4233 = vmatprep.subr.mxu0 0.0
        %4234 = vmatpush1.msra.mxu0 0.0
        %4235 = vmatprep.subr.mxu0 0.0
        %4236 = vmatpush1.msra.mxu0 0.0
        %4237 = vmatprep.subr.mxu0 0.0
        %4238 = vmatpush1.msra.mxu0 0.0
        %4239 = vmatprep.subr.mxu0 0.0
        %4240 = vmatpush1.msra.mxu0 0.0
        %4241 = vmatprep.subr.mxu0 0.0
        %4242 = vmatpush1.msra.mxu0 0.0
        %4243 = vmatprep.subr.mxu0 0.0
        %4244 = vmatpush1.msra.mxu0 0.0
        %4245 = vmatprep.subr.mxu0 0.0
        %4246 = vmatpush1.msra.mxu0 0.0
        %4247 = vmatprep.subr.mxu0 0.0
        %4248 = vmatpush1.msra.mxu0 0.0
        %4249 = vmatprep.subr.mxu0 0.0
        %4250 = vmatpush1.msra.mxu0 0.0
        %4251 = vmatprep.subr.mxu0 0.0
        %4252 = vmatpush1.msra.mxu0 0.0
        %4253 = vmatprep.subr.mxu0 0.0
        %4254 = vmatpush1.msra.mxu0 0.0
        %4255 = vmatprep.subr.mxu0 0.0
        %4256 = vmatpush1.msra.mxu0 0.0
        %4257 = vmatprep.subr.mxu0 0.0
        %4258 = vmatpush1.msra.mxu0 0.0
        %4259 = vmatprep.subr.mxu0 0.0
        %4260 = vmatpush1.msra.mxu0 0.0
        %4261 = vmatprep.subr.mxu0 0.0
        %4262 = vmatpush1.msra.mxu0 0.0
        %4263 = vmatprep.subr.mxu0 0.0
        %4264 = vmatpush1.msra.mxu0 0.0
        %4265 = vmatprep.subr.mxu0 0.0
        %4266 = vmatpush1.msra.mxu0 0.0
        %4267 = vmatprep.subr.mxu0 0.0
        %4268 = vmatpush1.msra.mxu0 0.0
        %4269 = vmatprep.subr.mxu0 0.0
        %4270 = vmatpush1.msra.mxu0 0.0
        %4271 = vmatprep.subr.mxu0 0.0
        %4272 = vmatpush1.msra.mxu0 0.0
        %4273 = vmatprep.subr.mxu0 0.0
        %4274 = vmatpush1.msra.mxu0 0.0
        %4275 = vmatprep.subr.mxu0 0.0
        %4276 = vmatpush1.msra.mxu0 0.0
        %4277 = vmatprep.subr.mxu0 0.0
        %4278 = vmatpush1.msra.mxu0 0.0
        %4279 = vmatprep.subr.mxu0 0.0
        %4280 = vmatpush1.msra.mxu0 0.0
        %4281 = vmatprep.subr.mxu0 0.0
        %4282 = vmatpush1.msra.mxu0 0.0
        %4283 = vmatprep.mubr.f32.mxu0 0.0
        %4284 = vmatmul.mubr.f32.gmra.mrb[0].mxu0 %v4121
        %v4285 = vpop.f32.mrb[0].mxu0
        %v4286 = vadd.f32 0.0, %v4285
        %v4287 = vpop.f32.mrb[0].mxu0
        %4288 = vmatprep.mubr.f32.mxu0 0.0
        %4289 = vmatmul.mubr.f32.gmra.mrb[0].mxu0 %v4124
        %v4290 = vpop.f32.mrb[0].mxu0
        %v4291 = vadd.f32 0.0, %v4290
        %v4292 = vpop.f32.mrb[0].mxu0
        %4293 = vmatprep.mubr.f32.mxu0 0.0
        %4294 = vmatmul.mubr.f32.gmra.mrb[0].mxu0 %v4127
        %v4295 = vpop.f32.mrb[0].mxu0
        %v4296 = vadd.f32 0.0, %v4295
        %v4297 = vpop.f32.mrb[0].mxu0
        %4298 = vmatprep.mubr.f32.mxu0 0.0
        %4299 = vmatmul.mubr.f32.gmra.mrb[0].mxu0 %v4130
        %v4300 = vpop.f32.mrb[0].mxu0
        %v4301 = vadd.f32 0.0, %v4300
        %v4302 = vpop.f32.mrb[0].mxu0
        %4303 = vmatprep.mubr.f32.mxu0 0.0
        %4304 = vmatmul.mubr.f32.gmra.mrb[0].mxu0 %v4133
        %v4305 = vpop.f32.mrb[0].mxu0
        %v4306 = vadd.f32 0.0, %v4305
        %v4307 = vpop.f32.mrb[0].mxu0
        %4308 = vmatprep.mubr.f32.mxu0 0.0
        %4309 = vmatmul.mubr.f32.gmra.mrb[0].mxu0 %v4136
        %v4310 = vpop.f32.mrb[0].mxu0
        %v4311 = vadd.f32 0.0, %v4310
        %v4312 = vpop.f32.mrb[0].mxu0
        %4313 = vmatprep.mubr.f32.mxu0 0.0
        %4314 = vmatmul.mubr.f32.gmra.mrb[0].mxu0 %v4139
        %v4315 = vpop.f32.mrb[0].mxu0
        %v4316 = vadd.f32 0.0, %v4315
        %v4317 = vpop.f32.mrb[0].mxu0
        %4318 = vmatprep.mubr.f32.mxu0 0.0
        %4319 = vmatmul.mubr.f32.gmra.mrb[0].mxu0 %v4142
        %v4320 = vpop.f32.mrb[0].mxu0
        %v4321 = vadd.f32 0.0, %v4320
        %v4322 = vpop.f32.mrb[0].mxu0
        %4323 = vmatprep.mubr.f32.mxu0 0.0
        %4324 = vmatmul.mubr.f32.gmra.mrb[0].mxu0 %v4145
        %v4325 = vpop.f32.mrb[0].mxu0
        %v4326 = vadd.f32 0.0, %v4325
        %v4327 = vpop.f32.mrb[0].mxu0
        %4328 = vmatprep.mubr.f32.mxu0 0.0
        %4329 = vmatmul.mubr.f32.gmra.mrb[0].mxu0 %v4148
        %v4330 = vpop.f32.mrb[0].mxu0
        %v4331 = vadd.f32 0.0, %v4330
        %v4332 = vpop.f32.mrb[0].mxu0
        %4333 = vmatprep.mubr.f32.mxu0 0.0
        %4334 = vmatmul.mubr.f32.gmra.mrb[0].mxu0 %v4151
        %v4335 = vpop.f32.mrb[0].mxu0
        %v4336 = vadd.f32 0.0, %v4335
        %v4337 = vpop.f32.mrb[0].mxu0
        %4338 = vmatprep.mubr.f32.mxu0 0.0
        %4339 = vmatmul.mubr.f32.gmra.mrb[0].mxu0 %v4154
        %v4340 = vpop.f32.mrb[0].mxu0
        %v4341 = vadd.f32 0.0, %v4340
        %v4342 = vpop.f32.mrb[0].mxu0
        %4343 = vmatprep.mubr.f32.mxu0 0.0
        %4344 = vmatmul.mubr.f32.gmra.mrb[0].mxu0 %v4157
        %v4345 = vpop.f32.mrb[0].mxu0
        %v4346 = vadd.f32 0.0, %v4345
        %v4347 = vpop.f32.mrb[0].mxu0
        %4348 = vmatprep.mubr.f32.mxu0 0.0
        %4349 = vmatmul.mubr.f32.gmra.mrb[0].mxu0 %v4160
        %v4350 = vpop.f32.mrb[0].mxu0
        %v4351 = vadd.f32 0.0, %v4350
        %v4352 = vpop.f32.mrb[0].mxu0
        %4353 = vmatprep.mubr.f32.mxu0 0.0
        %4354 = vmatmul.mubr.f32.gmra.mrb[0].mxu0 %v4163
        %v4355 = vpop.f32.mrb[0].mxu0
        %v4356 = vadd.f32 0.0, %v4355
        %v4357 = vpop.f32.mrb[0].mxu0
        %4358 = vmatprep.mubr.f32.mxu0 0.0
        %4359 = vmatmul.mubr.f32.gmra.mrb[0].mxu0 %v4166
        %v4360 = vpop.f32.mrb[0].mxu0
        %v4361 = vadd.f32 0.0, %v4360
        %v4362 = vpop.f32.mrb[0].mxu0
        %4363 = vmatprep.mubr.f32.mxu0 0.0
        %4364 = vmatmul.mubr.f32.gmra.mrb[0].mxu0 %v4169
        %v4365 = vpop.f32.mrb[0].mxu0
        %v4366 = vadd.f32 0.0, %v4365
        %v4367 = vpop.f32.mrb[0].mxu0
        %4368 = vmatprep.mubr.f32.mxu0 0.0
        %4369 = vmatmul.mubr.f32.gmra.mrb[0].mxu0 %v4172
        %v4370 = vpop.f32.mrb[0].mxu0
        %v4371 = vadd.f32 0.0, %v4370
        %v4372 = vpop.f32.mrb[0].mxu0
        %4373 = vmatprep.mubr.f32.mxu0 0.0
        %4374 = vmatmul.mubr.f32.gmra.mrb[0].mxu0 %v4175
        %v4375 = vpop.f32.mrb[0].mxu0
        %v4376 = vadd.f32 0.0, %v4375
        %v4377 = vpop.f32.mrb[0].mxu0
        %4378 = vmatprep.mubr.f32.mxu0 0.0
        %4379 = vmatmul.mubr.f32.gmra.mrb[0].mxu0 %v4178
        %v4380 = vpop.f32.mrb[0].mxu0
        %v4381 = vadd.f32 0.0, %v4380
        %v4382 = vpop.f32.mrb[0].mxu0
        %4383 = vmatprep.mubr.f32.mxu0 0.0
        %4384 = vmatmul.mubr.f32.gmra.mrb[0].mxu0 %v4181
        %v4385 = vpop.f32.mrb[0].mxu0
        %v4386 = vadd.f32 0.0, %v4385
        %v4387 = vpop.f32.mrb[0].mxu0
        %4388 = vmatprep.mubr.f32.mxu0 0.0
        %4389 = vmatmul.mubr.f32.gmra.mrb[0].mxu0 %v4184
        %v4390 = vpop.f32.mrb[0].mxu0
        %v4391 = vadd.f32 0.0, %v4390
        %v4392 = vpop.f32.mrb[0].mxu0
        %4393 = vmatprep.mubr.f32.mxu0 0.0
        %4394 = vmatmul.mubr.f32.gmra.mrb[0].mxu0 %v4187
        %v4395 = vpop.f32.mrb[0].mxu0
        %v4396 = vadd.f32 0.0, %v4395
        %v4397 = vpop.f32.mrb[0].mxu0
        %4398 = vmatprep.mubr.f32.mxu0 0.0
        %4399 = vmatmul.mubr.f32.gmra.mrb[0].mxu0 %v4190
        %v4400 = vpop.f32.mrb[0].mxu0
        %v4401 = vadd.f32 0.0, %v4400
        %v4402 = vpop.f32.mrb[0].mxu0
        %4403 = vmatprep.mubr.f32.mxu0 0.0
        %4404 = vmatmul.mubr.f32.gmra.mrb[0].mxu0 %v4193
        %v4405 = vpop.f32.mrb[0].mxu0
        %v4406 = vadd.f32 0.0, %v4405
        %v4407 = vpop.f32.mrb[0].mxu0
        %4408 = vmatprep.mubr.f32.mxu0 0.0
        %4409 = vmatmul.mubr.f32.gmra.mrb[0].mxu0 %v4196
        %v4410 = vpop.f32.mrb[0].mxu0
        %v4411 = vadd.f32 0.0, %v4410
        %v4412 = vpop.f32.mrb[0].mxu0
        %4413 = vmatprep.mubr.f32.mxu0 0.0
        %4414 = vmatmul.mubr.f32.gmra.mrb[0].mxu0 %v4199
        %v4415 = vpop.f32.mrb[0].mxu0
        %v4416 = vadd.f32 0.0, %v4415
        %v4417 = vpop.f32.mrb[0].mxu0
        %4418 = vmatprep.mubr.f32.mxu0 0.0
        %4419 = vmatmul.mubr.f32.gmra.mrb[0].mxu0 %v4202
        %v4420 = vpop.f32.mrb[0].mxu0
        %v4421 = vadd.f32 0.0, %v4420
        %v4422 = vpop.f32.mrb[0].mxu0
        %4423 = vmatprep.mubr.f32.mxu0 0.0
        %4424 = vmatmul.mubr.f32.gmra.mrb[0].mxu0 %v4205
        %v4425 = vpop.f32.mrb[0].mxu0
        %v4426 = vadd.f32 0.0, %v4425
        %v4427 = vpop.f32.mrb[0].mxu0
        %4428 = vmatprep.mubr.f32.mxu0 0.0
        %4429 = vmatmul.mubr.f32.gmra.mrb[0].mxu0 %v4208
        %v4430 = vpop.f32.mrb[0].mxu0
        %v4431 = vadd.f32 0.0, %v4430
        %v4432 = vpop.f32.mrb[0].mxu0
        %4433 = vmatprep.mubr.f32.mxu0 0.0
        %4434 = vmatmul.mubr.f32.gmra.mrb[0].mxu0 %v4211
        %v4435 = vpop.f32.mrb[0].mxu0
        %v4436 = vadd.f32 0.0, %v4435
        %v4437 = vpop.f32.mrb[0].mxu0
        %4438 = vmatprep.mubr.f32.mxu0 0.0
        %4439 = vmatmul.mubr.f32.gmra.mrb[0].mxu0 %v4214
        %v4440 = vpop.f32.mrb[0].mxu0
        %v4441 = vadd.f32 0.0, %v4440
        %v4442 = vpop.f32.mrb[0].mxu0
        %4443 = vdwg.mxu0
        %v4444 = vld [vmem:[#allocation3] sm:$0xff]
        %v4445 = vld [vmem:[#allocation3 + $0x8] sm:$0xff]
        %v4446 = vld [vmem:[#allocation3 + $0x10] sm:$0xff]
        %v4447 = vld [vmem:[#allocation3 + $0x18] sm:$0xff]
        %v4448 = vld [vmem:[#allocation3 + $0x20] sm:$0xff]
        %v4449 = vld [vmem:[#allocation3 + $0x28] sm:$0xff]
        %v4450 = vld [vmem:[#allocation3 + $0x30] sm:$0xff]
        %v4451 = vld [vmem:[#allocation3 + $0x38] sm:$0xff]
        %v4452 = vld [vmem:[#allocation3 + $0x40] sm:$0xff]
        %v4453 = vld [vmem:[#allocation3 + $0x48] sm:$0xff]
        %v4454 = vld [vmem:[#allocation3 + $0x50] sm:$0xff]
        %v4455 = vld [vmem:[#allocation3 + $0x58] sm:$0xff]
        %v4456 = vld [vmem:[#allocation3 + $0x60] sm:$0xff]
        %v4457 = vld [vmem:[#allocation3 + $0x68] sm:$0xff]
        %v4458 = vld [vmem:[#allocation3 + $0x70] sm:$0xff]
        %v4459 = vld [vmem:[#allocation3 + $0x78] sm:$0xff]
        %v4460 = vld [vmem:[#allocation3 + $0x80] sm:$0xff]
        %v4461 = vld [vmem:[#allocation3 + $0x88] sm:$0xff]
        %v4462 = vld [vmem:[#allocation3 + $0x90] sm:$0xff]
        %v4463 = vld [vmem:[#allocation3 + $0x98] sm:$0xff]
        %v4464 = vld [vmem:[#allocation3 + $0xa0] sm:$0xff]
        %v4465 = vld [vmem:[#allocation3 + $0xa8] sm:$0xff]
        %v4466 = vld [vmem:[#allocation3 + $0xb0] sm:$0xff]
        %v4467 = vld [vmem:[#allocation3 + $0xb8] sm:$0xff]
        %v4468 = vld [vmem:[#allocation3 + $0xc0] sm:$0xff]
        %v4469 = vld [vmem:[#allocation3 + $0xc8] sm:$0xff]
        %v4470 = vld [vmem:[#allocation3 + $0xd0] sm:$0xff]
        %v4471 = vld [vmem:[#allocation3 + $0xd8] sm:$0xff]
        %v4472 = vld [vmem:[#allocation3 + $0xe0] sm:$0xff]
        %v4473 = vld [vmem:[#allocation3 + $0xe8] sm:$0xff]
        %v4474 = vld [vmem:[#allocation3 + $0xf0] sm:$0xff]
        %v4475 = vld [vmem:[#allocation3 + $0xf8] sm:$0xff]
        %v4476 = vadd.f32 %v4444, %v4286
        %v4477 = vadd.f32 %v4445, %v4291
        %v4478 = vadd.f32 %v4446, %v4296
        %v4479 = vadd.f32 %v4447, %v4301
        %v4480 = vadd.f32 %v4448, %v4306
        %v4481 = vadd.f32 %v4449, %v4311
        %v4482 = vadd.f32 %v4450, %v4316
        %v4483 = vadd.f32 %v4451, %v4321
        %v4484 = vadd.f32 %v4452, %v4326
        %v4485 = vadd.f32 %v4453, %v4331
        %v4486 = vadd.f32 %v4454, %v4336
        %v4487 = vadd.f32 %v4455, %v4341
        %v4488 = vadd.f32 %v4456, %v4346
        %v4489 = vadd.f32 %v4457, %v4351
        %v4490 = vadd.f32 %v4458, %v4356
        %v4491 = vadd.f32 %v4459, %v4361
        %v4492 = vadd.f32 %v4460, %v4366
        %v4493 = vadd.f32 %v4461, %v4371
        %v4494 = vadd.f32 %v4462, %v4376
        %v4495 = vadd.f32 %v4463, %v4381
        %v4496 = vadd.f32 %v4464, %v4386
        %v4497 = vadd.f32 %v4465, %v4391
        %v4498 = vadd.f32 %v4466, %v4396
        %v4499 = vadd.f32 %v4467, %v4401
        %v4500 = vadd.f32 %v4468, %v4406
        %v4501 = vadd.f32 %v4469, %v4411
        %v4502 = vadd.f32 %v4470, %v4416
        %v4503 = vadd.f32 %v4471, %v4421
        %v4504 = vadd.f32 %v4472, %v4426
        %v4505 = vadd.f32 %v4473, %v4431
        %v4506 = vadd.f32 %v4474, %v4436
        %v4507 = vadd.f32 %v4475, %v4441
        %4508 = vst.msk [vmem:[#allocation3] sm:$0xff] %vm874, %v4476
        %4509 = vst.msk [vmem:[#allocation3 + $0x8] sm:$0xff] %vm874, %v4477
        %4510 = vst.msk [vmem:[#allocation3 + $0x10] sm:$0xff] %vm874, %v4478
        %4511 = vst.msk [vmem:[#allocation3 + $0x18] sm:$0xff] %vm874, %v4479
        %4512 = vst.msk [vmem:[#allocation3 + $0x20] sm:$0xff] %vm874, %v4480
        %4513 = vst.msk [vmem:[#allocation3 + $0x28] sm:$0xff] %vm874, %v4481
        %4514 = vst.msk [vmem:[#allocation3 + $0x30] sm:$0xff] %vm874, %v4482
        %4515 = vst.msk [vmem:[#allocation3 + $0x38] sm:$0xff] %vm874, %v4483
        %4516 = vst.msk [vmem:[#allocation3 + $0x40] sm:$0xff] %vm874, %v4484
        %4517 = vst.msk [vmem:[#allocation3 + $0x48] sm:$0xff] %vm874, %v4485
        %4518 = vst.msk [vmem:[#allocation3 + $0x50] sm:$0xff] %vm874, %v4486
        %4519 = vst.msk [vmem:[#allocation3 + $0x58] sm:$0xff] %vm874, %v4487
        %4520 = vst.msk [vmem:[#allocation3 + $0x60] sm:$0xff] %vm874, %v4488
        %4521 = vst.msk [vmem:[#allocation3 + $0x68] sm:$0xff] %vm874, %v4489
        %4522 = vst.msk [vmem:[#allocation3 + $0x70] sm:$0xff] %vm874, %v4490
        %4523 = vst.msk [vmem:[#allocation3 + $0x78] sm:$0xff] %vm874, %v4491
        %4524 = vst.msk [vmem:[#allocation3 + $0x80] sm:$0xff] %vm874, %v4492
        %4525 = vst.msk [vmem:[#allocation3 + $0x88] sm:$0xff] %vm874, %v4493
        %4526 = vst.msk [vmem:[#allocation3 + $0x90] sm:$0xff] %vm874, %v4494
        %4527 = vst.msk [vmem:[#allocation3 + $0x98] sm:$0xff] %vm874, %v4495
        %4528 = vst.msk [vmem:[#allocation3 + $0xa0] sm:$0xff] %vm874, %v4496
        %4529 = vst.msk [vmem:[#allocation3 + $0xa8] sm:$0xff] %vm874, %v4497
        %4530 = vst.msk [vmem:[#allocation3 + $0xb0] sm:$0xff] %vm874, %v4498
        %4531 = vst.msk [vmem:[#allocation3 + $0xb8] sm:$0xff] %vm874, %v4499
        %4532 = vst.msk [vmem:[#allocation3 + $0xc0] sm:$0xff] %vm874, %v4500
        %4533 = vst.msk [vmem:[#allocation3 + $0xc8] sm:$0xff] %vm874, %v4501
        %4534 = vst.msk [vmem:[#allocation3 + $0xd0] sm:$0xff] %vm874, %v4502
        %4535 = vst.msk [vmem:[#allocation3 + $0xd8] sm:$0xff] %vm874, %v4503
        %4536 = vst.msk [vmem:[#allocation3 + $0xe0] sm:$0xff] %vm874, %v4504
        %4537 = vst.msk [vmem:[#allocation3 + $0xe8] sm:$0xff] %vm874, %v4505
        %4538 = vst.msk [vmem:[#allocation3 + $0xf0] sm:$0xff] %vm874, %v4506
        %4539 = vst.msk [vmem:[#allocation3 + $0xf8] sm:$0xff] %vm874, %v4507
        %v4540 = vld [vmem:[#allocation3] sm:$0xff]
        %v4541 = vld [vmem:[#allocation3 + $0x8] sm:$0xff]
        %v4542 = vld [vmem:[#allocation3 + $0x10] sm:$0xff]
        %v4543 = vld [vmem:[#allocation3 + $0x18] sm:$0xff]
        %v4544 = vld [vmem:[#allocation3 + $0x20] sm:$0xff]
        %v4545 = vld [vmem:[#allocation3 + $0x28] sm:$0xff]
        %v4546 = vld [vmem:[#allocation3 + $0x30] sm:$0xff]
        %v4547 = vld [vmem:[#allocation3 + $0x38] sm:$0xff]
        %v4548 = vld [vmem:[#allocation3 + $0x40] sm:$0xff]
        %v4549 = vld [vmem:[#allocation3 + $0x48] sm:$0xff]
        %v4550 = vld [vmem:[#allocation3 + $0x50] sm:$0xff]
        %v4551 = vld [vmem:[#allocation3 + $0x58] sm:$0xff]
        %v4552 = vld [vmem:[#allocation3 + $0x60] sm:$0xff]
        %v4553 = vld [vmem:[#allocation3 + $0x68] sm:$0xff]
        %v4554 = vld [vmem:[#allocation3 + $0x70] sm:$0xff]
        %v4555 = vld [vmem:[#allocation3 + $0x78] sm:$0xff]
        %v4556 = vld [vmem:[#allocation3 + $0x80] sm:$0xff]
        %v4557 = vld [vmem:[#allocation3 + $0x88] sm:$0xff]
        %v4558 = vld [vmem:[#allocation3 + $0x90] sm:$0xff]
        %v4559 = vld [vmem:[#allocation3 + $0x98] sm:$0xff]
        %v4560 = vld [vmem:[#allocation3 + $0xa0] sm:$0xff]
        %v4561 = vld [vmem:[#allocation3 + $0xa8] sm:$0xff]
        %v4562 = vld [vmem:[#allocation3 + $0xb0] sm:$0xff]
        %v4563 = vld [vmem:[#allocation3 + $0xb8] sm:$0xff]
        %v4564 = vld [vmem:[#allocation3 + $0xc0] sm:$0xff]
        %v4565 = vld [vmem:[#allocation3 + $0xc8] sm:$0xff]
        %v4566 = vld [vmem:[#allocation3 + $0xd0] sm:$0xff]
        %v4567 = vld [vmem:[#allocation3 + $0xd8] sm:$0xff]
        %v4568 = vld [vmem:[#allocation3 + $0xe0] sm:$0xff]
        %v4569 = vld [vmem:[#allocation3 + $0xe8] sm:$0xff]
        %v4570 = vld [vmem:[#allocation3 + $0xf0] sm:$0xff]
        %v4571 = vld [vmem:[#allocation3 + $0xf8] sm:$0xff]
        %v4572 = vld [vmem:[#allocation12] sm:$0x1]
        %v4574 = vlaneseq
        %v4575 = vshrl.u32 %v4574, 7
        %v4576 = vsub.s32 0, %v4575
        %v4577 = vrot.slane %v4572, %v4576
        %v4579 = vadd.f32 %v4540, %v4577
        %v4580 = vadd.f32 %v4541, %v4577
        %v4581 = vadd.f32 %v4542, %v4577
        %v4582 = vadd.f32 %v4543, %v4577
        %v4583 = vadd.f32 %v4544, %v4577
        %v4584 = vadd.f32 %v4545, %v4577
        %v4585 = vadd.f32 %v4546, %v4577
        %v4586 = vadd.f32 %v4547, %v4577
        %v4587 = vadd.f32 %v4548, %v4577
        %v4588 = vadd.f32 %v4549, %v4577
        %v4589 = vadd.f32 %v4550, %v4577
        %v4590 = vadd.f32 %v4551, %v4577
        %v4591 = vadd.f32 %v4552, %v4577
        %v4592 = vadd.f32 %v4553, %v4577
        %v4593 = vadd.f32 %v4554, %v4577
        %v4594 = vadd.f32 %v4555, %v4577
        %v4595 = vadd.f32 %v4556, %v4577
        %v4596 = vadd.f32 %v4557, %v4577
        %v4597 = vadd.f32 %v4558, %v4577
        %v4598 = vadd.f32 %v4559, %v4577
        %v4599 = vadd.f32 %v4560, %v4577
        %v4600 = vadd.f32 %v4561, %v4577
        %v4601 = vadd.f32 %v4562, %v4577
        %v4602 = vadd.f32 %v4563, %v4577
        %v4603 = vadd.f32 %v4564, %v4577
        %v4604 = vadd.f32 %v4565, %v4577
        %v4605 = vadd.f32 %v4566, %v4577
        %v4606 = vadd.f32 %v4567, %v4577
        %v4607 = vadd.f32 %v4568, %v4577
        %v4608 = vadd.f32 %v4569, %v4577
        %v4609 = vadd.f32 %v4570, %v4577
        %v4610 = vadd.f32 %v4571, %v4577
        %4611 = vst.msk [vmem:[%s294] sm:$0xff] %vm874, %v4579
        %4612 = vst.msk [vmem:[%s294 + $0x8] sm:$0xff] %vm874, %v4580
        %4613 = vst.msk [vmem:[%s294 + $0x10] sm:$0xff] %vm874, %v4581
        %4614 = vst.msk [vmem:[%s294 + $0x18] sm:$0xff] %vm874, %v4582
        %4615 = vst.msk [vmem:[%s294 + $0x20] sm:$0xff] %vm874, %v4583
        %4616 = vst.msk [vmem:[%s294 + $0x28] sm:$0xff] %vm874, %v4584
        %4617 = vst.msk [vmem:[%s294 + $0x30] sm:$0xff] %vm874, %v4585
        %4618 = vst.msk [vmem:[%s294 + $0x38] sm:$0xff] %vm874, %v4586
        %4619 = vst.msk [vmem:[%s294 + $0x40] sm:$0xff] %vm874, %v4587
        %4620 = vst.msk [vmem:[%s294 + $0x48] sm:$0xff] %vm874, %v4588
        %4621 = vst.msk [vmem:[%s294 + $0x50] sm:$0xff] %vm874, %v4589
        %4622 = vst.msk [vmem:[%s294 + $0x58] sm:$0xff] %vm874, %v4590
        %4623 = vst.msk [vmem:[%s294 + $0x60] sm:$0xff] %vm874, %v4591
        %4624 = vst.msk [vmem:[%s294 + $0x68] sm:$0xff] %vm874, %v4592
        %4625 = vst.msk [vmem:[%s294 + $0x70] sm:$0xff] %vm874, %v4593
        %4626 = vst.msk [vmem:[%s294 + $0x78] sm:$0xff] %vm874, %v4594
        %4627 = vst.msk [vmem:[%s294 + $0x80] sm:$0xff] %vm874, %v4595
        %4628 = vst.msk [vmem:[%s294 + $0x88] sm:$0xff] %vm874, %v4596
        %4629 = vst.msk [vmem:[%s294 + $0x90] sm:$0xff] %vm874, %v4597
        %4630 = vst.msk [vmem:[%s294 + $0x98] sm:$0xff] %vm874, %v4598
        %4631 = vst.msk [vmem:[%s294 + $0xa0] sm:$0xff] %vm874, %v4599
        %4632 = vst.msk [vmem:[%s294 + $0xa8] sm:$0xff] %vm874, %v4600
        %4633 = vst.msk [vmem:[%s294 + $0xb0] sm:$0xff] %vm874, %v4601
        %4634 = vst.msk [vmem:[%s294 + $0xb8] sm:$0xff] %vm874, %v4602
        %4635 = vst.msk [vmem:[%s294 + $0xc0] sm:$0xff] %vm874, %v4603
        %4636 = vst.msk [vmem:[%s294 + $0xc8] sm:$0xff] %vm874, %v4604
        %4637 = vst.msk [vmem:[%s294 + $0xd0] sm:$0xff] %vm874, %v4605
        %4638 = vst.msk [vmem:[%s294 + $0xd8] sm:$0xff] %vm874, %v4606
        %4639 = vst.msk [vmem:[%s294 + $0xe0] sm:$0xff] %vm874, %v4607
        %4640 = vst.msk [vmem:[%s294 + $0xe8] sm:$0xff] %vm874, %v4608
        %4641 = vst.msk [vmem:[%s294 + $0xf0] sm:$0xff] %vm874, %v4609
        %4642 = vst.msk [vmem:[%s294 + $0xf8] sm:$0xff] %vm874, %v4610
        %s4643 = sand.u32 %s142, 1
        %s4644 = scalar_lea.sflag [#allocation6], %s4643
        %s4645 = sand.u32 %s142, 1
        %s4646 = smul.addr %s4645, 256
        %s4647 = scalar_lea.vmem [#allocation13], %s4646
        // Predicated region
        $region61: #{tpu_custom_call.1} parent=39 // pred_check
          %p4648 = pneg %p152
        $region62: #{tpu_custom_call.1} parent=39 // pred_check_branch
          %4650 = sbr.rel (%p4648) target = $region64
        $region63: #{tpu_custom_call.1} parent=39 // pred_region
          %s4652 = ssub.s32 4096, 4096
          %4653 = vsyncadd %s4644, %s4652
          %s4654 = smul.addr %s24, 32
          %s4655 = smul.addr %s4654, 128
          %s4656 = scalar_lea.hbm %s5, %s4655
          %s4657 = sshll.u32 %s4647, 4
          %s4658 = int_to_ptr.vmem [resolvable:$true] %s4657
          %4663 = dma.vmem_to_hbm [thread:$0]  %s4658, 4096, %s4656, %s4644, 128, 128, 8
        $region64: #{tpu_custom_call.1} parent=39 // pred_fallthru
          _
      $region40: #{tpu_custom_call.1} parent=5 // pred_fallthru
        _
      %p4664 = scmp.le.s32.totalorder 2, %s19
      // Predicated region
      $region65: #{tpu_custom_call.1} parent=5 // pred_check
        %p4665 = pneg %p4664
      $region66: #{tpu_custom_call.1} parent=5 // pred_check_branch
        %4667 = sbr.rel (%p4665) target = $region68
      $region67: #{tpu_custom_call.1} parent=5 // pred_region
        %s4668 = ssub.s32 %s19, 2
        // Predicated region
        $region69: #{tpu_custom_call.1} parent=67 // pred_check
          %p4669 = pneg %p158
        $region70: #{tpu_custom_call.1} parent=67 // pred_check_branch
          %4671 = sbr.rel (%p4669) target = $region72
        $region71: #{tpu_custom_call.1} parent=67 // pred_region
          %s4672 = sand.u32 %s143, 1
          %s4673 = scalar_lea.sflag [#allocation6], %s4672
          %s4674 = sand.u32 %s143, 1
          %s4675 = smul.addr %s4674, 256
          %s4676 = scalar_lea.vmem [#allocation13], %s4675
          %4677 = dma.done %s4673, 4096
        $region72: #{tpu_custom_call.1} parent=67 // pred_fallthru
          _
      $region68: #{tpu_custom_call.1} parent=5 // pred_fallthru
        _
    $region6: #{tpu_custom_call.1} parent=1 // loop_footer
      %s23 = sadd.s32 1, %s19
    $region7: #{tpu_custom_call.1} parent=1 // loop_footer_branch
      %18 = sbr.rel target = $region3
    $region8: #{tpu_custom_call.1} parent=1 // loop_exit
      _
    %4678 = vsyncpa [#allocation5], 1
    %s4679 = scalar_lea.sflag [#allocation5], 1
    %4680 = vsyncpa %s4679, 1
    %4681 = vsyncpa [#allocation8], 1
    %4682 = vsyncpa [#allocation11], 1
    %4683 = vsyncpa [#allocation6], 1
    %s4684 = scalar_lea.sflag [#allocation6], 1
    %4685 = vsyncpa %s4684, 1

</llo_original>
